<compile_context>
chip_gen: v5e
topology: v5e:2x2
jax: 0.10.0
libtpu: 0.0.40
codegen_flags: <defaults>
</compile_context>

<pallas_src>
import math
from functools import partial

import jax
import jax.numpy as jnp
from jax.experimental import pallas as pl
from jax.experimental.pallas import tpu as pltpu


def _round_up(x, m):
    return ((x + m - 1) // m) * m


def _vmem_capacity_bytes():
    """Physical VMEM of the local TPU (64 MiB v7x, 128 MiB v5e/v6e); safe fallback."""
    try:
        info = pltpu.get_tpu_info()
        cap = int(getattr(info, "vmem_capacity_bytes", 0) or 0)
        if cap > 0:
            return cap
    except Exception:
        pass
    return 64 * 1024 * 1024  # conservative (v7x-sized) fallback


def _pick_tiles(n, npc, vmem_limit):
    """Pick (row tile TQ, contrast-column chunk CJ).

    The two [TQ, CJ, Npc] f32 compare temporaries must stay within ~half the VMEM
    budget; CJ must be a multiple of 128 dividing Npc (it is a BlockSpec lane dim).
    """
    budget = vmem_limit // 2
    per_pair = 2 * npc * 4                      # bytes/(row, j-col) for both temporaries
    cj = 128
    for cand in (npc, 1024, 512, 256, 128):
        if cand <= npc and npc % cand == 0 and 8 * cand * per_pair <= budget:
            cj = cand
            break
    tq = max(8, min(256, (budget // (cj * per_pair)) // 8 * 8))
    tq = min(tq, _round_up(n, 8))
    return int(tq), int(cj)


def _simmax_kernel(xq_ref, xt_ref, xtj_ref, out_ref, *, alpha, n_valid, tq, cj):
    ti = pl.program_id(1)                      # anchor-row tile
    jc = pl.program_id(2)                      # contrast-column chunk

    xq = xq_ref[0]                             # [TQ, Dp]   L2-normalized anchor rows
    xt = xt_ref[0]                             # [Dp, Npc]  full contrast set (this class)
    xtj = xtj_ref[0]                           # [Dp, CJ]   this step's contrast columns
    npc = xt.shape[1]

    # ---- "k" side: full contrast row, recomputed on the (otherwise idle) MXU ---------
    s_all = jnp.dot(xq, xt, preferred_element_type=jnp.float32)        # [TQ, Npc]
    sim_all = jnp.clip(s_all, 0.0005, 0.9995)
    k_cols = jax.lax.broadcasted_iota(jnp.int32, (tq, npc), 1)
    # padded contrast columns -> sentinel strictly below the clamp floor so they never
    # compare greater/equal against any valid similarity
    sim_k = jnp.where(k_cols < n_valid, sim_all, 1e-4)

    # ---- "j" side: the CJ columns handled by this grid step --------------------------
    s_j = jnp.dot(xq, xtj, preferred_element_type=jnp.float32)         # [TQ, CJ]
    sim_j = jnp.clip(s_j, 0.0005, 0.9995)

    # ---- chunked pairwise rank counts: only a [TQ, CJ, Npc] intermediate is live -----
    a3 = sim_k[:, None, :]                                             # [TQ, 1, Npc]
    b3 = sim_j[:, :, None]                                             # [TQ, CJ, 1]
    g = jnp.sum((a3 > b3).astype(jnp.float32), axis=-1)                # [TQ, CJ]
    m = jnp.sum((a3 == b3).astype(jnp.float32), axis=-1)               # [TQ, CJ]
    m = jnp.maximum(m, 1.0)                                            # always >= 1 anyway

    # ---- closed-form tied-group weight (exact, tie-order invariant) ------------------
    if alpha != 0.0:
        inv_denom = 1.0 / (1.0 - math.exp(-alpha))                     # trace-time scalar
        weights = (jnp.exp((1.0 - g) * alpha)
                   * (1.0 - jnp.exp(-m * alpha)) * inv_denom / m)
    else:
        weights = jnp.ones_like(g)

    loss = -jnp.log(sim_j)                     # clip <= 0.9995 => always > 0, no relu

    rows = ti * tq + jax.lax.broadcasted_iota(jnp.int32, (tq, cj), 0)
    cols = jc * cj + jax.lax.broadcasted_iota(jnp.int32, (tq, cj), 1)
    mask = jnp.logical_and(rows < n_valid, cols < n_valid).astype(jnp.float32)

    contrib = loss * weights * mask
    tile_sum = jnp.sum(contrib, axis=1, keepdims=True)                 # [TQ, 1]
    tile_sum = jnp.sum(tile_sum, axis=0, keepdims=True)                # [1, 1]

    # per-class resident accumulator (P3): init on the first tile of this class
    @pl.when(jnp.logical_and(ti == 0, jc == 0))
    def _():
        out_ref[...] = jnp.zeros_like(out_ref)

    out_ref[...] += jnp.broadcast_to(tile_sum[:, :, None], out_ref.shape)


def simmax_intraclass_loss(embedded, *, alpha=0.25, reduction="mean"):
    """embedded: [N, num_classes, D] float. Returns the scalar SimMaxLoss_intraclass."""
    x = embedded.astype(jnp.float32)
    n, c, d = x.shape

    # F.normalize(x, dim=2) with PyTorch's eps = 1e-12
    norm = jnp.sqrt(jnp.sum(x * x, axis=2, keepdims=True))
    xn = x / jnp.maximum(norm, 1e-12)

    xc = jnp.transpose(xn, (1, 0, 2))                                  # [C, N, D]

    dp = _round_up(d, 128)                                             # lane-pad features
    npc = _round_up(n, 128)                                            # lane-pad contrast

    vmem_cap = _vmem_capacity_bytes()
    vmem_limit = max(32 << 20, min(vmem_cap * 3 // 4, 100 << 20))      # ~48M v7x, ~96M v5e/v6e
    tq, cj = _pick_tiles(n, npc, vmem_limit)

    npr = _round_up(n, tq)                                             # row-pad anchors

    xq_arr = jnp.pad(xc, ((0, 0), (0, npr - n), (0, dp - d)))          # [C, Npr, Dp]
    xt_arr = jnp.pad(jnp.transpose(xc, (0, 2, 1)),
                     ((0, 0), (0, dp - d), (0, npc - n)))              # [C, Dp, Npc]

    grid = (c, npr // tq, npc // cj)
    kernel = partial(_simmax_kernel, alpha=float(alpha), n_valid=n, tq=tq, cj=cj)

    out = pl.pallas_call(
        kernel,
        out_shape=jax.ShapeDtypeStruct((c, 8, 128), jnp.float32),
        grid_spec=pltpu.PrefetchScalarGridSpec(
            num_scalar_prefetch=0,
            grid=grid,
            in_specs=[
                pl.BlockSpec((1, tq, dp), lambda ci, ti, jc: (ci, ti, 0)),   # anchor rows
                pl.BlockSpec((1, dp, npc), lambda ci, ti, jc: (ci, 0, 0)),   # full contrast
                pl.BlockSpec((1, dp, cj), lambda ci, ti, jc: (ci, 0, jc)),   # contrast chunk
            ],
            out_specs=pl.BlockSpec((1, 8, 128), lambda ci, ti, jc: (ci, 0, 0)),
        ),
        compiler_params=pltpu.CompilerParams(
            # class axis parallel -> shards across both TensorCores on v7x
            dimension_semantics=("parallel", "arbitrary", "arbitrary"),
            vmem_limit_bytes=int(vmem_limit),
        ),
    )(xq_arr, xt_arr, xt_arr)

    per_class = out[:, 0, 0]                                           # [C] partial sums
    total = jnp.sum(per_class)
    if reduction == "mean":
        return total / float(n * c * n)
    return total


def _reference(embedded, alpha=0.25, reduction="mean"):
    """Pure-JAX port of SimMaxLoss_intraclass.forward (metric='cos')."""
    x = embedded.astype(jnp.float32)
    xn = x / jnp.maximum(jnp.linalg.norm(x, axis=2, keepdims=True), 1e-12)
    xc = jnp.transpose(xn, (1, 0, 2))                                  # [C, N, D]
    sim = jnp.einsum("cnd,cmd->cnm", xc, xc)                           # [C, N, N]
    sim = jnp.transpose(sim, (1, 0, 2))                                # [N, C, N]
    sim = jnp.clip(sim, 0.0005, 0.9995)
    loss = jnp.maximum(-jnp.log(sim), 0.0)
    indices = jnp.argsort(-sim, axis=2)                                # descending, stable
    rank = jnp.argsort(indices, axis=2) - 1
    weights = jnp.exp(-rank.astype(jnp.float32) * alpha)
    loss = loss * weights
    return jnp.mean(loss) if reduction == "mean" else jnp.sum(loss)


if __name__ == "__main__":
    key = jax.random.PRNGKey(0)

    # main check: [batch, num_classes, feature_dim]
    N, C, D = 8, 4, 32
    x = jax.random.normal(key, (N, C, D), dtype=jnp.float32)
    loss = jax.block_until_ready(simmax_intraclass_loss(x, alpha=0.25, reduction="mean"))
    ref = jax.block_until_ready(_reference(x, alpha=0.25, reduction="mean"))
    assert bool(jnp.isfinite(loss)), loss
    assert jnp.allclose(loss, ref, rtol=1e-4, atol=1e-5), (loss, ref)

    # second check: non-multiple-of-8 batch + 'sum' reduction exercises the row/column
    # masking of the lane-padded contrast dimension
    key2 = jax.random.PRNGKey(1)
    x2 = jax.random.normal(key2, (10, 3, 20), dtype=jnp.float32)
    loss2 = jax.block_until_ready(simmax_intraclass_loss(x2, alpha=0.25, reduction="sum"))
    ref2 = jax.block_until_ready(_reference(x2, alpha=0.25, reduction="sum"))
    assert bool(jnp.isfinite(loss2)), loss2
    assert jnp.allclose(loss2, ref2, rtol=1e-4, atol=1e-4), (loss2, ref2)

    print("KERNEL_OK")
</pallas_src>

<mosaic_0001>
module attributes {stable_mosaic.version = 11 : i64} {
  func.func @_simmax_kernel(%arg0: i32, %arg1: i32, %arg2: i32, %arg3: memref<1x8x128xf32, #tpu.memory_space<vmem>>, %arg4: memref<1x128x128xf32, #tpu.memory_space<vmem>>, %arg5: memref<1x128x128xf32, #tpu.memory_space<vmem>>, %arg6: memref<1x8x128xf32, #tpu.memory_space<vmem>>) attributes {dimension_semantics = [#tpu.dimension_semantics<parallel>, #tpu.dimension_semantics<arbitrary>, #tpu.dimension_semantics<arbitrary>], iteration_bounds = array<i64: 4, 1, 1>, scalar_prefetch = 0 : i64, scratch_operands = 0 : i64, tpu.core_type = #tpu.core_type<tc>, window_params = [{transform_indices = @transform_0, window_bounds = array<i64: 1, 8, 128>}, {transform_indices = @transform_1, window_bounds = array<i64: 1, 128, 128>}, {transform_indices = @transform_2, window_bounds = array<i64: 1, 128, 128>}, {transform_indices = @transform_3, window_bounds = array<i64: 1, 8, 128>}]} {
    %c0 = arith.constant 0 : index
    %c0_0 = arith.constant 0 : index
    %c0_1 = arith.constant 0 : index
    %0 = vector.load %arg3[%c0, %c0_0, %c0_1] : memref<1x8x128xf32, #tpu.memory_space<vmem>>, vector<1x8x128xf32>
    %1 = vector.shape_cast %0 : vector<1x8x128xf32> to vector<8x128xf32>
    %c0_2 = arith.constant 0 : index
    %c0_3 = arith.constant 0 : index
    %c0_4 = arith.constant 0 : index
    %2 = vector.load %arg4[%c0_2, %c0_3, %c0_4] : memref<1x128x128xf32, #tpu.memory_space<vmem>>, vector<1x128x128xf32>
    %3 = vector.shape_cast %2 : vector<1x128x128xf32> to vector<128x128xf32>
    %c0_5 = arith.constant 0 : index
    %c0_6 = arith.constant 0 : index
    %c0_7 = arith.constant 0 : index
    %4 = vector.load %arg5[%c0_5, %c0_6, %c0_7] : memref<1x128x128xf32, #tpu.memory_space<vmem>>, vector<1x128x128xf32>
    %5 = vector.shape_cast %4 : vector<1x128x128xf32> to vector<128x128xf32>
    %cst = arith.constant dense<0.000000e+00> : vector<8x128xf32>
    %6 = tpu.matmul %1, %3, %cst {dimension_numbers = #tpu.dot_dimension_numbers<[1], [0], [0], [1], [0, 0, 1, 1], [], []>} : vector<8x128xf32>, vector<128x128xf32>, vector<8x128xf32> -> vector<8x128xf32>
    %cst_8 = arith.constant 5.000000e-04 : f32
    %cst_9 = arith.constant 0.999499976 : f32
    %7 = vector.broadcast %cst_8 : f32 to vector<8x128xf32>
    %8 = arith.maximumf %7, %6 : vector<8x128xf32>
    %9 = vector.broadcast %cst_9 : f32 to vector<8x128xf32>
    %10 = arith.minimumf %9, %8 : vector<8x128xf32>
    %11 = tpu.iota {dimensions = array<i32: 1>} : vector<8x128xi32>
    %c8_i32 = arith.constant 8 : i32
    %12 = vector.broadcast %c8_i32 : i32 to vector<8x128xi32>
    %13 = arith.cmpi slt, %11, %12 : vector<8x128xi32>
    %cst_10 = arith.constant 9.99999974E-5 : f32
    %14 = vector.broadcast %cst_10 : f32 to vector<8x128xf32>
    %15 = arith.select %13, %10, %14 : vector<8x128xi1>, vector<8x128xf32>
    %cst_11 = arith.constant dense<0.000000e+00> : vector<8x128xf32>
    %16 = tpu.matmul %1, %5, %cst_11 {dimension_numbers = #tpu.dot_dimension_numbers<[1], [0], [0], [1], [0, 0, 1, 1], [], []>} : vector<8x128xf32>, vector<128x128xf32>, vector<8x128xf32> -> vector<8x128xf32>
    %cst_12 = arith.constant 5.000000e-04 : f32
    %cst_13 = arith.constant 0.999499976 : f32
    %17 = vector.broadcast %cst_12 : f32 to vector<8x128xf32>
    %18 = arith.maximumf %17, %16 : vector<8x128xf32>
    %19 = vector.broadcast %cst_13 : f32 to vector<8x128xf32>
    %20 = arith.minimumf %19, %18 : vector<8x128xf32>
    %21 = vector.shape_cast %15 : vector<8x128xf32> to vector<8x1x128xf32>
    %22 = vector.shape_cast %20 : vector<8x128xf32> to vector<8x128x1xf32>
    %23 = vector.broadcast %21 : vector<8x1x128xf32> to vector<8x128x128xf32>
    %24 = vector.broadcast %22 : vector<8x128x1xf32> to vector<8x128x128xf32>
    %25 = arith.cmpf ogt, %23, %24 : vector<8x128x128xf32>
    %26 = arith.extui %25 : vector<8x128x128xi1> to vector<8x128x128xi32>
    %27 = arith.sitofp %26 : vector<8x128x128xi32> to vector<8x128x128xf32>
    %cst_14 = arith.constant dense<0.000000e+00> : vector<8x128xf32>
    %28 = vector.multi_reduction <add>, %27, %cst_14 [2] : vector<8x128x128xf32> to vector<8x128xf32>
    %29 = vector.broadcast %21 : vector<8x1x128xf32> to vector<8x128x128xf32>
    %30 = vector.broadcast %22 : vector<8x128x1xf32> to vector<8x128x128xf32>
    %31 = arith.cmpf oeq, %29, %30 : vector<8x128x128xf32>
    %32 = arith.extui %31 : vector<8x128x128xi1> to vector<8x128x128xi32>
    %33 = arith.sitofp %32 : vector<8x128x128xi32> to vector<8x128x128xf32>
    %cst_15 = arith.constant dense<0.000000e+00> : vector<8x128xf32>
    %34 = vector.multi_reduction <add>, %33, %cst_15 [2] : vector<8x128x128xf32> to vector<8x128xf32>
    %cst_16 = arith.constant 1.000000e+00 : f32
    %35 = vector.broadcast %cst_16 : f32 to vector<8x128xf32>
    %36 = arith.maximumf %34, %35 : vector<8x128xf32>
    %cst_17 = arith.constant 1.000000e+00 : f32
    %37 = vector.broadcast %cst_17 : f32 to vector<8x128xf32>
    %38 = arith.subf %37, %28 : vector<8x128xf32>
    %cst_18 = arith.constant 2.500000e-01 : f32
    %39 = vector.broadcast %cst_18 : f32 to vector<8x128xf32>
    %40 = arith.mulf %38, %39 : vector<8x128xf32>
    %41 = math.exp %40 : vector<8x128xf32>
    %cst_19 = arith.constant 0.000000e+00 : f32
    %42 = vector.broadcast %cst_19 : f32 to vector<8x128xf32>
    %43 = arith.subf %42, %36 : vector<8x128xf32>
    %cst_20 = arith.constant 2.500000e-01 : f32
    %44 = vector.broadcast %cst_20 : f32 to vector<8x128xf32>
    %45 = arith.mulf %43, %44 : vector<8x128xf32>
    %46 = math.exp %45 : vector<8x128xf32>
    %cst_21 = arith.constant 1.000000e+00 : f32
    %47 = vector.broadcast %cst_21 : f32 to vector<8x128xf32>
    %48 = arith.subf %47, %46 : vector<8x128xf32>
    %49 = arith.mulf %41, %48 : vector<8x128xf32>
    %cst_22 = arith.constant 4.52081156 : f32
    %50 = vector.broadcast %cst_22 : f32 to vector<8x128xf32>
    %51 = arith.mulf %49, %50 : vector<8x128xf32>
    %52 = arith.divf %51, %36 : vector<8x128xf32>
    %53 = math.log %20 : vector<8x128xf32>
    %cst_23 = arith.constant 0.000000e+00 : f32
    %54 = vector.broadcast %cst_23 : f32 to vector<8x128xf32>
    %55 = arith.subf %54, %53 : vector<8x128xf32>
    %c8_i32_24 = arith.constant 8 : i32
    %56 = arith.muli %arg1, %c8_i32_24 : i32
    %57 = tpu.iota {dimensions = array<i32: 0>} : vector<8x128xi32>
    %58 = vector.broadcast %56 : i32 to vector<8x128xi32>
    %59 = arith.addi %58, %57 : vector<8x128xi32>
    %c128_i32 = arith.constant 128 : i32
    %60 = arith.muli %arg2, %c128_i32 : i32
    %61 = tpu.iota {dimensions = array<i32: 1>} : vector<8x128xi32>
    %62 = vector.broadcast %60 : i32 to vector<8x128xi32>
    %63 = arith.addi %62, %61 : vector<8x128xi32>
    %c8_i32_25 = arith.constant 8 : i32
    %64 = vector.broadcast %c8_i32_25 : i32 to vector<8x128xi32>
    %65 = arith.cmpi slt, %59, %64 : vector<8x128xi32>
    %c8_i32_26 = arith.constant 8 : i32
    %66 = vector.broadcast %c8_i32_26 : i32 to vector<8x128xi32>
    %67 = arith.cmpi slt, %63, %66 : vector<8x128xi32>
    %68 = arith.andi %65, %67 : vector<8x128xi1>
    %69 = arith.extui %68 : vector<8x128xi1> to vector<8x128xi32>
    %70 = arith.sitofp %69 : vector<8x128xi32> to vector<8x128xf32>
    %71 = arith.mulf %55, %52 : vector<8x128xf32>
    %72 = arith.mulf %71, %70 : vector<8x128xf32>
    %cst_27 = arith.constant dense<0.000000e+00> : vector<8xf32>
    %73 = vector.multi_reduction <add>, %72, %cst_27 [1] : vector<8x128xf32> to vector<8xf32>
    %74 = vector.shape_cast %73 : vector<8xf32> to vector<8x1xf32>
    %cst_28 = arith.constant dense<0.000000e+00> : vector<1xf32>
    %75 = vector.multi_reduction <add>, %74, %cst_28 [0] : vector<8x1xf32> to vector<1xf32>
    %76 = vector.shape_cast %75 : vector<1xf32> to vector<1x1xf32>
    %c0_i32 = arith.constant 0 : i32
    %77 = arith.cmpi eq, %arg1, %c0_i32 : i32
    %c0_i32_29 = arith.constant 0 : i32
    %78 = arith.cmpi eq, %arg2, %c0_i32_29 : i32
    %79 = arith.andi %77, %78 : i1
    %80 = arith.extui %79 : i1 to i32
    %c0_i32_30 = arith.constant 0 : i32
    %81 = arith.cmpi ne, %80, %c0_i32_30 : i32
    scf.if %81 {
      %cst_37 = arith.constant 0.000000e+00 : f32
      %88 = vector.broadcast %cst_37 : f32 to vector<1x8x128xf32>
      %c0_38 = arith.constant 0 : index
      %c0_39 = arith.constant 0 : index
      %c0_40 = arith.constant 0 : index
      %89 = vector.load %arg6[%c0_38, %c0_39, %c0_40] : memref<1x8x128xf32, #tpu.memory_space<vmem>>, vector<1x8x128xf32>
      tpu.vector_store %arg6[%c0_38, %c0_39, %c0_40], %88 {strides = array<i32>} : memref<1x8x128xf32, #tpu.memory_space<vmem>>, vector<1x8x128xf32>,
    } else {
    }
    %c0_31 = arith.constant 0 : index
    %c0_32 = arith.constant 0 : index
    %c0_33 = arith.constant 0 : index
    %82 = vector.load %arg6[%c0_31, %c0_32, %c0_33] : memref<1x8x128xf32, #tpu.memory_space<vmem>>, vector<1x8x128xf32>
    %83 = vector.shape_cast %76 : vector<1x1xf32> to vector<1x1x1xf32>
    %84 = vector.shape_cast %83 : vector<1x1x1xf32> to vector<1x1x1xf32>
    %85 = vector.broadcast %84 : vector<1x1x1xf32> to vector<1x8x128xf32>
    %86 = arith.addf %82, %85 : vector<1x8x128xf32>
    %c0_34 = arith.constant 0 : index
    %c0_35 = arith.constant 0 : index
    %c0_36 = arith.constant 0 : index
    %87 = vector.load %arg6[%c0_34, %c0_35, %c0_36] : memref<1x8x128xf32, #tpu.memory_space<vmem>>, vector<1x8x128xf32>
    tpu.vector_store %arg6[%c0_34, %c0_35, %c0_36], %86 {strides = array<i32>} : memref<1x8x128xf32, #tpu.memory_space<vmem>>, vector<1x8x128xf32>,
    return
  }
  func.func @transform_0(%arg0: i32, %arg1: i32, %arg2: i32) -> (i32, i32, i32) {
    %c0_i32 = arith.constant 0 : i32
    %c0_i32_0 = arith.constant 0 : i32
    return %arg0, %arg1, %c0_i32 : i32, i32, i32
  }
  func.func @transform_1(%arg0: i32, %arg1: i32, %arg2: i32) -> (i32, i32, i32) {
    %c0_i32 = arith.constant 0 : i32
    %c0_i32_0 = arith.constant 0 : i32
    %c0_i32_1 = arith.constant 0 : i32
    return %arg0, %c0_i32, %c0_i32_0 : i32, i32, i32
  }
  func.func @transform_2(%arg0: i32, %arg1: i32, %arg2: i32) -> (i32, i32, i32) {
    %c0_i32 = arith.constant 0 : i32
    %c0_i32_0 = arith.constant 0 : i32
    return %arg0, %c0_i32, %arg2 : i32, i32, i32
  }
  func.func @transform_3(%arg0: i32, %arg1: i32, %arg2: i32) -> (i32, i32, i32) {
    %c0_i32 = arith.constant 0 : i32
    %c0_i32_0 = arith.constant 0 : i32
    %c0_i32_1 = arith.constant 0 : i32
    return %arg0, %c0_i32, %c0_i32_0 : i32, i32, i32
  }
}

</mosaic_0001>

<llo_original>
// kernel: tpu_custom_call.1
$region0: #{tpu_custom_call.1}
  #allocation0 [shape = 'u32[]', space=smem, size = 0x4, offset = 0x4, fixed_abs, tag = 'smem constant byte address 0x4 - core index']
  #allocation1 [shape = 'u32[72,128]{1,0:T(1,128)}', space=vmem, size = 0x9000, scoped, tag = 'internal scratch']
  %s0 = inlined_call_operand.hbm [shape: f32[4,8,128], index: 0, kind: input, shape index: {}]
  %s1 = inlined_call_operand.hbm [shape: f32[4,128,128], index: 1, kind: input, shape index: {}]
  %s2 = inlined_call_operand.hbm [shape: f32[4,128,128], index: 2, kind: input, shape index: {}]
  %s3 = inlined_call_operand.hbm [shape: f32[4,8,128], index: 3, kind: output, shape index: {}]
  %s4 = sld [smem:[#allocation0]]
  $region61: #{tpu_custom_call.1} parent=0
    _
  %s6 = ssub.s32 1, %s4
  %s7 = scalar_select 0, %s6, %s4
  $region1: #{tpu_custom_call.1} parent=0
    #allocation2 [shape = 'u8[8192]{0}', space=vmem, size = 0x2000, scoped, tag = 'input window, operand 0']
    #allocation3 [shape = 's32[2]{0}', space=sflag, size = 0x8, scoped, tag = 'scoped memory for tpu_custom_call.1']
    #allocation4 [shape = 's32[2]{0}', space=sflag, size = 0x8, scoped, tag = 'scoped memory for tpu_custom_call.1']
    #allocation5 [shape = 'u8[131072]{0}', space=vmem, size = 0x20000, scoped, tag = 'input window, operand 1']
    #allocation6 [shape = 's32[2]{0}', space=sflag, size = 0x8, scoped, tag = 'scoped memory for tpu_custom_call.1']
    #allocation7 [shape = 'u8[131072]{0}', space=vmem, size = 0x20000, scoped, tag = 'input window, operand 2']
    #allocation8 [shape = 'u8[8192]{0}', space=vmem, size = 0x2000, scoped, tag = 'output window, operand 0']
    %8 = vsyncpa [#allocation3], 0
    %s9 = scalar_lea.sflag [#allocation3], 1
    %10 = vsyncpa %s9, 0
    %11 = vsyncpa [#allocation6], 0
    %s12 = scalar_lea.sflag [#allocation6], 1
    %13 = vsyncpa %s12, 0
    %14 = vsyncpa [#allocation4], 0
    %s15 = scalar_lea.sflag [#allocation4], 1
    %16 = vsyncpa %s15, 0
    loop: start=0, step=1, limit=6
    $region2: #{tpu_custom_call.1} parent=1 // loop_pre_header
      _
    $region3: #{tpu_custom_call.1} parent=1 // loop_header
      %s18 = sphi 0, %s22
      %p19 = scmp.ge.s32.totalorder %s18, 6
      %s25 = sphi 0, %s44
      %s26 = sphi 0, %s40
      %s27 = sphi 0, %s36
      %s28 = sphi 0, %s25
      %s29 = sphi 0, %s26
      %s30 = sphi 0, %s27
      %s31 = sphi 0, %s28
      %s32 = sphi 0, %s29
      %s33 = sphi 0, %s30
      %s49 = sphi 0, %s51
      %s52 = sphi 0, %s49
      %s53 = sphi 0, %s52
      %s69 = sphi 0, %s53
      %s75 = sphi 0, %s77
      %s78 = sphi 0, %s75
      %s79 = sphi 0, %s78
      %s95 = sphi 0, %s79
      %s103 = sphi 0, %s105
      %s106 = sphi 0, %s103
      %s107 = sphi 0, %s106
      %s123 = sphi 0, %s107
      %s129 = sphi 0, %s131
      %s132 = sphi 0, %s129
      %s133 = sphi 0, %s132
      %s149 = sphi 0, %s133
    $region4: #{tpu_custom_call.1} parent=1 // loop_header_branch
      %21 = sbr.rel (%p19) target = $region8
    $region5: #{tpu_custom_call.1} parent=1 // loop_body
      %s23 = ssub.s32 %s18, 1
      %s24 = ssub.s32 %s18, 2
      %s34 = sadd.s32 1, %s27
      %p35 = scmp.ge.s32.totalorder %s34, 1
      %s36 = scalar_select %p35, 0, %s34
      %s37 = sadd.s32 1, %s26
      %s38 = scalar_select %p35, %s37, %s26
      %p39 = scmp.ge.s32.totalorder %s38, 1
      %s40 = scalar_select %p39, 0, %s38
      %s41 = sadd.s32 1, %s25
      %s42 = scalar_select %p39, %s41, %s25
      %p43 = scmp.ge.s32.totalorder %s42, 4
      %s44 = scalar_select %p43, 0, %s42
      %s45 = ssub.s32 %s25, %s44
      %s46 = ssub.s32 %s26, %s40
      %s47 = sor.u32 %s45, %s46
      %p48 = scmp.eq.s32.totalorder %s47, 0
      %s50 = sadd.s32 %s49, 1
      %s51 = scalar_select %p48, %s49, %s50
      %p54 = pneg %p48
      %p55 = scmp.eq.s32.totalorder %s18, 3
      %p56 = por %p54, %p55
      %p57 = scmp.ne.s32.totalorder %s49, %s52
      %p58 = scmp.eq.s32.totalorder %s18, 0
      %p59 = por %p57, %p58
      %p60 = scmp.ne.s32.totalorder %s49, %s52
      %p61 = scmp.eq.s32.totalorder %s23, 3
      %p62 = por %p60, %p61
      %p63 = scmp.ne.s32.totalorder %s52, %s53
      %p64 = scmp.eq.s32.totalorder %s23, 0
      %p65 = por %p63, %p64
      %p66 = scmp.ne.s32.totalorder %s52, %s53
      %p67 = scmp.eq.s32.totalorder %s24, 3
      %p68 = por %p66, %p67
      %p70 = scmp.ne.s32.totalorder %s53, %s69
      %p71 = scmp.eq.s32.totalorder %s24, 0
      %p72 = por %p70, %p71
      %s73 = ssub.s32 %s25, %s44
      %p74 = scmp.eq.s32.totalorder %s73, 0
      %s76 = sadd.s32 %s75, 1
      %s77 = scalar_select %p74, %s75, %s76
      %p80 = pneg %p74
      %p81 = scmp.eq.s32.totalorder %s18, 3
      %p82 = por %p80, %p81
      %p83 = scmp.ne.s32.totalorder %s75, %s78
      %p84 = scmp.eq.s32.totalorder %s18, 0
      %p85 = por %p83, %p84
      %p86 = scmp.ne.s32.totalorder %s75, %s78
      %p87 = scmp.eq.s32.totalorder %s23, 3
      %p88 = por %p86, %p87
      %p89 = scmp.ne.s32.totalorder %s78, %s79
      %p90 = scmp.eq.s32.totalorder %s23, 0
      %p91 = por %p89, %p90
      %p92 = scmp.ne.s32.totalorder %s78, %s79
      %p93 = scmp.eq.s32.totalorder %s24, 3
      %p94 = por %p92, %p93
      %p96 = scmp.ne.s32.totalorder %s79, %s95
      %p97 = scmp.eq.s32.totalorder %s24, 0
      %p98 = por %p96, %p97
      %s99 = ssub.s32 %s25, %s44
      %s100 = ssub.s32 %s27, %s36
      %s101 = sor.u32 %s99, %s100
      %p102 = scmp.eq.s32.totalorder %s101, 0
      %s104 = sadd.s32 %s103, 1
      %s105 = scalar_select %p102, %s103, %s104
      %p108 = pneg %p102
      %p109 = scmp.eq.s32.totalorder %s18, 3
      %p110 = por %p108, %p109
      %p111 = scmp.ne.s32.totalorder %s103, %s106
      %p112 = scmp.eq.s32.totalorder %s18, 0
      %p113 = por %p111, %p112
      %p114 = scmp.ne.s32.totalorder %s103, %s106
      %p115 = scmp.eq.s32.totalorder %s23, 3
      %p116 = por %p114, %p115
      %p117 = scmp.ne.s32.totalorder %s106, %s107
      %p118 = scmp.eq.s32.totalorder %s23, 0
      %p119 = por %p117, %p118
      %p120 = scmp.ne.s32.totalorder %s106, %s107
      %p121 = scmp.eq.s32.totalorder %s24, 3
      %p122 = por %p120, %p121
      %p124 = scmp.ne.s32.totalorder %s107, %s123
      %p125 = scmp.eq.s32.totalorder %s24, 0
      %p126 = por %p124, %p125
      %s127 = ssub.s32 %s25, %s44
      %p128 = scmp.eq.s32.totalorder %s127, 0
      %s130 = sadd.s32 %s129, 1
      %s131 = scalar_select %p128, %s129, %s130
      %p134 = pneg %p128
      %p135 = scmp.eq.s32.totalorder %s18, 3
      %p136 = por %p134, %p135
      %p137 = scmp.ne.s32.totalorder %s129, %s132
      %p138 = scmp.eq.s32.totalorder %s18, 0
      %p139 = por %p137, %p138
      %p140 = scmp.ne.s32.totalorder %s129, %s132
      %p141 = scmp.eq.s32.totalorder %s23, 3
      %p142 = por %p140, %p141
      %p143 = scmp.ne.s32.totalorder %s132, %s133
      %p144 = scmp.eq.s32.totalorder %s23, 0
      %p145 = por %p143, %p144
      %p146 = scmp.ne.s32.totalorder %s132, %s133
      %p147 = scmp.eq.s32.totalorder %s24, 3
      %p148 = por %p146, %p147
      %p150 = scmp.ne.s32.totalorder %s133, %s149
      %p151 = scmp.eq.s32.totalorder %s24, 0
      %p152 = por %p150, %p151
      %p153 = scmp.le.s32.totalorder 1, %s18
      %p154 = scmp.lt.s32.totalorder %s18, 5
      %p155 = pnand %p153, %p154
      %p156 = pneg %p155
      // Predicated region
      $region9: #{tpu_custom_call.1} parent=5 // pred_check
        _
      $region10: #{tpu_custom_call.1} parent=5 // pred_check_branch
        %158 = sbr.rel (%p155) target = $region12
      $region11: #{tpu_custom_call.1} parent=5 // pred_region
        %s159 = ssub.s32 %s18, 1
      $region12: #{tpu_custom_call.1} parent=5 // pred_fallthru
        _
      %p160 = scmp.lt.s32.totalorder %s18, 4
      // Predicated region
      $region13: #{tpu_custom_call.1} parent=5 // pred_check
        %p161 = pneg %p160
      $region14: #{tpu_custom_call.1} parent=5 // pred_check_branch
        %163 = sbr.rel (%p161) target = $region16
      $region15: #{tpu_custom_call.1} parent=5 // pred_region
        // Predicated region
        $region17: #{tpu_custom_call.1} parent=15 // pred_check
          %p164 = pneg %p59
        $region18: #{tpu_custom_call.1} parent=15 // pred_check_branch
          %166 = sbr.rel (%p164) target = $region20
        $region19: #{tpu_custom_call.1} parent=15 // pred_region
          %s167 = sand.u32 %s49, 1
          %s168 = scalar_lea.sflag [#allocation3], %s167
          %s169 = sand.u32 %s49, 1
          %s170 = smul.addr %s169, 8
          %s171 = scalar_lea.vmem [#allocation2], %s170
          %173 = vsyncadd %s168, 0
          %s174 = sadd.s32 %s26, %s25
          %s175 = smul.addr %s174, 8
          %s176 = scalar_lea.hbm %s0, %s175
          %s178 = sshll.u32 %s176, 4
          %s179 = int_to_ptr.hbm [resolvable:$true] %s178
          %s180 = sshll.u32 %s171, 4
          %s181 = int_to_ptr.vmem [resolvable:$true] %s180
          %183 = dma.hbm_to_vmem [thread:$0]  %s179, 128, %s181, %s168
        $region20: #{tpu_custom_call.1} parent=15 // pred_fallthru
          _
        // Predicated region
        $region21: #{tpu_custom_call.1} parent=15 // pred_check
          %p184 = pneg %p85
        $region22: #{tpu_custom_call.1} parent=15 // pred_check_branch
          %186 = sbr.rel (%p184) target = $region24
        $region23: #{tpu_custom_call.1} parent=15 // pred_region
          %s187 = sand.u32 %s18, 1
          %s188 = scalar_lea.sflag [#allocation6], %s187
          %s189 = sand.u32 %s75, 1
          %s190 = smul.addr %s189, 128
          %s191 = scalar_lea.vmem [#allocation5], %s190
          %193 = vsyncadd %s188, 0
          %s194 = smul.addr %s25, 16
          %s195 = smul.addr %s194, 8
          %s196 = scalar_lea.hbm %s1, %s195
          %s197 = sshll.u32 %s196, 4
          %s198 = int_to_ptr.hbm [resolvable:$true] %s197
          %s199 = sshll.u32 %s191, 4
          %s200 = int_to_ptr.vmem [resolvable:$true] %s199
          %205 = dma.hbm_to_vmem [thread:$0]  %s198, 2048, %s200, %s188, 128, 128, 8
        $region24: #{tpu_custom_call.1} parent=15 // pred_fallthru
          _
        // Predicated region
        $region25: #{tpu_custom_call.1} parent=15 // pred_check
          %p206 = pneg %p113
        $region26: #{tpu_custom_call.1} parent=15 // pred_check_branch
          %208 = sbr.rel (%p206) target = $region28
        $region27: #{tpu_custom_call.1} parent=15 // pred_region
          %s209 = sand.u32 %s18, 1
          %s210 = scalar_lea.sflag [#allocation6], %s209
          %s211 = sand.u32 %s103, 1
          %s212 = smul.addr %s211, 128
          %s213 = scalar_lea.vmem [#allocation7], %s212
          %215 = vsyncadd %s210, 0
          %s216 = smul.addr %s25, 16
          %s217 = sadd.s32 %s27, %s216
          %s218 = smul.addr %s217, 8
          %s219 = scalar_lea.hbm %s2, %s218
          %s220 = sshll.u32 %s219, 4
          %s221 = int_to_ptr.hbm [resolvable:$true] %s220
          %s222 = sshll.u32 %s213, 4
          %s223 = int_to_ptr.vmem [resolvable:$true] %s222
          %228 = dma.hbm_to_vmem [thread:$0]  %s221, 2048, %s223, %s210, 128, 128, 8
        $region28: #{tpu_custom_call.1} parent=15 // pred_fallthru
          _
      $region16: #{tpu_custom_call.1} parent=5 // pred_fallthru
        _
      %p229 = scmp.le.s32.totalorder 1, %s18
      %p230 = scmp.lt.s32.totalorder %s18, 5
      %p231 = pnand %p229, %p230
      %p232 = pneg %p231
      // Predicated region
      $region29: #{tpu_custom_call.1} parent=5 // pred_check
        _
      $region30: #{tpu_custom_call.1} parent=5 // pred_check_branch
        %234 = sbr.rel (%p231) target = $region32
      $region31: #{tpu_custom_call.1} parent=5 // pred_region
        %s235 = ssub.s32 %s18, 1
        %s236 = sand.u32 %s52, 1
        %s237 = scalar_lea.sflag [#allocation3], %s236
        %s238 = sand.u32 %s52, 1
        %s239 = smul.addr %s238, 8
        %s240 = scalar_lea.vmem [#allocation2], %s239
        // Predicated region
        $region33: #{tpu_custom_call.1} parent=31 // pred_check
          %p241 = pneg %p65
        $region34: #{tpu_custom_call.1} parent=31 // pred_check_branch
          %243 = sbr.rel (%p241) target = $region36
        $region35: #{tpu_custom_call.1} parent=31 // pred_region
          %245 = dma.done %s237, 128
        $region36: #{tpu_custom_call.1} parent=31 // pred_fallthru
          _
        %s246 = sand.u32 %s23, 1
        %s247 = scalar_lea.sflag [#allocation6], %s246
        %s248 = sand.u32 %s78, 1
        %s249 = smul.addr %s248, 128
        %s250 = scalar_lea.vmem [#allocation5], %s249
        // Predicated region
        $region37: #{tpu_custom_call.1} parent=31 // pred_check
          %p251 = pneg %p91
        $region38: #{tpu_custom_call.1} parent=31 // pred_check_branch
          %253 = sbr.rel (%p251) target = $region40
        $region39: #{tpu_custom_call.1} parent=31 // pred_region
          %255 = dma.done %s247, 2048
        $region40: #{tpu_custom_call.1} parent=31 // pred_fallthru
          _
        %s256 = sand.u32 %s23, 1
        %s257 = scalar_lea.sflag [#allocation6], %s256
        %s258 = sand.u32 %s106, 1
        %s259 = smul.addr %s258, 128
        %s260 = scalar_lea.vmem [#allocation7], %s259
        // Predicated region
        $region41: #{tpu_custom_call.1} parent=31 // pred_check
          %p261 = pneg %p119
        $region42: #{tpu_custom_call.1} parent=31 // pred_check_branch
          %263 = sbr.rel (%p261) target = $region44
        $region43: #{tpu_custom_call.1} parent=31 // pred_region
          %265 = dma.done %s257, 2048
        $region44: #{tpu_custom_call.1} parent=31 // pred_fallthru
          _
        %s266 = sand.u32 %s52, 1
        %s267 = scalar_lea.sflag [#allocation3], %s266
        %s268 = sand.u32 %s52, 1
        %s269 = smul.addr %s268, 8
        %s270 = scalar_lea.vmem [#allocation2], %s269
        %p271 = pneg %p65
        %p272 = pneg %p62
        %s273 = sand.u32 %s23, 1
        %s274 = scalar_lea.sflag [#allocation6], %s273
        %s275 = sand.u32 %s78, 1
        %s276 = smul.addr %s275, 128
        %s277 = scalar_lea.vmem [#allocation5], %s276
        %p278 = pneg %p91
        %p279 = pneg %p88
        %s280 = sand.u32 %s23, 1
        %s281 = scalar_lea.sflag [#allocation6], %s280
        %s282 = sand.u32 %s106, 1
        %s283 = smul.addr %s282, 128
        %s284 = scalar_lea.vmem [#allocation7], %s283
        %p285 = pneg %p119
        %p286 = pneg %p116
        %p287 = pneg %p145
        %p288 = pneg %p142
        %s289 = sand.u32 %s132, 1
        %s290 = scalar_lea.sflag [#allocation4], %s289
        %s291 = sand.u32 %s132, 1
        %s292 = smul.addr %s291, 8
        %s293 = scalar_lea.vmem [#allocation8], %s292
        %v294 = vld [vmem:[%s240] sm:$0xff]
        %v295 = vld [vmem:[%s250] sm:$0xff]
        %v296 = vld [vmem:[%s250 + $0x8] sm:$0xff]
        %v297 = vld [vmem:[%s250 + $0x10] sm:$0xff]
        %v298 = vld [vmem:[%s250 + $0x18] sm:$0xff]
        %v299 = vld [vmem:[%s250 + $0x20] sm:$0xff]
        %v300 = vld [vmem:[%s250 + $0x28] sm:$0xff]
        %v301 = vld [vmem:[%s250 + $0x30] sm:$0xff]
        %v302 = vld [vmem:[%s250 + $0x38] sm:$0xff]
        %v303 = vld [vmem:[%s250 + $0x40] sm:$0xff]
        %v304 = vld [vmem:[%s250 + $0x48] sm:$0xff]
        %v305 = vld [vmem:[%s250 + $0x50] sm:$0xff]
        %v306 = vld [vmem:[%s250 + $0x58] sm:$0xff]
        %v307 = vld [vmem:[%s250 + $0x60] sm:$0xff]
        %v308 = vld [vmem:[%s250 + $0x68] sm:$0xff]
        %v309 = vld [vmem:[%s250 + $0x70] sm:$0xff]
        %v310 = vld [vmem:[%s250 + $0x78] sm:$0xff]
        %v311 = vld [vmem:[%s260] sm:$0xff]
        %v312 = vld [vmem:[%s260 + $0x8] sm:$0xff]
        %v313 = vld [vmem:[%s260 + $0x10] sm:$0xff]
        %v314 = vld [vmem:[%s260 + $0x18] sm:$0xff]
        %v315 = vld [vmem:[%s260 + $0x20] sm:$0xff]
        %v316 = vld [vmem:[%s260 + $0x28] sm:$0xff]
        %v317 = vld [vmem:[%s260 + $0x30] sm:$0xff]
        %v318 = vld [vmem:[%s260 + $0x38] sm:$0xff]
        %v319 = vld [vmem:[%s260 + $0x40] sm:$0xff]
        %v320 = vld [vmem:[%s260 + $0x48] sm:$0xff]
        %v321 = vld [vmem:[%s260 + $0x50] sm:$0xff]
        %v322 = vld [vmem:[%s260 + $0x58] sm:$0xff]
        %v323 = vld [vmem:[%s260 + $0x60] sm:$0xff]
        %v324 = vld [vmem:[%s260 + $0x68] sm:$0xff]
        %v325 = vld [vmem:[%s260 + $0x70] sm:$0xff]
        %v326 = vld [vmem:[%s260 + $0x78] sm:$0xff]
        %327 = vmatpush.msra.mxu0 %v310
        %328 = vmatpush.msra.mxu0 %v309
        %329 = vmatpush.msra.mxu0 %v308
        %330 = vmatpush.msra.mxu0 %v307
        %331 = vmatpush.msra.mxu0 %v306
        %332 = vmatpush.msra.mxu0 %v305
        %333 = vmatpush.msra.mxu0 %v304
        %334 = vmatpush.msra.mxu0 %v303
        %335 = vmatpush.msra.mxu0 %v302
        %336 = vmatpush.msra.mxu0 %v301
        %337 = vmatpush.msra.mxu0 %v300
        %338 = vmatpush.msra.mxu0 %v299
        %339 = vmatpush.msra.mxu0 %v298
        %340 = vmatpush.msra.mxu0 %v297
        %341 = vmatpush.msra.mxu0 %v296
        %342 = vmatpush.msra.mxu0 %v295
        %343 = vmatmul.f32.gmra.mxu0 %v294
        %v344 = vpop.f32.mrf.mxu0
        %v345 = vadd.f32 0.0, %v344
        %346 = vdwg.mxu0
        %v347 = vmax.f32 %v345, 0.0005
        %v348 = vmin.f32 %v347, 0.9995
        %v349 = vlaneseq
        %v350 = vand.u32 %v349, 127
        %vm351 = vcmp.lt.s32.totalorder %v350, 8
        %v352 = vsel %vm351, %v348, 0.0001
        %353 = vmatpush.msra.mxu0 %v326
        %354 = vmatpush.msra.mxu0 %v325
        %355 = vmatpush.msra.mxu0 %v324
        %356 = vmatpush.msra.mxu0 %v323
        %357 = vmatpush.msra.mxu0 %v322
        %358 = vmatpush.msra.mxu0 %v321
        %359 = vmatpush.msra.mxu0 %v320
        %360 = vmatpush.msra.mxu0 %v319
        %361 = vmatpush.msra.mxu0 %v318
        %362 = vmatpush.msra.mxu0 %v317
        %363 = vmatpush.msra.mxu0 %v316
        %364 = vmatpush.msra.mxu0 %v315
        %365 = vmatpush.msra.mxu0 %v314
        %366 = vmatpush.msra.mxu0 %v313
        %367 = vmatpush.msra.mxu0 %v312
        %368 = vmatpush.msra.mxu0 %v311
        %369 = vmatmul.f32.gmra.mxu0 %v294
        %v370 = vpop.f32.mrf.mxu0
        %v371 = vadd.f32 0.0, %v370
        %372 = vdwg.mxu0
        %v373 = vmax.f32 %v371, 0.0005
        %v374 = vmin.f32 %v373, 0.9995
        %v376 = vrot.slane %v352, 1
        %v377 = vrot.slane %v352, 2
        %v378 = vrot.slane %v352, 3
        %v379 = vrot.slane %v352, 4
        %v380 = vrot.slane %v352, 5
        %v381 = vrot.slane %v352, 6
        %v382 = vrot.slane %v352, 7
        %v383 = vperm.slane %v374, 0
        %v384 = vlaneseq
        %v385 = vshrl.u32 %v384, 7
        %387 = vset.pattern.permute.xlu0 %v385
        %388 = vperm.xlu0 %387, %v383
        %v389 = vpop.permute.xlu0 %388
        %v390 = vlaneseq
        %v391 = vshrl.u32 %v390, 7
        %v392 = vadd.s32 %v391, 8
        %393 = vset.pattern.permute.xlu0 %v392
        %394 = vperm.xlu0 %393, %v383
        %v395 = vpop.permute.xlu0 %394
        %v396 = vlaneseq
        %v397 = vshrl.u32 %v396, 7
        %v398 = vadd.s32 %v397, 16
        %399 = vset.pattern.permute.xlu0 %v398
        %400 = vperm.xlu0 %399, %v383
        %v401 = vpop.permute.xlu0 %400
        %v402 = vlaneseq
        %v403 = vshrl.u32 %v402, 7
        %v404 = vadd.s32 %v403, 24
        %405 = vset.pattern.permute.xlu0 %v404
        %406 = vperm.xlu0 %405, %v383
        %v407 = vpop.permute.xlu0 %406
        %v408 = vlaneseq
        %v409 = vshrl.u32 %v408, 7
        %v410 = vadd.s32 %v409, 32
        %411 = vset.pattern.permute.xlu0 %v410
        %412 = vperm.xlu0 %411, %v383
        %v413 = vpop.permute.xlu0 %412
        %v414 = vlaneseq
        %v415 = vshrl.u32 %v414, 7
        %v416 = vadd.s32 %v415, 40
        %417 = vset.pattern.permute.xlu0 %v416
        %418 = vperm.xlu0 %417, %v383
        %v419 = vpop.permute.xlu0 %418
        %v420 = vlaneseq
        %v421 = vshrl.u32 %v420, 7
        %v422 = vadd.s32 %v421, 48
        %423 = vset.pattern.permute.xlu0 %v422
        %424 = vperm.xlu0 %423, %v383
        %v425 = vpop.permute.xlu0 %424
        %v426 = vlaneseq
        %v427 = vshrl.u32 %v426, 7
        %v428 = vadd.s32 %v427, 56
        %429 = vset.pattern.permute.xlu0 %v428
        %430 = vperm.xlu0 %429, %v383
        %v431 = vpop.permute.xlu0 %430
        %v432 = vlaneseq
        %v433 = vshrl.u32 %v432, 7
        %v434 = vadd.s32 %v433, 64
        %435 = vset.pattern.permute.xlu0 %v434
        %436 = vperm.xlu0 %435, %v383
        %v437 = vpop.permute.xlu0 %436
        %v438 = vlaneseq
        %v439 = vshrl.u32 %v438, 7
        %v440 = vadd.s32 %v439, 72
        %441 = vset.pattern.permute.xlu0 %v440
        %442 = vperm.xlu0 %441, %v383
        %v443 = vpop.permute.xlu0 %442
        %v444 = vlaneseq
        %v445 = vshrl.u32 %v444, 7
        %v446 = vadd.s32 %v445, 80
        %447 = vset.pattern.permute.xlu0 %v446
        %448 = vperm.xlu0 %447, %v383
        %v449 = vpop.permute.xlu0 %448
        %v450 = vlaneseq
        %v451 = vshrl.u32 %v450, 7
        %v452 = vadd.s32 %v451, 88
        %453 = vset.pattern.permute.xlu0 %v452
        %454 = vperm.xlu0 %453, %v383
        %v455 = vpop.permute.xlu0 %454
        %v456 = vlaneseq
        %v457 = vshrl.u32 %v456, 7
        %v458 = vadd.s32 %v457, 96
        %459 = vset.pattern.permute.xlu0 %v458
        %460 = vperm.xlu0 %459, %v383
        %v461 = vpop.permute.xlu0 %460
        %v462 = vlaneseq
        %v463 = vshrl.u32 %v462, 7
        %v464 = vadd.s32 %v463, 104
        %465 = vset.pattern.permute.xlu0 %v464
        %466 = vperm.xlu0 %465, %v383
        %v467 = vpop.permute.xlu0 %466
        %v468 = vlaneseq
        %v469 = vshrl.u32 %v468, 7
        %v470 = vadd.s32 %v469, 112
        %471 = vset.pattern.permute.xlu0 %v470
        %472 = vperm.xlu0 %471, %v383
        %v473 = vpop.permute.xlu0 %472
        %v474 = vlaneseq
        %v475 = vshrl.u32 %v474, 7
        %v476 = vadd.s32 %v475, 120
        %477 = vset.pattern.permute.xlu0 %v476
        %478 = vperm.xlu0 %477, %v383
        %v479 = vpop.permute.xlu0 %478
        %v480 = vperm.slane %v374, 1
        %v481 = vlaneseq
        %v482 = vshrl.u32 %v481, 7
        %484 = vset.pattern.permute.xlu0 %v482
        %485 = vperm.xlu0 %484, %v480
        %v486 = vpop.permute.xlu0 %485
        %v487 = vlaneseq
        %v488 = vshrl.u32 %v487, 7
        %v489 = vadd.s32 %v488, 8
        %490 = vset.pattern.permute.xlu0 %v489
        %491 = vperm.xlu0 %490, %v480
        %v492 = vpop.permute.xlu0 %491
        %v493 = vlaneseq
        %v494 = vshrl.u32 %v493, 7
        %v495 = vadd.s32 %v494, 16
        %496 = vset.pattern.permute.xlu0 %v495
        %497 = vperm.xlu0 %496, %v480
        %v498 = vpop.permute.xlu0 %497
        %v499 = vlaneseq
        %v500 = vshrl.u32 %v499, 7
        %v501 = vadd.s32 %v500, 24
        %502 = vset.pattern.permute.xlu0 %v501
        %503 = vperm.xlu0 %502, %v480
        %v504 = vpop.permute.xlu0 %503
        %v505 = vlaneseq
        %v506 = vshrl.u32 %v505, 7
        %v507 = vadd.s32 %v506, 32
        %508 = vset.pattern.permute.xlu0 %v507
        %509 = vperm.xlu0 %508, %v480
        %v510 = vpop.permute.xlu0 %509
        %v511 = vlaneseq
        %v512 = vshrl.u32 %v511, 7
        %v513 = vadd.s32 %v512, 40
        %514 = vset.pattern.permute.xlu0 %v513
        %515 = vperm.xlu0 %514, %v480
        %v516 = vpop.permute.xlu0 %515
        %v517 = vlaneseq
        %v518 = vshrl.u32 %v517, 7
        %v519 = vadd.s32 %v518, 48
        %520 = vset.pattern.permute.xlu0 %v519
        %521 = vperm.xlu0 %520, %v480
        %v522 = vpop.permute.xlu0 %521
        %v523 = vlaneseq
        %v524 = vshrl.u32 %v523, 7
        %v525 = vadd.s32 %v524, 56
        %526 = vset.pattern.permute.xlu0 %v525
        %527 = vperm.xlu0 %526, %v480
        %v528 = vpop.permute.xlu0 %527
        %v529 = vlaneseq
        %v530 = vshrl.u32 %v529, 7
        %v531 = vadd.s32 %v530, 64
        %532 = vset.pattern.permute.xlu0 %v531
        %533 = vperm.xlu0 %532, %v480
        %v534 = vpop.permute.xlu0 %533
        %v535 = vlaneseq
        %v536 = vshrl.u32 %v535, 7
        %v537 = vadd.s32 %v536, 72
        %538 = vset.pattern.permute.xlu0 %v537
        %539 = vperm.xlu0 %538, %v480
        %v540 = vpop.permute.xlu0 %539
        %v541 = vlaneseq
        %v542 = vshrl.u32 %v541, 7
        %v543 = vadd.s32 %v542, 80
        %544 = vset.pattern.permute.xlu0 %v543
        %545 = vperm.xlu0 %544, %v480
        %v546 = vpop.permute.xlu0 %545
        %v547 = vlaneseq
        %v548 = vshrl.u32 %v547, 7
        %v549 = vadd.s32 %v548, 88
        %550 = vset.pattern.permute.xlu0 %v549
        %551 = vperm.xlu0 %550, %v480
        %v552 = vpop.permute.xlu0 %551
        %v553 = vlaneseq
        %v554 = vshrl.u32 %v553, 7
        %v555 = vadd.s32 %v554, 96
        %556 = vset.pattern.permute.xlu0 %v555
        %557 = vperm.xlu0 %556, %v480
        %v558 = vpop.permute.xlu0 %557
        %v559 = vlaneseq
        %v560 = vshrl.u32 %v559, 7
        %v561 = vadd.s32 %v560, 104
        %562 = vset.pattern.permute.xlu0 %v561
        %563 = vperm.xlu0 %562, %v480
        %v564 = vpop.permute.xlu0 %563
        %v565 = vlaneseq
        %v566 = vshrl.u32 %v565, 7
        %v567 = vadd.s32 %v566, 112
        %568 = vset.pattern.permute.xlu0 %v567
        %569 = vperm.xlu0 %568, %v480
        %v570 = vpop.permute.xlu0 %569
        %v571 = vlaneseq
        %v572 = vshrl.u32 %v571, 7
        %v573 = vadd.s32 %v572, 120
        %574 = vset.pattern.permute.xlu0 %v573
        %575 = vperm.xlu0 %574, %v480
        %v576 = vpop.permute.xlu0 %575
        %v577 = vperm.slane %v374, 2
        %v578 = vlaneseq
        %v579 = vshrl.u32 %v578, 7
        %581 = vset.pattern.permute.xlu0 %v579
        %582 = vperm.xlu0 %581, %v577
        %v583 = vpop.permute.xlu0 %582
        %v584 = vlaneseq
        %v585 = vshrl.u32 %v584, 7
        %v586 = vadd.s32 %v585, 8
        %587 = vset.pattern.permute.xlu0 %v586
        %588 = vperm.xlu0 %587, %v577
        %v589 = vpop.permute.xlu0 %588
        %v590 = vlaneseq
        %v591 = vshrl.u32 %v590, 7
        %v592 = vadd.s32 %v591, 16
        %593 = vset.pattern.permute.xlu0 %v592
        %594 = vperm.xlu0 %593, %v577
        %v595 = vpop.permute.xlu0 %594
        %v596 = vlaneseq
        %v597 = vshrl.u32 %v596, 7
        %v598 = vadd.s32 %v597, 24
        %599 = vset.pattern.permute.xlu0 %v598
        %600 = vperm.xlu0 %599, %v577
        %v601 = vpop.permute.xlu0 %600
        %v602 = vlaneseq
        %v603 = vshrl.u32 %v602, 7
        %v604 = vadd.s32 %v603, 32
        %605 = vset.pattern.permute.xlu0 %v604
        %606 = vperm.xlu0 %605, %v577
        %v607 = vpop.permute.xlu0 %606
        %v608 = vlaneseq
        %v609 = vshrl.u32 %v608, 7
        %v610 = vadd.s32 %v609, 40
        %611 = vset.pattern.permute.xlu0 %v610
        %612 = vperm.xlu0 %611, %v577
        %v613 = vpop.permute.xlu0 %612
        %v614 = vlaneseq
        %v615 = vshrl.u32 %v614, 7
        %v616 = vadd.s32 %v615, 48
        %617 = vset.pattern.permute.xlu0 %v616
        %618 = vperm.xlu0 %617, %v577
        %v619 = vpop.permute.xlu0 %618
        %v620 = vlaneseq
        %v621 = vshrl.u32 %v620, 7
        %v622 = vadd.s32 %v621, 56
        %623 = vset.pattern.permute.xlu0 %v622
        %624 = vperm.xlu0 %623, %v577
        %v625 = vpop.permute.xlu0 %624
        %v626 = vlaneseq
        %v627 = vshrl.u32 %v626, 7
        %v628 = vadd.s32 %v627, 64
        %629 = vset.pattern.permute.xlu0 %v628
        %630 = vperm.xlu0 %629, %v577
        %v631 = vpop.permute.xlu0 %630
        %v632 = vlaneseq
        %v633 = vshrl.u32 %v632, 7
        %v634 = vadd.s32 %v633, 72
        %635 = vset.pattern.permute.xlu0 %v634
        %636 = vperm.xlu0 %635, %v577
        %v637 = vpop.permute.xlu0 %636
        %v638 = vlaneseq
        %v639 = vshrl.u32 %v638, 7
        %v640 = vadd.s32 %v639, 80
        %641 = vset.pattern.permute.xlu0 %v640
        %642 = vperm.xlu0 %641, %v577
        %v643 = vpop.permute.xlu0 %642
        %v644 = vlaneseq
        %v645 = vshrl.u32 %v644, 7
        %v646 = vadd.s32 %v645, 88
        %647 = vset.pattern.permute.xlu0 %v646
        %648 = vperm.xlu0 %647, %v577
        %v649 = vpop.permute.xlu0 %648
        %v650 = vlaneseq
        %v651 = vshrl.u32 %v650, 7
        %v652 = vadd.s32 %v651, 96
        %653 = vset.pattern.permute.xlu0 %v652
        %654 = vperm.xlu0 %653, %v577
        %v655 = vpop.permute.xlu0 %654
        %v656 = vlaneseq
        %v657 = vshrl.u32 %v656, 7
        %v658 = vadd.s32 %v657, 104
        %659 = vset.pattern.permute.xlu0 %v658
        %660 = vperm.xlu0 %659, %v577
        %v661 = vpop.permute.xlu0 %660
        %v662 = vlaneseq
        %v663 = vshrl.u32 %v662, 7
        %v664 = vadd.s32 %v663, 112
        %665 = vset.pattern.permute.xlu0 %v664
        %666 = vperm.xlu0 %665, %v577
        %v667 = vpop.permute.xlu0 %666
        %v668 = vlaneseq
        %v669 = vshrl.u32 %v668, 7
        %v670 = vadd.s32 %v669, 120
        %671 = vset.pattern.permute.xlu0 %v670
        %672 = vperm.xlu0 %671, %v577
        %v673 = vpop.permute.xlu0 %672
        %v674 = vperm.slane %v374, 3
        %v675 = vlaneseq
        %v676 = vshrl.u32 %v675, 7
        %678 = vset.pattern.permute.xlu0 %v676
        %679 = vperm.xlu0 %678, %v674
        %v680 = vpop.permute.xlu0 %679
        %v681 = vlaneseq
        %v682 = vshrl.u32 %v681, 7
        %v683 = vadd.s32 %v682, 8
        %684 = vset.pattern.permute.xlu0 %v683
        %685 = vperm.xlu0 %684, %v674
        %v686 = vpop.permute.xlu0 %685
        %v687 = vlaneseq
        %v688 = vshrl.u32 %v687, 7
        %v689 = vadd.s32 %v688, 16
        %690 = vset.pattern.permute.xlu0 %v689
        %691 = vperm.xlu0 %690, %v674
        %v692 = vpop.permute.xlu0 %691
        %v693 = vlaneseq
        %v694 = vshrl.u32 %v693, 7
        %v695 = vadd.s32 %v694, 24
        %696 = vset.pattern.permute.xlu0 %v695
        %697 = vperm.xlu0 %696, %v674
        %v698 = vpop.permute.xlu0 %697
        %v699 = vlaneseq
        %v700 = vshrl.u32 %v699, 7
        %v701 = vadd.s32 %v700, 32
        %702 = vset.pattern.permute.xlu0 %v701
        %703 = vperm.xlu0 %702, %v674
        %v704 = vpop.permute.xlu0 %703
        %v705 = vlaneseq
        %v706 = vshrl.u32 %v705, 7
        %v707 = vadd.s32 %v706, 40
        %708 = vset.pattern.permute.xlu0 %v707
        %709 = vperm.xlu0 %708, %v674
        %v710 = vpop.permute.xlu0 %709
        %v711 = vlaneseq
        %v712 = vshrl.u32 %v711, 7
        %v713 = vadd.s32 %v712, 48
        %714 = vset.pattern.permute.xlu0 %v713
        %715 = vperm.xlu0 %714, %v674
        %v716 = vpop.permute.xlu0 %715
        %v717 = vlaneseq
        %v718 = vshrl.u32 %v717, 7
        %v719 = vadd.s32 %v718, 56
        %720 = vset.pattern.permute.xlu0 %v719
        %721 = vperm.xlu0 %720, %v674
        %v722 = vpop.permute.xlu0 %721
        %v723 = vlaneseq
        %v724 = vshrl.u32 %v723, 7
        %v725 = vadd.s32 %v724, 64
        %726 = vset.pattern.permute.xlu0 %v725
        %727 = vperm.xlu0 %726, %v674
        %v728 = vpop.permute.xlu0 %727
        %v729 = vlaneseq
        %v730 = vshrl.u32 %v729, 7
        %v731 = vadd.s32 %v730, 72
        %732 = vset.pattern.permute.xlu0 %v731
        %733 = vperm.xlu0 %732, %v674
        %v734 = vpop.permute.xlu0 %733
        %v735 = vlaneseq
        %v736 = vshrl.u32 %v735, 7
        %v737 = vadd.s32 %v736, 80
        %738 = vset.pattern.permute.xlu0 %v737
        %739 = vperm.xlu0 %738, %v674
        %v740 = vpop.permute.xlu0 %739
        %v741 = vlaneseq
        %v742 = vshrl.u32 %v741, 7
        %v743 = vadd.s32 %v742, 88
        %744 = vset.pattern.permute.xlu0 %v743
        %745 = vperm.xlu0 %744, %v674
        %v746 = vpop.permute.xlu0 %745
        %v747 = vlaneseq
        %v748 = vshrl.u32 %v747, 7
        %v749 = vadd.s32 %v748, 96
        %750 = vset.pattern.permute.xlu0 %v749
        %751 = vperm.xlu0 %750, %v674
        %v752 = vpop.permute.xlu0 %751
        %v753 = vlaneseq
        %v754 = vshrl.u32 %v753, 7
        %v755 = vadd.s32 %v754, 104
        %756 = vset.pattern.permute.xlu0 %v755
        %757 = vperm.xlu0 %756, %v674
        %v758 = vpop.permute.xlu0 %757
        %v759 = vlaneseq
        %v760 = vshrl.u32 %v759, 7
        %v761 = vadd.s32 %v760, 112
        %762 = vset.pattern.permute.xlu0 %v761
        %763 = vperm.xlu0 %762, %v674
        %v764 = vpop.permute.xlu0 %763
        %v765 = vlaneseq
        %v766 = vshrl.u32 %v765, 7
        %v767 = vadd.s32 %v766, 120
        %768 = vset.pattern.permute.xlu0 %v767
        %769 = vperm.xlu0 %768, %v674
        %v770 = vpop.permute.xlu0 %769
        %v771 = vperm.slane %v374, 4
        %v772 = vlaneseq
        %v773 = vshrl.u32 %v772, 7
        %775 = vset.pattern.permute.xlu0 %v773
        %776 = vperm.xlu0 %775, %v771
        %v777 = vpop.permute.xlu0 %776
        %v778 = vlaneseq
        %v779 = vshrl.u32 %v778, 7
        %v780 = vadd.s32 %v779, 8
        %781 = vset.pattern.permute.xlu0 %v780
        %782 = vperm.xlu0 %781, %v771
        %v783 = vpop.permute.xlu0 %782
        %v784 = vlaneseq
        %v785 = vshrl.u32 %v784, 7
        %v786 = vadd.s32 %v785, 16
        %787 = vset.pattern.permute.xlu0 %v786
        %788 = vperm.xlu0 %787, %v771
        %v789 = vpop.permute.xlu0 %788
        %v790 = vlaneseq
        %v791 = vshrl.u32 %v790, 7
        %v792 = vadd.s32 %v791, 24
        %793 = vset.pattern.permute.xlu0 %v792
        %794 = vperm.xlu0 %793, %v771
        %v795 = vpop.permute.xlu0 %794
        %v796 = vlaneseq
        %v797 = vshrl.u32 %v796, 7
        %v798 = vadd.s32 %v797, 32
        %799 = vset.pattern.permute.xlu0 %v798
        %800 = vperm.xlu0 %799, %v771
        %v801 = vpop.permute.xlu0 %800
        %v802 = vlaneseq
        %v803 = vshrl.u32 %v802, 7
        %v804 = vadd.s32 %v803, 40
        %805 = vset.pattern.permute.xlu0 %v804
        %806 = vperm.xlu0 %805, %v771
        %v807 = vpop.permute.xlu0 %806
        %v808 = vlaneseq
        %v809 = vshrl.u32 %v808, 7
        %v810 = vadd.s32 %v809, 48
        %811 = vset.pattern.permute.xlu0 %v810
        %812 = vperm.xlu0 %811, %v771
        %v813 = vpop.permute.xlu0 %812
        %v814 = vlaneseq
        %v815 = vshrl.u32 %v814, 7
        %v816 = vadd.s32 %v815, 56
        %817 = vset.pattern.permute.xlu0 %v816
        %818 = vperm.xlu0 %817, %v771
        %v819 = vpop.permute.xlu0 %818
        %v820 = vlaneseq
        %v821 = vshrl.u32 %v820, 7
        %v822 = vadd.s32 %v821, 64
        %823 = vset.pattern.permute.xlu0 %v822
        %824 = vperm.xlu0 %823, %v771
        %v825 = vpop.permute.xlu0 %824
        %v826 = vlaneseq
        %v827 = vshrl.u32 %v826, 7
        %v828 = vadd.s32 %v827, 72
        %829 = vset.pattern.permute.xlu0 %v828
        %830 = vperm.xlu0 %829, %v771
        %v831 = vpop.permute.xlu0 %830
        %v832 = vlaneseq
        %v833 = vshrl.u32 %v832, 7
        %v834 = vadd.s32 %v833, 80
        %835 = vset.pattern.permute.xlu0 %v834
        %836 = vperm.xlu0 %835, %v771
        %v837 = vpop.permute.xlu0 %836
        %v838 = vlaneseq
        %v839 = vshrl.u32 %v838, 7
        %v840 = vadd.s32 %v839, 88
        %841 = vset.pattern.permute.xlu0 %v840
        %842 = vperm.xlu0 %841, %v771
        %v843 = vpop.permute.xlu0 %842
        %v844 = vlaneseq
        %v845 = vshrl.u32 %v844, 7
        %v846 = vadd.s32 %v845, 96
        %847 = vset.pattern.permute.xlu0 %v846
        %848 = vperm.xlu0 %847, %v771
        %v849 = vpop.permute.xlu0 %848
        %v850 = vlaneseq
        %v851 = vshrl.u32 %v850, 7
        %v852 = vadd.s32 %v851, 104
        %853 = vset.pattern.permute.xlu0 %v852
        %854 = vperm.xlu0 %853, %v771
        %v855 = vpop.permute.xlu0 %854
        %v856 = vlaneseq
        %v857 = vshrl.u32 %v856, 7
        %v858 = vadd.s32 %v857, 112
        %859 = vset.pattern.permute.xlu0 %v858
        %860 = vperm.xlu0 %859, %v771
        %v861 = vpop.permute.xlu0 %860
        %v862 = vlaneseq
        %v863 = vshrl.u32 %v862, 7
        %v864 = vadd.s32 %v863, 120
        %865 = vset.pattern.permute.xlu0 %v864
        %866 = vperm.xlu0 %865, %v771
        %v867 = vpop.permute.xlu0 %866
        %v868 = vperm.slane %v374, 5
        %v869 = vlaneseq
        %v870 = vshrl.u32 %v869, 7
        %872 = vset.pattern.permute.xlu0 %v870
        %873 = vperm.xlu0 %872, %v868
        %v874 = vpop.permute.xlu0 %873
        %v875 = vlaneseq
        %v876 = vshrl.u32 %v875, 7
        %v877 = vadd.s32 %v876, 8
        %878 = vset.pattern.permute.xlu0 %v877
        %879 = vperm.xlu0 %878, %v868
        %v880 = vpop.permute.xlu0 %879
        %v881 = vlaneseq
        %v882 = vshrl.u32 %v881, 7
        %v883 = vadd.s32 %v882, 16
        %884 = vset.pattern.permute.xlu0 %v883
        %885 = vperm.xlu0 %884, %v868
        %v886 = vpop.permute.xlu0 %885
        %v887 = vlaneseq
        %v888 = vshrl.u32 %v887, 7
        %v889 = vadd.s32 %v888, 24
        %890 = vset.pattern.permute.xlu0 %v889
        %891 = vperm.xlu0 %890, %v868
        %v892 = vpop.permute.xlu0 %891
        %v893 = vlaneseq
        %v894 = vshrl.u32 %v893, 7
        %v895 = vadd.s32 %v894, 32
        %896 = vset.pattern.permute.xlu0 %v895
        %897 = vperm.xlu0 %896, %v868
        %v898 = vpop.permute.xlu0 %897
        %v899 = vlaneseq
        %v900 = vshrl.u32 %v899, 7
        %v901 = vadd.s32 %v900, 40
        %902 = vset.pattern.permute.xlu0 %v901
        %903 = vperm.xlu0 %902, %v868
        %v904 = vpop.permute.xlu0 %903
        %v905 = vlaneseq
        %v906 = vshrl.u32 %v905, 7
        %v907 = vadd.s32 %v906, 48
        %908 = vset.pattern.permute.xlu0 %v907
        %909 = vperm.xlu0 %908, %v868
        %v910 = vpop.permute.xlu0 %909
        %v911 = vlaneseq
        %v912 = vshrl.u32 %v911, 7
        %v913 = vadd.s32 %v912, 56
        %914 = vset.pattern.permute.xlu0 %v913
        %915 = vperm.xlu0 %914, %v868
        %v916 = vpop.permute.xlu0 %915
        %v917 = vlaneseq
        %v918 = vshrl.u32 %v917, 7
        %v919 = vadd.s32 %v918, 64
        %920 = vset.pattern.permute.xlu0 %v919
        %921 = vperm.xlu0 %920, %v868
        %v922 = vpop.permute.xlu0 %921
        %v923 = vlaneseq
        %v924 = vshrl.u32 %v923, 7
        %v925 = vadd.s32 %v924, 72
        %926 = vset.pattern.permute.xlu0 %v925
        %927 = vperm.xlu0 %926, %v868
        %v928 = vpop.permute.xlu0 %927
        %v929 = vlaneseq
        %v930 = vshrl.u32 %v929, 7
        %v931 = vadd.s32 %v930, 80
        %932 = vset.pattern.permute.xlu0 %v931
        %933 = vperm.xlu0 %932, %v868
        %v934 = vpop.permute.xlu0 %933
        %v935 = vlaneseq
        %v936 = vshrl.u32 %v935, 7
        %v937 = vadd.s32 %v936, 88
        %938 = vset.pattern.permute.xlu0 %v937
        %939 = vperm.xlu0 %938, %v868
        %v940 = vpop.permute.xlu0 %939
        %v941 = vlaneseq
        %v942 = vshrl.u32 %v941, 7
        %v943 = vadd.s32 %v942, 96
        %944 = vset.pattern.permute.xlu0 %v943
        %945 = vperm.xlu0 %944, %v868
        %v946 = vpop.permute.xlu0 %945
        %v947 = vlaneseq
        %v948 = vshrl.u32 %v947, 7
        %v949 = vadd.s32 %v948, 104
        %950 = vset.pattern.permute.xlu0 %v949
        %951 = vperm.xlu0 %950, %v868
        %v952 = vpop.permute.xlu0 %951
        %v953 = vlaneseq
        %v954 = vshrl.u32 %v953, 7
        %v955 = vadd.s32 %v954, 112
        %956 = vset.pattern.permute.xlu0 %v955
        %957 = vperm.xlu0 %956, %v868
        %v958 = vpop.permute.xlu0 %957
        %v959 = vlaneseq
        %v960 = vshrl.u32 %v959, 7
        %v961 = vadd.s32 %v960, 120
        %962 = vset.pattern.permute.xlu0 %v961
        %963 = vperm.xlu0 %962, %v868
        %v964 = vpop.permute.xlu0 %963
        %v965 = vperm.slane %v374, 6
        %v966 = vlaneseq
        %v967 = vshrl.u32 %v966, 7
        %969 = vset.pattern.permute.xlu0 %v967
        %970 = vperm.xlu0 %969, %v965
        %v971 = vpop.permute.xlu0 %970
        %v972 = vlaneseq
        %v973 = vshrl.u32 %v972, 7
        %v974 = vadd.s32 %v973, 8
        %975 = vset.pattern.permute.xlu0 %v974
        %976 = vperm.xlu0 %975, %v965
        %v977 = vpop.permute.xlu0 %976
        %v978 = vlaneseq
        %v979 = vshrl.u32 %v978, 7
        %v980 = vadd.s32 %v979, 16
        %981 = vset.pattern.permute.xlu0 %v980
        %982 = vperm.xlu0 %981, %v965
        %v983 = vpop.permute.xlu0 %982
        %v984 = vlaneseq
        %v985 = vshrl.u32 %v984, 7
        %v986 = vadd.s32 %v985, 24
        %987 = vset.pattern.permute.xlu0 %v986
        %988 = vperm.xlu0 %987, %v965
        %v989 = vpop.permute.xlu0 %988
        %v990 = vlaneseq
        %v991 = vshrl.u32 %v990, 7
        %v992 = vadd.s32 %v991, 32
        %993 = vset.pattern.permute.xlu0 %v992
        %994 = vperm.xlu0 %993, %v965
        %v995 = vpop.permute.xlu0 %994
        %v996 = vlaneseq
        %v997 = vshrl.u32 %v996, 7
        %v998 = vadd.s32 %v997, 40
        %999 = vset.pattern.permute.xlu0 %v998
        %1000 = vperm.xlu0 %999, %v965
        %v1001 = vpop.permute.xlu0 %1000
        %v1002 = vlaneseq
        %v1003 = vshrl.u32 %v1002, 7
        %v1004 = vadd.s32 %v1003, 48
        %1005 = vset.pattern.permute.xlu0 %v1004
        %1006 = vperm.xlu0 %1005, %v965
        %v1007 = vpop.permute.xlu0 %1006
        %v1008 = vlaneseq
        %v1009 = vshrl.u32 %v1008, 7
        %v1010 = vadd.s32 %v1009, 56
        %1011 = vset.pattern.permute.xlu0 %v1010
        %1012 = vperm.xlu0 %1011, %v965
        %v1013 = vpop.permute.xlu0 %1012
        %v1014 = vlaneseq
        %v1015 = vshrl.u32 %v1014, 7
        %v1016 = vadd.s32 %v1015, 64
        %1017 = vset.pattern.permute.xlu0 %v1016
        %1018 = vperm.xlu0 %1017, %v965
        %v1019 = vpop.permute.xlu0 %1018
        %v1020 = vlaneseq
        %v1021 = vshrl.u32 %v1020, 7
        %v1022 = vadd.s32 %v1021, 72
        %1023 = vset.pattern.permute.xlu0 %v1022
        %1024 = vperm.xlu0 %1023, %v965
        %v1025 = vpop.permute.xlu0 %1024
        %v1026 = vlaneseq
        %v1027 = vshrl.u32 %v1026, 7
        %v1028 = vadd.s32 %v1027, 80
        %1029 = vset.pattern.permute.xlu0 %v1028
        %1030 = vperm.xlu0 %1029, %v965
        %v1031 = vpop.permute.xlu0 %1030
        %v1032 = vlaneseq
        %v1033 = vshrl.u32 %v1032, 7
        %v1034 = vadd.s32 %v1033, 88
        %1035 = vset.pattern.permute.xlu0 %v1034
        %1036 = vperm.xlu0 %1035, %v965
        %v1037 = vpop.permute.xlu0 %1036
        %v1038 = vlaneseq
        %v1039 = vshrl.u32 %v1038, 7
        %v1040 = vadd.s32 %v1039, 96
        %1041 = vset.pattern.permute.xlu0 %v1040
        %1042 = vperm.xlu0 %1041, %v965
        %v1043 = vpop.permute.xlu0 %1042
        %v1044 = vlaneseq
        %v1045 = vshrl.u32 %v1044, 7
        %v1046 = vadd.s32 %v1045, 104
        %1047 = vset.pattern.permute.xlu0 %v1046
        %1048 = vperm.xlu0 %1047, %v965
        %v1049 = vpop.permute.xlu0 %1048
        %v1050 = vlaneseq
        %v1051 = vshrl.u32 %v1050, 7
        %v1052 = vadd.s32 %v1051, 112
        %1053 = vset.pattern.permute.xlu0 %v1052
        %1054 = vperm.xlu0 %1053, %v965
        %v1055 = vpop.permute.xlu0 %1054
        %v1056 = vlaneseq
        %v1057 = vshrl.u32 %v1056, 7
        %v1058 = vadd.s32 %v1057, 120
        %1059 = vset.pattern.permute.xlu0 %v1058
        %1060 = vperm.xlu0 %1059, %v965
        %v1061 = vpop.permute.xlu0 %1060
        %v1062 = vperm.slane %v374, 7
        %v1063 = vlaneseq
        %v1064 = vshrl.u32 %v1063, 7
        %1066 = vset.pattern.permute.xlu0 %v1064
        %1067 = vperm.xlu0 %1066, %v1062
        %v1068 = vpop.permute.xlu0 %1067
        %v1069 = vlaneseq
        %v1070 = vshrl.u32 %v1069, 7
        %v1071 = vadd.s32 %v1070, 8
        %1072 = vset.pattern.permute.xlu0 %v1071
        %1073 = vperm.xlu0 %1072, %v1062
        %v1074 = vpop.permute.xlu0 %1073
        %v1075 = vlaneseq
        %v1076 = vshrl.u32 %v1075, 7
        %v1077 = vadd.s32 %v1076, 16
        %1078 = vset.pattern.permute.xlu0 %v1077
        %1079 = vperm.xlu0 %1078, %v1062
        %v1080 = vpop.permute.xlu0 %1079
        %v1081 = vlaneseq
        %v1082 = vshrl.u32 %v1081, 7
        %v1083 = vadd.s32 %v1082, 24
        %1084 = vset.pattern.permute.xlu0 %v1083
        %1085 = vperm.xlu0 %1084, %v1062
        %v1086 = vpop.permute.xlu0 %1085
        %v1087 = vlaneseq
        %v1088 = vshrl.u32 %v1087, 7
        %v1089 = vadd.s32 %v1088, 32
        %1090 = vset.pattern.permute.xlu0 %v1089
        %1091 = vperm.xlu0 %1090, %v1062
        %v1092 = vpop.permute.xlu0 %1091
        %v1093 = vlaneseq
        %v1094 = vshrl.u32 %v1093, 7
        %v1095 = vadd.s32 %v1094, 40
        %1096 = vset.pattern.permute.xlu0 %v1095
        %1097 = vperm.xlu0 %1096, %v1062
        %v1098 = vpop.permute.xlu0 %1097
        %v1099 = vlaneseq
        %v1100 = vshrl.u32 %v1099, 7
        %v1101 = vadd.s32 %v1100, 48
        %1102 = vset.pattern.permute.xlu0 %v1101
        %1103 = vperm.xlu0 %1102, %v1062
        %v1104 = vpop.permute.xlu0 %1103
        %v1105 = vlaneseq
        %v1106 = vshrl.u32 %v1105, 7
        %v1107 = vadd.s32 %v1106, 56
        %1108 = vset.pattern.permute.xlu0 %v1107
        %1109 = vperm.xlu0 %1108, %v1062
        %v1110 = vpop.permute.xlu0 %1109
        %v1111 = vlaneseq
        %v1112 = vshrl.u32 %v1111, 7
        %v1113 = vadd.s32 %v1112, 64
        %1114 = vset.pattern.permute.xlu0 %v1113
        %1115 = vperm.xlu0 %1114, %v1062
        %v1116 = vpop.permute.xlu0 %1115
        %v1117 = vlaneseq
        %v1118 = vshrl.u32 %v1117, 7
        %v1119 = vadd.s32 %v1118, 72
        %1120 = vset.pattern.permute.xlu0 %v1119
        %1121 = vperm.xlu0 %1120, %v1062
        %v1122 = vpop.permute.xlu0 %1121
        %v1123 = vlaneseq
        %v1124 = vshrl.u32 %v1123, 7
        %v1125 = vadd.s32 %v1124, 80
        %1126 = vset.pattern.permute.xlu0 %v1125
        %1127 = vperm.xlu0 %1126, %v1062
        %v1128 = vpop.permute.xlu0 %1127
        %v1129 = vlaneseq
        %v1130 = vshrl.u32 %v1129, 7
        %v1131 = vadd.s32 %v1130, 88
        %1132 = vset.pattern.permute.xlu0 %v1131
        %1133 = vperm.xlu0 %1132, %v1062
        %v1134 = vpop.permute.xlu0 %1133
        %v1135 = vlaneseq
        %v1136 = vshrl.u32 %v1135, 7
        %v1137 = vadd.s32 %v1136, 96
        %1138 = vset.pattern.permute.xlu0 %v1137
        %1139 = vperm.xlu0 %1138, %v1062
        %v1140 = vpop.permute.xlu0 %1139
        %v1141 = vlaneseq
        %v1142 = vshrl.u32 %v1141, 7
        %v1143 = vadd.s32 %v1142, 104
        %1144 = vset.pattern.permute.xlu0 %v1143
        %1145 = vperm.xlu0 %1144, %v1062
        %v1146 = vpop.permute.xlu0 %1145
        %v1147 = vlaneseq
        %v1148 = vshrl.u32 %v1147, 7
        %v1149 = vadd.s32 %v1148, 112
        %1150 = vset.pattern.permute.xlu0 %v1149
        %1151 = vperm.xlu0 %1150, %v1062
        %v1152 = vpop.permute.xlu0 %1151
        %v1153 = vlaneseq
        %v1154 = vshrl.u32 %v1153, 7
        %v1155 = vadd.s32 %v1154, 120
        %1156 = vset.pattern.permute.xlu0 %v1155
        %1157 = vperm.xlu0 %1156, %v1062
        %v1158 = vpop.permute.xlu0 %1157
        %v1159 = vperm.slane %v352, 0
        %v1160 = vperm.slane %v376, 0
        %v1161 = vperm.slane %v377, 0
        %v1162 = vperm.slane %v378, 0
        %v1163 = vperm.slane %v379, 0
        %v1164 = vperm.slane %v380, 0
        %v1165 = vperm.slane %v381, 0
        %v1166 = vperm.slane %v382, 0
        %vm1175 = vcmp.gt.f32.partialorder %v1159, %v389
        %vm1176 = vcmp.gt.f32.partialorder %v1159, %v395
        %vm1177 = vcmp.gt.f32.partialorder %v1159, %v401
        %vm1178 = vcmp.gt.f32.partialorder %v1159, %v407
        %vm1179 = vcmp.gt.f32.partialorder %v1159, %v413
        %vm1180 = vcmp.gt.f32.partialorder %v1159, %v419
        %vm1181 = vcmp.gt.f32.partialorder %v1159, %v425
        %vm1182 = vcmp.gt.f32.partialorder %v1159, %v431
        %vm1183 = vcmp.gt.f32.partialorder %v1159, %v437
        %vm1184 = vcmp.gt.f32.partialorder %v1159, %v443
        %vm1185 = vcmp.gt.f32.partialorder %v1159, %v449
        %vm1186 = vcmp.gt.f32.partialorder %v1159, %v455
        %vm1187 = vcmp.gt.f32.partialorder %v1159, %v461
        %vm1188 = vcmp.gt.f32.partialorder %v1159, %v467
        %vm1189 = vcmp.gt.f32.partialorder %v1159, %v473
        %vm1190 = vcmp.gt.f32.partialorder %v1159, %v479
        %vm1191 = vcmp.gt.f32.partialorder %v1160, %v486
        %vm1192 = vcmp.gt.f32.partialorder %v1160, %v492
        %vm1193 = vcmp.gt.f32.partialorder %v1160, %v498
        %vm1194 = vcmp.gt.f32.partialorder %v1160, %v504
        %vm1195 = vcmp.gt.f32.partialorder %v1160, %v510
        %vm1196 = vcmp.gt.f32.partialorder %v1160, %v516
        %vm1197 = vcmp.gt.f32.partialorder %v1160, %v522
        %vm1198 = vcmp.gt.f32.partialorder %v1160, %v528
        %vm1199 = vcmp.gt.f32.partialorder %v1160, %v534
        %vm1200 = vcmp.gt.f32.partialorder %v1160, %v540
        %vm1201 = vcmp.gt.f32.partialorder %v1160, %v546
        %vm1202 = vcmp.gt.f32.partialorder %v1160, %v552
        %vm1203 = vcmp.gt.f32.partialorder %v1160, %v558
        %vm1204 = vcmp.gt.f32.partialorder %v1160, %v564
        %vm1205 = vcmp.gt.f32.partialorder %v1160, %v570
        %vm1206 = vcmp.gt.f32.partialorder %v1160, %v576
        %vm1207 = vcmp.gt.f32.partialorder %v1161, %v583
        %vm1208 = vcmp.gt.f32.partialorder %v1161, %v589
        %vm1209 = vcmp.gt.f32.partialorder %v1161, %v595
        %vm1210 = vcmp.gt.f32.partialorder %v1161, %v601
        %vm1211 = vcmp.gt.f32.partialorder %v1161, %v607
        %vm1212 = vcmp.gt.f32.partialorder %v1161, %v613
        %vm1213 = vcmp.gt.f32.partialorder %v1161, %v619
        %vm1214 = vcmp.gt.f32.partialorder %v1161, %v625
        %vm1215 = vcmp.gt.f32.partialorder %v1161, %v631
        %vm1216 = vcmp.gt.f32.partialorder %v1161, %v637
        %vm1217 = vcmp.gt.f32.partialorder %v1161, %v643
        %vm1218 = vcmp.gt.f32.partialorder %v1161, %v649
        %vm1219 = vcmp.gt.f32.partialorder %v1161, %v655
        %vm1220 = vcmp.gt.f32.partialorder %v1161, %v661
        %vm1221 = vcmp.gt.f32.partialorder %v1161, %v667
        %vm1222 = vcmp.gt.f32.partialorder %v1161, %v673
        %vm1223 = vcmp.gt.f32.partialorder %v1162, %v680
        %vm1224 = vcmp.gt.f32.partialorder %v1162, %v686
        %vm1225 = vcmp.gt.f32.partialorder %v1162, %v692
        %vm1226 = vcmp.gt.f32.partialorder %v1162, %v698
        %vm1227 = vcmp.gt.f32.partialorder %v1162, %v704
        %vm1228 = vcmp.gt.f32.partialorder %v1162, %v710
        %vm1229 = vcmp.gt.f32.partialorder %v1162, %v716
        %vm1230 = vcmp.gt.f32.partialorder %v1162, %v722
        %vm1231 = vcmp.gt.f32.partialorder %v1162, %v728
        %vm1232 = vcmp.gt.f32.partialorder %v1162, %v734
        %vm1233 = vcmp.gt.f32.partialorder %v1162, %v740
        %vm1234 = vcmp.gt.f32.partialorder %v1162, %v746
        %vm1235 = vcmp.gt.f32.partialorder %v1162, %v752
        %vm1236 = vcmp.gt.f32.partialorder %v1162, %v758
        %vm1237 = vcmp.gt.f32.partialorder %v1162, %v764
        %vm1238 = vcmp.gt.f32.partialorder %v1162, %v770
        %vm1239 = vcmp.gt.f32.partialorder %v1163, %v777
        %vm1240 = vcmp.gt.f32.partialorder %v1163, %v783
        %vm1241 = vcmp.gt.f32.partialorder %v1163, %v789
        %vm1242 = vcmp.gt.f32.partialorder %v1163, %v795
        %vm1243 = vcmp.gt.f32.partialorder %v1163, %v801
        %vm1244 = vcmp.gt.f32.partialorder %v1163, %v807
        %vm1245 = vcmp.gt.f32.partialorder %v1163, %v813
        %vm1246 = vcmp.gt.f32.partialorder %v1163, %v819
        %vm1247 = vcmp.gt.f32.partialorder %v1163, %v825
        %vm1248 = vcmp.gt.f32.partialorder %v1163, %v831
        %vm1249 = vcmp.gt.f32.partialorder %v1163, %v837
        %vm1250 = vcmp.gt.f32.partialorder %v1163, %v843
        %vm1251 = vcmp.gt.f32.partialorder %v1163, %v849
        %vm1252 = vcmp.gt.f32.partialorder %v1163, %v855
        %vm1253 = vcmp.gt.f32.partialorder %v1163, %v861
        %vm1254 = vcmp.gt.f32.partialorder %v1163, %v867
        %vm1255 = vcmp.gt.f32.partialorder %v1164, %v874
        %vm1256 = vcmp.gt.f32.partialorder %v1164, %v880
        %vm1257 = vcmp.gt.f32.partialorder %v1164, %v886
        %vm1258 = vcmp.gt.f32.partialorder %v1164, %v892
        %vm1259 = vcmp.gt.f32.partialorder %v1164, %v898
        %vm1260 = vcmp.gt.f32.partialorder %v1164, %v904
        %vm1261 = vcmp.gt.f32.partialorder %v1164, %v910
        %vm1262 = vcmp.gt.f32.partialorder %v1164, %v916
        %vm1263 = vcmp.gt.f32.partialorder %v1164, %v922
        %vm1264 = vcmp.gt.f32.partialorder %v1164, %v928
        %vm1265 = vcmp.gt.f32.partialorder %v1164, %v934
        %vm1266 = vcmp.gt.f32.partialorder %v1164, %v940
        %vm1267 = vcmp.gt.f32.partialorder %v1164, %v946
        %vm1268 = vcmp.gt.f32.partialorder %v1164, %v952
        %vm1269 = vcmp.gt.f32.partialorder %v1164, %v958
        %vm1270 = vcmp.gt.f32.partialorder %v1164, %v964
        %vm1271 = vcmp.gt.f32.partialorder %v1165, %v971
        %vm1272 = vcmp.gt.f32.partialorder %v1165, %v977
        %vm1273 = vcmp.gt.f32.partialorder %v1165, %v983
        %vm1274 = vcmp.gt.f32.partialorder %v1165, %v989
        %vm1275 = vcmp.gt.f32.partialorder %v1165, %v995
        %vm1276 = vcmp.gt.f32.partialorder %v1165, %v1001
        %vm1277 = vcmp.gt.f32.partialorder %v1165, %v1007
        %vm1278 = vcmp.gt.f32.partialorder %v1165, %v1013
        %vm1279 = vcmp.gt.f32.partialorder %v1165, %v1019
        %vm1280 = vcmp.gt.f32.partialorder %v1165, %v1025
        %vm1281 = vcmp.gt.f32.partialorder %v1165, %v1031
        %vm1282 = vcmp.gt.f32.partialorder %v1165, %v1037
        %vm1283 = vcmp.gt.f32.partialorder %v1165, %v1043
        %vm1284 = vcmp.gt.f32.partialorder %v1165, %v1049
        %vm1285 = vcmp.gt.f32.partialorder %v1165, %v1055
        %vm1286 = vcmp.gt.f32.partialorder %v1165, %v1061
        %vm1287 = vcmp.gt.f32.partialorder %v1166, %v1068
        %vm1288 = vcmp.gt.f32.partialorder %v1166, %v1074
        %vm1289 = vcmp.gt.f32.partialorder %v1166, %v1080
        %vm1290 = vcmp.gt.f32.partialorder %v1166, %v1086
        %vm1291 = vcmp.gt.f32.partialorder %v1166, %v1092
        %vm1292 = vcmp.gt.f32.partialorder %v1166, %v1098
        %vm1293 = vcmp.gt.f32.partialorder %v1166, %v1104
        %vm1294 = vcmp.gt.f32.partialorder %v1166, %v1110
        %vm1295 = vcmp.gt.f32.partialorder %v1166, %v1116
        %vm1296 = vcmp.gt.f32.partialorder %v1166, %v1122
        %vm1297 = vcmp.gt.f32.partialorder %v1166, %v1128
        %vm1298 = vcmp.gt.f32.partialorder %v1166, %v1134
        %vm1299 = vcmp.gt.f32.partialorder %v1166, %v1140
        %vm1300 = vcmp.gt.f32.partialorder %v1166, %v1146
        %vm1301 = vcmp.gt.f32.partialorder %v1166, %v1152
        %vm1302 = vcmp.gt.f32.partialorder %v1166, %v1158
        %v1303 = vsel %vm1175, 1, 0
        %v1304 = vsel %vm1176, 1, 0
        %v1305 = vsel %vm1177, 1, 0
        %v1306 = vsel %vm1178, 1, 0
        %v1307 = vsel %vm1179, 1, 0
        %v1308 = vsel %vm1180, 1, 0
        %v1309 = vsel %vm1181, 1, 0
        %v1310 = vsel %vm1182, 1, 0
        %v1311 = vsel %vm1183, 1, 0
        %v1312 = vsel %vm1184, 1, 0
        %v1313 = vsel %vm1185, 1, 0
        %v1314 = vsel %vm1186, 1, 0
        %v1315 = vsel %vm1187, 1, 0
        %v1316 = vsel %vm1188, 1, 0
        %v1317 = vsel %vm1189, 1, 0
        %v1318 = vsel %vm1190, 1, 0
        %v1319 = vsel %vm1191, 1, 0
        %v1320 = vsel %vm1192, 1, 0
        %v1321 = vsel %vm1193, 1, 0
        %v1322 = vsel %vm1194, 1, 0
        %v1323 = vsel %vm1195, 1, 0
        %v1324 = vsel %vm1196, 1, 0
        %v1325 = vsel %vm1197, 1, 0
        %v1326 = vsel %vm1198, 1, 0
        %v1327 = vsel %vm1199, 1, 0
        %v1328 = vsel %vm1200, 1, 0
        %v1329 = vsel %vm1201, 1, 0
        %v1330 = vsel %vm1202, 1, 0
        %v1331 = vsel %vm1203, 1, 0
        %v1332 = vsel %vm1204, 1, 0
        %v1333 = vsel %vm1205, 1, 0
        %v1334 = vsel %vm1206, 1, 0
        %v1335 = vsel %vm1207, 1, 0
        %v1336 = vsel %vm1208, 1, 0
        %v1337 = vsel %vm1209, 1, 0
        %v1338 = vsel %vm1210, 1, 0
        %v1339 = vsel %vm1211, 1, 0
        %v1340 = vsel %vm1212, 1, 0
        %v1341 = vsel %vm1213, 1, 0
        %v1342 = vsel %vm1214, 1, 0
        %v1343 = vsel %vm1215, 1, 0
        %v1344 = vsel %vm1216, 1, 0
        %v1345 = vsel %vm1217, 1, 0
        %v1346 = vsel %vm1218, 1, 0
        %v1347 = vsel %vm1219, 1, 0
        %v1348 = vsel %vm1220, 1, 0
        %v1349 = vsel %vm1221, 1, 0
        %v1350 = vsel %vm1222, 1, 0
        %v1351 = vsel %vm1223, 1, 0
        %v1352 = vsel %vm1224, 1, 0
        %v1353 = vsel %vm1225, 1, 0
        %v1354 = vsel %vm1226, 1, 0
        %v1355 = vsel %vm1227, 1, 0
        %v1356 = vsel %vm1228, 1, 0
        %v1357 = vsel %vm1229, 1, 0
        %v1358 = vsel %vm1230, 1, 0
        %v1359 = vsel %vm1231, 1, 0
        %v1360 = vsel %vm1232, 1, 0
        %v1361 = vsel %vm1233, 1, 0
        %v1362 = vsel %vm1234, 1, 0
        %v1363 = vsel %vm1235, 1, 0
        %v1364 = vsel %vm1236, 1, 0
        %v1365 = vsel %vm1237, 1, 0
        %v1366 = vsel %vm1238, 1, 0
        %v1367 = vsel %vm1239, 1, 0
        %v1368 = vsel %vm1240, 1, 0
        %v1369 = vsel %vm1241, 1, 0
        %v1370 = vsel %vm1242, 1, 0
        %v1371 = vsel %vm1243, 1, 0
        %v1372 = vsel %vm1244, 1, 0
        %v1373 = vsel %vm1245, 1, 0
        %v1374 = vsel %vm1246, 1, 0
        %v1375 = vsel %vm1247, 1, 0
        %v1376 = vsel %vm1248, 1, 0
        %v1377 = vsel %vm1249, 1, 0
        %v1378 = vsel %vm1250, 1, 0
        %v1379 = vsel %vm1251, 1, 0
        %v1380 = vsel %vm1252, 1, 0
        %v1381 = vsel %vm1253, 1, 0
        %v1382 = vsel %vm1254, 1, 0
        %v1383 = vsel %vm1255, 1, 0
        %v1384 = vsel %vm1256, 1, 0
        %v1385 = vsel %vm1257, 1, 0
        %v1386 = vsel %vm1258, 1, 0
        %v1387 = vsel %vm1259, 1, 0
        %v1388 = vsel %vm1260, 1, 0
        %v1389 = vsel %vm1261, 1, 0
        %v1390 = vsel %vm1262, 1, 0
        %v1391 = vsel %vm1263, 1, 0
        %v1392 = vsel %vm1264, 1, 0
        %v1393 = vsel %vm1265, 1, 0
        %v1394 = vsel %vm1266, 1, 0
        %v1395 = vsel %vm1267, 1, 0
        %v1396 = vsel %vm1268, 1, 0
        %v1397 = vsel %vm1269, 1, 0
        %v1398 = vsel %vm1270, 1, 0
        %v1399 = vsel %vm1271, 1, 0
        %v1400 = vsel %vm1272, 1, 0
        %v1401 = vsel %vm1273, 1, 0
        %v1402 = vsel %vm1274, 1, 0
        %v1403 = vsel %vm1275, 1, 0
        %v1404 = vsel %vm1276, 1, 0
        %v1405 = vsel %vm1277, 1, 0
        %v1406 = vsel %vm1278, 1, 0
        %v1407 = vsel %vm1279, 1, 0
        %v1408 = vsel %vm1280, 1, 0
        %v1409 = vsel %vm1281, 1, 0
        %v1410 = vsel %vm1282, 1, 0
        %v1411 = vsel %vm1283, 1, 0
        %v1412 = vsel %vm1284, 1, 0
        %v1413 = vsel %vm1285, 1, 0
        %v1414 = vsel %vm1286, 1, 0
        %v1415 = vsel %vm1287, 1, 0
        %v1416 = vsel %vm1288, 1, 0
        %v1417 = vsel %vm1289, 1, 0
        %v1418 = vsel %vm1290, 1, 0
        %v1419 = vsel %vm1291, 1, 0
        %v1420 = vsel %vm1292, 1, 0
        %v1421 = vsel %vm1293, 1, 0
        %v1422 = vsel %vm1294, 1, 0
        %v1423 = vsel %vm1295, 1, 0
        %v1424 = vsel %vm1296, 1, 0
        %v1425 = vsel %vm1297, 1, 0
        %v1426 = vsel %vm1298, 1, 0
        %v1427 = vsel %vm1299, 1, 0
        %v1428 = vsel %vm1300, 1, 0
        %v1429 = vsel %vm1301, 1, 0
        %v1430 = vsel %vm1302, 1, 0
        %v1431 = vcvt.s32.f32 %v1303
        %v1432 = vcvt.s32.f32 %v1304
        %v1433 = vcvt.s32.f32 %v1305
        %v1434 = vcvt.s32.f32 %v1306
        %v1435 = vcvt.s32.f32 %v1307
        %v1436 = vcvt.s32.f32 %v1308
        %v1437 = vcvt.s32.f32 %v1309
        %v1438 = vcvt.s32.f32 %v1310
        %v1439 = vcvt.s32.f32 %v1311
        %v1440 = vcvt.s32.f32 %v1312
        %v1441 = vcvt.s32.f32 %v1313
        %v1442 = vcvt.s32.f32 %v1314
        %v1443 = vcvt.s32.f32 %v1315
        %v1444 = vcvt.s32.f32 %v1316
        %v1445 = vcvt.s32.f32 %v1317
        %v1446 = vcvt.s32.f32 %v1318
        %v1447 = vcvt.s32.f32 %v1319
        %v1448 = vcvt.s32.f32 %v1320
        %v1449 = vcvt.s32.f32 %v1321
        %v1450 = vcvt.s32.f32 %v1322
        %v1451 = vcvt.s32.f32 %v1323
        %v1452 = vcvt.s32.f32 %v1324
        %v1453 = vcvt.s32.f32 %v1325
        %v1454 = vcvt.s32.f32 %v1326
        %v1455 = vcvt.s32.f32 %v1327
        %v1456 = vcvt.s32.f32 %v1328
        %v1457 = vcvt.s32.f32 %v1329
        %v1458 = vcvt.s32.f32 %v1330
        %v1459 = vcvt.s32.f32 %v1331
        %v1460 = vcvt.s32.f32 %v1332
        %v1461 = vcvt.s32.f32 %v1333
        %v1462 = vcvt.s32.f32 %v1334
        %v1463 = vcvt.s32.f32 %v1335
        %v1464 = vcvt.s32.f32 %v1336
        %v1465 = vcvt.s32.f32 %v1337
        %v1466 = vcvt.s32.f32 %v1338
        %v1467 = vcvt.s32.f32 %v1339
        %v1468 = vcvt.s32.f32 %v1340
        %v1469 = vcvt.s32.f32 %v1341
        %v1470 = vcvt.s32.f32 %v1342
        %v1471 = vcvt.s32.f32 %v1343
        %v1472 = vcvt.s32.f32 %v1344
        %v1473 = vcvt.s32.f32 %v1345
        %v1474 = vcvt.s32.f32 %v1346
        %v1475 = vcvt.s32.f32 %v1347
        %v1476 = vcvt.s32.f32 %v1348
        %v1477 = vcvt.s32.f32 %v1349
        %v1478 = vcvt.s32.f32 %v1350
        %v1479 = vcvt.s32.f32 %v1351
        %v1480 = vcvt.s32.f32 %v1352
        %v1481 = vcvt.s32.f32 %v1353
        %v1482 = vcvt.s32.f32 %v1354
        %v1483 = vcvt.s32.f32 %v1355
        %v1484 = vcvt.s32.f32 %v1356
        %v1485 = vcvt.s32.f32 %v1357
        %v1486 = vcvt.s32.f32 %v1358
        %v1487 = vcvt.s32.f32 %v1359
        %v1488 = vcvt.s32.f32 %v1360
        %v1489 = vcvt.s32.f32 %v1361
        %v1490 = vcvt.s32.f32 %v1362
        %v1491 = vcvt.s32.f32 %v1363
        %v1492 = vcvt.s32.f32 %v1364
        %v1493 = vcvt.s32.f32 %v1365
        %v1494 = vcvt.s32.f32 %v1366
        %v1495 = vcvt.s32.f32 %v1367
        %v1496 = vcvt.s32.f32 %v1368
        %v1497 = vcvt.s32.f32 %v1369
        %v1498 = vcvt.s32.f32 %v1370
        %v1499 = vcvt.s32.f32 %v1371
        %v1500 = vcvt.s32.f32 %v1372
        %v1501 = vcvt.s32.f32 %v1373
        %v1502 = vcvt.s32.f32 %v1374
        %v1503 = vcvt.s32.f32 %v1375
        %v1504 = vcvt.s32.f32 %v1376
        %v1505 = vcvt.s32.f32 %v1377
        %v1506 = vcvt.s32.f32 %v1378
        %v1507 = vcvt.s32.f32 %v1379
        %v1508 = vcvt.s32.f32 %v1380
        %v1509 = vcvt.s32.f32 %v1381
        %v1510 = vcvt.s32.f32 %v1382
        %v1511 = vcvt.s32.f32 %v1383
        %v1512 = vcvt.s32.f32 %v1384
        %v1513 = vcvt.s32.f32 %v1385
        %v1514 = vcvt.s32.f32 %v1386
        %v1515 = vcvt.s32.f32 %v1387
        %v1516 = vcvt.s32.f32 %v1388
        %v1517 = vcvt.s32.f32 %v1389
        %v1518 = vcvt.s32.f32 %v1390
        %v1519 = vcvt.s32.f32 %v1391
        %v1520 = vcvt.s32.f32 %v1392
        %v1521 = vcvt.s32.f32 %v1393
        %v1522 = vcvt.s32.f32 %v1394
        %v1523 = vcvt.s32.f32 %v1395
        %v1524 = vcvt.s32.f32 %v1396
        %v1525 = vcvt.s32.f32 %v1397
        %v1526 = vcvt.s32.f32 %v1398
        %v1527 = vcvt.s32.f32 %v1399
        %v1528 = vcvt.s32.f32 %v1400
        %v1529 = vcvt.s32.f32 %v1401
        %v1530 = vcvt.s32.f32 %v1402
        %v1531 = vcvt.s32.f32 %v1403
        %v1532 = vcvt.s32.f32 %v1404
        %v1533 = vcvt.s32.f32 %v1405
        %v1534 = vcvt.s32.f32 %v1406
        %v1535 = vcvt.s32.f32 %v1407
        %v1536 = vcvt.s32.f32 %v1408
        %v1537 = vcvt.s32.f32 %v1409
        %v1538 = vcvt.s32.f32 %v1410
        %v1539 = vcvt.s32.f32 %v1411
        %v1540 = vcvt.s32.f32 %v1412
        %v1541 = vcvt.s32.f32 %v1413
        %v1542 = vcvt.s32.f32 %v1414
        %v1543 = vcvt.s32.f32 %v1415
        %v1544 = vcvt.s32.f32 %v1416
        %v1545 = vcvt.s32.f32 %v1417
        %v1546 = vcvt.s32.f32 %v1418
        %v1547 = vcvt.s32.f32 %v1419
        %v1548 = vcvt.s32.f32 %v1420
        %v1549 = vcvt.s32.f32 %v1421
        %v1550 = vcvt.s32.f32 %v1422
        %v1551 = vcvt.s32.f32 %v1423
        %v1552 = vcvt.s32.f32 %v1424
        %v1553 = vcvt.s32.f32 %v1425
        %v1554 = vcvt.s32.f32 %v1426
        %v1555 = vcvt.s32.f32 %v1427
        %v1556 = vcvt.s32.f32 %v1428
        %v1557 = vcvt.s32.f32 %v1429
        %v1558 = vcvt.s32.f32 %v1430
        %1559 = vadd.xlane.f32.xlu0 %v1431
        %v1560 = vpop.xlane.xlu0 %1559
        %1561 = vadd.xlane.f32.xlu0 %v1432
        %v1562 = vpop.xlane.xlu0 %1561
        %1563 = vadd.xlane.f32.xlu0 %v1433
        %v1564 = vpop.xlane.xlu0 %1563
        %1565 = vadd.xlane.f32.xlu0 %v1434
        %v1566 = vpop.xlane.xlu0 %1565
        %1567 = vadd.xlane.f32.xlu0 %v1435
        %v1568 = vpop.xlane.xlu0 %1567
        %1569 = vadd.xlane.f32.xlu0 %v1436
        %v1570 = vpop.xlane.xlu0 %1569
        %1571 = vadd.xlane.f32.xlu0 %v1437
        %v1572 = vpop.xlane.xlu0 %1571
        %1573 = vadd.xlane.f32.xlu0 %v1438
        %v1574 = vpop.xlane.xlu0 %1573
        %1575 = vadd.xlane.f32.xlu0 %v1439
        %v1576 = vpop.xlane.xlu0 %1575
        %1577 = vadd.xlane.f32.xlu0 %v1440
        %v1578 = vpop.xlane.xlu0 %1577
        %1579 = vadd.xlane.f32.xlu0 %v1441
        %v1580 = vpop.xlane.xlu0 %1579
        %1581 = vadd.xlane.f32.xlu0 %v1442
        %v1582 = vpop.xlane.xlu0 %1581
        %1583 = vadd.xlane.f32.xlu0 %v1443
        %v1584 = vpop.xlane.xlu0 %1583
        %1585 = vadd.xlane.f32.xlu0 %v1444
        %v1586 = vpop.xlane.xlu0 %1585
        %1587 = vadd.xlane.f32.xlu0 %v1445
        %v1588 = vpop.xlane.xlu0 %1587
        %1589 = vadd.xlane.f32.xlu0 %v1446
        %v1590 = vpop.xlane.xlu0 %1589
        %1591 = vadd.xlane.f32.xlu0 %v1447
        %v1592 = vpop.xlane.xlu0 %1591
        %1593 = vadd.xlane.f32.xlu0 %v1448
        %v1594 = vpop.xlane.xlu0 %1593
        %1595 = vadd.xlane.f32.xlu0 %v1449
        %v1596 = vpop.xlane.xlu0 %1595
        %1597 = vadd.xlane.f32.xlu0 %v1450
        %v1598 = vpop.xlane.xlu0 %1597
        %1599 = vadd.xlane.f32.xlu0 %v1451
        %v1600 = vpop.xlane.xlu0 %1599
        %1601 = vadd.xlane.f32.xlu0 %v1452
        %v1602 = vpop.xlane.xlu0 %1601
        %1603 = vadd.xlane.f32.xlu0 %v1453
        %v1604 = vpop.xlane.xlu0 %1603
        %1605 = vadd.xlane.f32.xlu0 %v1454
        %v1606 = vpop.xlane.xlu0 %1605
        %1607 = vadd.xlane.f32.xlu0 %v1455
        %v1608 = vpop.xlane.xlu0 %1607
        %1609 = vadd.xlane.f32.xlu0 %v1456
        %v1610 = vpop.xlane.xlu0 %1609
        %1611 = vadd.xlane.f32.xlu0 %v1457
        %v1612 = vpop.xlane.xlu0 %1611
        %1613 = vadd.xlane.f32.xlu0 %v1458
        %v1614 = vpop.xlane.xlu0 %1613
        %1615 = vadd.xlane.f32.xlu0 %v1459
        %v1616 = vpop.xlane.xlu0 %1615
        %1617 = vadd.xlane.f32.xlu0 %v1460
        %v1618 = vpop.xlane.xlu0 %1617
        %1619 = vadd.xlane.f32.xlu0 %v1461
        %v1620 = vpop.xlane.xlu0 %1619
        %1621 = vadd.xlane.f32.xlu0 %v1462
        %v1622 = vpop.xlane.xlu0 %1621
        %1623 = vadd.xlane.f32.xlu0 %v1463
        %v1624 = vpop.xlane.xlu0 %1623
        %1625 = vadd.xlane.f32.xlu0 %v1464
        %v1626 = vpop.xlane.xlu0 %1625
        %1627 = vadd.xlane.f32.xlu0 %v1465
        %v1628 = vpop.xlane.xlu0 %1627
        %1629 = vadd.xlane.f32.xlu0 %v1466
        %v1630 = vpop.xlane.xlu0 %1629
        %1631 = vadd.xlane.f32.xlu0 %v1467
        %v1632 = vpop.xlane.xlu0 %1631
        %1633 = vadd.xlane.f32.xlu0 %v1468
        %v1634 = vpop.xlane.xlu0 %1633
        %1635 = vadd.xlane.f32.xlu0 %v1469
        %v1636 = vpop.xlane.xlu0 %1635
        %1637 = vadd.xlane.f32.xlu0 %v1470
        %v1638 = vpop.xlane.xlu0 %1637
        %1639 = vadd.xlane.f32.xlu0 %v1471
        %v1640 = vpop.xlane.xlu0 %1639
        %1641 = vadd.xlane.f32.xlu0 %v1472
        %v1642 = vpop.xlane.xlu0 %1641
        %1643 = vadd.xlane.f32.xlu0 %v1473
        %v1644 = vpop.xlane.xlu0 %1643
        %1645 = vadd.xlane.f32.xlu0 %v1474
        %v1646 = vpop.xlane.xlu0 %1645
        %1647 = vadd.xlane.f32.xlu0 %v1475
        %v1648 = vpop.xlane.xlu0 %1647
        %1649 = vadd.xlane.f32.xlu0 %v1476
        %v1650 = vpop.xlane.xlu0 %1649
        %1651 = vadd.xlane.f32.xlu0 %v1477
        %v1652 = vpop.xlane.xlu0 %1651
        %1653 = vadd.xlane.f32.xlu0 %v1478
        %v1654 = vpop.xlane.xlu0 %1653
        %1655 = vadd.xlane.f32.xlu0 %v1479
        %v1656 = vpop.xlane.xlu0 %1655
        %1657 = vadd.xlane.f32.xlu0 %v1480
        %v1658 = vpop.xlane.xlu0 %1657
        %1659 = vadd.xlane.f32.xlu0 %v1481
        %v1660 = vpop.xlane.xlu0 %1659
        %1661 = vadd.xlane.f32.xlu0 %v1482
        %v1662 = vpop.xlane.xlu0 %1661
        %1663 = vadd.xlane.f32.xlu0 %v1483
        %v1664 = vpop.xlane.xlu0 %1663
        %1665 = vadd.xlane.f32.xlu0 %v1484
        %v1666 = vpop.xlane.xlu0 %1665
        %1667 = vadd.xlane.f32.xlu0 %v1485
        %v1668 = vpop.xlane.xlu0 %1667
        %1669 = vadd.xlane.f32.xlu0 %v1486
        %v1670 = vpop.xlane.xlu0 %1669
        %1671 = vadd.xlane.f32.xlu0 %v1487
        %v1672 = vpop.xlane.xlu0 %1671
        %1673 = vadd.xlane.f32.xlu0 %v1488
        %v1674 = vpop.xlane.xlu0 %1673
        %1675 = vadd.xlane.f32.xlu0 %v1489
        %v1676 = vpop.xlane.xlu0 %1675
        %1677 = vadd.xlane.f32.xlu0 %v1490
        %v1678 = vpop.xlane.xlu0 %1677
        %1679 = vadd.xlane.f32.xlu0 %v1491
        %v1680 = vpop.xlane.xlu0 %1679
        %1681 = vadd.xlane.f32.xlu0 %v1492
        %v1682 = vpop.xlane.xlu0 %1681
        %1683 = vadd.xlane.f32.xlu0 %v1493
        %v1684 = vpop.xlane.xlu0 %1683
        %1685 = vadd.xlane.f32.xlu0 %v1494
        %v1686 = vpop.xlane.xlu0 %1685
        %1687 = vadd.xlane.f32.xlu0 %v1495
        %v1688 = vpop.xlane.xlu0 %1687
        %1689 = vadd.xlane.f32.xlu0 %v1496
        %v1690 = vpop.xlane.xlu0 %1689
        %1691 = vadd.xlane.f32.xlu0 %v1497
        %v1692 = vpop.xlane.xlu0 %1691
        %1693 = vadd.xlane.f32.xlu0 %v1498
        %v1694 = vpop.xlane.xlu0 %1693
        %1695 = vadd.xlane.f32.xlu0 %v1499
        %v1696 = vpop.xlane.xlu0 %1695
        %1697 = vadd.xlane.f32.xlu0 %v1500
        %v1698 = vpop.xlane.xlu0 %1697
        %1699 = vadd.xlane.f32.xlu0 %v1501
        %v1700 = vpop.xlane.xlu0 %1699
        %1701 = vadd.xlane.f32.xlu0 %v1502
        %v1702 = vpop.xlane.xlu0 %1701
        %1703 = vadd.xlane.f32.xlu0 %v1503
        %v1704 = vpop.xlane.xlu0 %1703
        %1705 = vadd.xlane.f32.xlu0 %v1504
        %v1706 = vpop.xlane.xlu0 %1705
        %1707 = vadd.xlane.f32.xlu0 %v1505
        %v1708 = vpop.xlane.xlu0 %1707
        %1709 = vadd.xlane.f32.xlu0 %v1506
        %v1710 = vpop.xlane.xlu0 %1709
        %1711 = vadd.xlane.f32.xlu0 %v1507
        %v1712 = vpop.xlane.xlu0 %1711
        %1713 = vadd.xlane.f32.xlu0 %v1508
        %v1714 = vpop.xlane.xlu0 %1713
        %1715 = vadd.xlane.f32.xlu0 %v1509
        %v1716 = vpop.xlane.xlu0 %1715
        %1717 = vadd.xlane.f32.xlu0 %v1510
        %v1718 = vpop.xlane.xlu0 %1717
        %1719 = vadd.xlane.f32.xlu0 %v1511
        %v1720 = vpop.xlane.xlu0 %1719
        %1721 = vadd.xlane.f32.xlu0 %v1512
        %v1722 = vpop.xlane.xlu0 %1721
        %1723 = vadd.xlane.f32.xlu0 %v1513
        %v1724 = vpop.xlane.xlu0 %1723
        %1725 = vadd.xlane.f32.xlu0 %v1514
        %v1726 = vpop.xlane.xlu0 %1725
        %1727 = vadd.xlane.f32.xlu0 %v1515
        %v1728 = vpop.xlane.xlu0 %1727
        %1729 = vadd.xlane.f32.xlu0 %v1516
        %v1730 = vpop.xlane.xlu0 %1729
        %1731 = vadd.xlane.f32.xlu0 %v1517
        %v1732 = vpop.xlane.xlu0 %1731
        %1733 = vadd.xlane.f32.xlu0 %v1518
        %v1734 = vpop.xlane.xlu0 %1733
        %1735 = vadd.xlane.f32.xlu0 %v1519
        %v1736 = vpop.xlane.xlu0 %1735
        %1737 = vadd.xlane.f32.xlu0 %v1520
        %v1738 = vpop.xlane.xlu0 %1737
        %1739 = vadd.xlane.f32.xlu0 %v1521
        %v1740 = vpop.xlane.xlu0 %1739
        %1741 = vadd.xlane.f32.xlu0 %v1522
        %v1742 = vpop.xlane.xlu0 %1741
        %1743 = vadd.xlane.f32.xlu0 %v1523
        %v1744 = vpop.xlane.xlu0 %1743
        %1745 = vadd.xlane.f32.xlu0 %v1524
        %v1746 = vpop.xlane.xlu0 %1745
        %1747 = vadd.xlane.f32.xlu0 %v1525
        %v1748 = vpop.xlane.xlu0 %1747
        %1749 = vadd.xlane.f32.xlu0 %v1526
        %v1750 = vpop.xlane.xlu0 %1749
        %1751 = vadd.xlane.f32.xlu0 %v1527
        %v1752 = vpop.xlane.xlu0 %1751
        %1753 = vadd.xlane.f32.xlu0 %v1528
        %v1754 = vpop.xlane.xlu0 %1753
        %1755 = vadd.xlane.f32.xlu0 %v1529
        %v1756 = vpop.xlane.xlu0 %1755
        %1757 = vadd.xlane.f32.xlu0 %v1530
        %v1758 = vpop.xlane.xlu0 %1757
        %1759 = vadd.xlane.f32.xlu0 %v1531
        %v1760 = vpop.xlane.xlu0 %1759
        %1761 = vadd.xlane.f32.xlu0 %v1532
        %v1762 = vpop.xlane.xlu0 %1761
        %1763 = vadd.xlane.f32.xlu0 %v1533
        %v1764 = vpop.xlane.xlu0 %1763
        %1765 = vadd.xlane.f32.xlu0 %v1534
        %v1766 = vpop.xlane.xlu0 %1765
        %1767 = vadd.xlane.f32.xlu0 %v1535
        %v1768 = vpop.xlane.xlu0 %1767
        %1769 = vadd.xlane.f32.xlu0 %v1536
        %v1770 = vpop.xlane.xlu0 %1769
        %1771 = vadd.xlane.f32.xlu0 %v1537
        %v1772 = vpop.xlane.xlu0 %1771
        %1773 = vadd.xlane.f32.xlu0 %v1538
        %v1774 = vpop.xlane.xlu0 %1773
        %1775 = vadd.xlane.f32.xlu0 %v1539
        %v1776 = vpop.xlane.xlu0 %1775
        %1777 = vadd.xlane.f32.xlu0 %v1540
        %v1778 = vpop.xlane.xlu0 %1777
        %1779 = vadd.xlane.f32.xlu0 %v1541
        %v1780 = vpop.xlane.xlu0 %1779
        %1781 = vadd.xlane.f32.xlu0 %v1542
        %v1782 = vpop.xlane.xlu0 %1781
        %1783 = vadd.xlane.f32.xlu0 %v1543
        %v1784 = vpop.xlane.xlu0 %1783
        %1785 = vadd.xlane.f32.xlu0 %v1544
        %v1786 = vpop.xlane.xlu0 %1785
        %1787 = vadd.xlane.f32.xlu0 %v1545
        %v1788 = vpop.xlane.xlu0 %1787
        %1789 = vadd.xlane.f32.xlu0 %v1546
        %v1790 = vpop.xlane.xlu0 %1789
        %1791 = vadd.xlane.f32.xlu0 %v1547
        %v1792 = vpop.xlane.xlu0 %1791
        %1793 = vadd.xlane.f32.xlu0 %v1548
        %v1794 = vpop.xlane.xlu0 %1793
        %1795 = vadd.xlane.f32.xlu0 %v1549
        %v1796 = vpop.xlane.xlu0 %1795
        %1797 = vadd.xlane.f32.xlu0 %v1550
        %v1798 = vpop.xlane.xlu0 %1797
        %1799 = vadd.xlane.f32.xlu0 %v1551
        %v1800 = vpop.xlane.xlu0 %1799
        %1801 = vadd.xlane.f32.xlu0 %v1552
        %v1802 = vpop.xlane.xlu0 %1801
        %1803 = vadd.xlane.f32.xlu0 %v1553
        %v1804 = vpop.xlane.xlu0 %1803
        %1805 = vadd.xlane.f32.xlu0 %v1554
        %v1806 = vpop.xlane.xlu0 %1805
        %1807 = vadd.xlane.f32.xlu0 %v1555
        %v1808 = vpop.xlane.xlu0 %1807
        %1809 = vadd.xlane.f32.xlu0 %v1556
        %v1810 = vpop.xlane.xlu0 %1809
        %1811 = vadd.xlane.f32.xlu0 %v1557
        %v1812 = vpop.xlane.xlu0 %1811
        %1813 = vadd.xlane.f32.xlu0 %v1558
        %v1814 = vpop.xlane.xlu0 %1813
        %vm1815 = vcmp.eq.f32.partialorder %v1159, %v389
        %vm1816 = vcmp.eq.f32.partialorder %v1159, %v395
        %vm1817 = vcmp.eq.f32.partialorder %v1159, %v401
        %vm1818 = vcmp.eq.f32.partialorder %v1159, %v407
        %vm1819 = vcmp.eq.f32.partialorder %v1159, %v413
        %vm1820 = vcmp.eq.f32.partialorder %v1159, %v419
        %vm1821 = vcmp.eq.f32.partialorder %v1159, %v425
        %vm1822 = vcmp.eq.f32.partialorder %v1159, %v431
        %vm1823 = vcmp.eq.f32.partialorder %v1159, %v437
        %vm1824 = vcmp.eq.f32.partialorder %v1159, %v443
        %vm1825 = vcmp.eq.f32.partialorder %v1159, %v449
        %vm1826 = vcmp.eq.f32.partialorder %v1159, %v455
        %vm1827 = vcmp.eq.f32.partialorder %v1159, %v461
        %vm1828 = vcmp.eq.f32.partialorder %v1159, %v467
        %vm1829 = vcmp.eq.f32.partialorder %v1159, %v473
        %vm1830 = vcmp.eq.f32.partialorder %v1159, %v479
        %vm1831 = vcmp.eq.f32.partialorder %v1160, %v486
        %vm1832 = vcmp.eq.f32.partialorder %v1160, %v492
        %vm1833 = vcmp.eq.f32.partialorder %v1160, %v498
        %vm1834 = vcmp.eq.f32.partialorder %v1160, %v504
        %vm1835 = vcmp.eq.f32.partialorder %v1160, %v510
        %vm1836 = vcmp.eq.f32.partialorder %v1160, %v516
        %vm1837 = vcmp.eq.f32.partialorder %v1160, %v522
        %vm1838 = vcmp.eq.f32.partialorder %v1160, %v528
        %vm1839 = vcmp.eq.f32.partialorder %v1160, %v534
        %vm1840 = vcmp.eq.f32.partialorder %v1160, %v540
        %vm1841 = vcmp.eq.f32.partialorder %v1160, %v546
        %vm1842 = vcmp.eq.f32.partialorder %v1160, %v552
        %vm1843 = vcmp.eq.f32.partialorder %v1160, %v558
        %vm1844 = vcmp.eq.f32.partialorder %v1160, %v564
        %vm1845 = vcmp.eq.f32.partialorder %v1160, %v570
        %vm1846 = vcmp.eq.f32.partialorder %v1160, %v576
        %vm1847 = vcmp.eq.f32.partialorder %v1161, %v583
        %vm1848 = vcmp.eq.f32.partialorder %v1161, %v589
        %vm1849 = vcmp.eq.f32.partialorder %v1161, %v595
        %vm1850 = vcmp.eq.f32.partialorder %v1161, %v601
        %vm1851 = vcmp.eq.f32.partialorder %v1161, %v607
        %vm1852 = vcmp.eq.f32.partialorder %v1161, %v613
        %vm1853 = vcmp.eq.f32.partialorder %v1161, %v619
        %vm1854 = vcmp.eq.f32.partialorder %v1161, %v625
        %vm1855 = vcmp.eq.f32.partialorder %v1161, %v631
        %vm1856 = vcmp.eq.f32.partialorder %v1161, %v637
        %vm1857 = vcmp.eq.f32.partialorder %v1161, %v643
        %vm1858 = vcmp.eq.f32.partialorder %v1161, %v649
        %vm1859 = vcmp.eq.f32.partialorder %v1161, %v655
        %vm1860 = vcmp.eq.f32.partialorder %v1161, %v661
        %vm1861 = vcmp.eq.f32.partialorder %v1161, %v667
        %vm1862 = vcmp.eq.f32.partialorder %v1161, %v673
        %vm1863 = vcmp.eq.f32.partialorder %v1162, %v680
        %vm1864 = vcmp.eq.f32.partialorder %v1162, %v686
        %vm1865 = vcmp.eq.f32.partialorder %v1162, %v692
        %vm1866 = vcmp.eq.f32.partialorder %v1162, %v698
        %vm1867 = vcmp.eq.f32.partialorder %v1162, %v704
        %vm1868 = vcmp.eq.f32.partialorder %v1162, %v710
        %vm1869 = vcmp.eq.f32.partialorder %v1162, %v716
        %vm1870 = vcmp.eq.f32.partialorder %v1162, %v722
        %vm1871 = vcmp.eq.f32.partialorder %v1162, %v728
        %vm1872 = vcmp.eq.f32.partialorder %v1162, %v734
        %vm1873 = vcmp.eq.f32.partialorder %v1162, %v740
        %vm1874 = vcmp.eq.f32.partialorder %v1162, %v746
        %vm1875 = vcmp.eq.f32.partialorder %v1162, %v752
        %vm1876 = vcmp.eq.f32.partialorder %v1162, %v758
        %vm1877 = vcmp.eq.f32.partialorder %v1162, %v764
        %vm1878 = vcmp.eq.f32.partialorder %v1162, %v770
        %vm1879 = vcmp.eq.f32.partialorder %v1163, %v777
        %vm1880 = vcmp.eq.f32.partialorder %v1163, %v783
        %vm1881 = vcmp.eq.f32.partialorder %v1163, %v789
        %vm1882 = vcmp.eq.f32.partialorder %v1163, %v795
        %vm1883 = vcmp.eq.f32.partialorder %v1163, %v801
        %vm1884 = vcmp.eq.f32.partialorder %v1163, %v807
        %vm1885 = vcmp.eq.f32.partialorder %v1163, %v813
        %vm1886 = vcmp.eq.f32.partialorder %v1163, %v819
        %vm1887 = vcmp.eq.f32.partialorder %v1163, %v825
        %vm1888 = vcmp.eq.f32.partialorder %v1163, %v831
        %vm1889 = vcmp.eq.f32.partialorder %v1163, %v837
        %vm1890 = vcmp.eq.f32.partialorder %v1163, %v843
        %vm1891 = vcmp.eq.f32.partialorder %v1163, %v849
        %vm1892 = vcmp.eq.f32.partialorder %v1163, %v855
        %vm1893 = vcmp.eq.f32.partialorder %v1163, %v861
        %vm1894 = vcmp.eq.f32.partialorder %v1163, %v867
        %vm1895 = vcmp.eq.f32.partialorder %v1164, %v874
        %vm1896 = vcmp.eq.f32.partialorder %v1164, %v880
        %vm1897 = vcmp.eq.f32.partialorder %v1164, %v886
        %vm1898 = vcmp.eq.f32.partialorder %v1164, %v892
        %vm1899 = vcmp.eq.f32.partialorder %v1164, %v898
        %vm1900 = vcmp.eq.f32.partialorder %v1164, %v904
        %vm1901 = vcmp.eq.f32.partialorder %v1164, %v910
        %vm1902 = vcmp.eq.f32.partialorder %v1164, %v916
        %vm1903 = vcmp.eq.f32.partialorder %v1164, %v922
        %vm1904 = vcmp.eq.f32.partialorder %v1164, %v928
        %vm1905 = vcmp.eq.f32.partialorder %v1164, %v934
        %vm1906 = vcmp.eq.f32.partialorder %v1164, %v940
        %vm1907 = vcmp.eq.f32.partialorder %v1164, %v946
        %vm1908 = vcmp.eq.f32.partialorder %v1164, %v952
        %vm1909 = vcmp.eq.f32.partialorder %v1164, %v958
        %vm1910 = vcmp.eq.f32.partialorder %v1164, %v964
        %vm1911 = vcmp.eq.f32.partialorder %v1165, %v971
        %vm1912 = vcmp.eq.f32.partialorder %v1165, %v977
        %vm1913 = vcmp.eq.f32.partialorder %v1165, %v983
        %vm1914 = vcmp.eq.f32.partialorder %v1165, %v989
        %vm1915 = vcmp.eq.f32.partialorder %v1165, %v995
        %vm1916 = vcmp.eq.f32.partialorder %v1165, %v1001
        %vm1917 = vcmp.eq.f32.partialorder %v1165, %v1007
        %vm1918 = vcmp.eq.f32.partialorder %v1165, %v1013
        %vm1919 = vcmp.eq.f32.partialorder %v1165, %v1019
        %vm1920 = vcmp.eq.f32.partialorder %v1165, %v1025
        %vm1921 = vcmp.eq.f32.partialorder %v1165, %v1031
        %vm1922 = vcmp.eq.f32.partialorder %v1165, %v1037
        %vm1923 = vcmp.eq.f32.partialorder %v1165, %v1043
        %vm1924 = vcmp.eq.f32.partialorder %v1165, %v1049
        %vm1925 = vcmp.eq.f32.partialorder %v1165, %v1055
        %vm1926 = vcmp.eq.f32.partialorder %v1165, %v1061
        %vm1927 = vcmp.eq.f32.partialorder %v1166, %v1068
        %vm1928 = vcmp.eq.f32.partialorder %v1166, %v1074
        %vm1929 = vcmp.eq.f32.partialorder %v1166, %v1080
        %vm1930 = vcmp.eq.f32.partialorder %v1166, %v1086
        %vm1931 = vcmp.eq.f32.partialorder %v1166, %v1092
        %vm1932 = vcmp.eq.f32.partialorder %v1166, %v1098
        %vm1933 = vcmp.eq.f32.partialorder %v1166, %v1104
        %vm1934 = vcmp.eq.f32.partialorder %v1166, %v1110
        %vm1935 = vcmp.eq.f32.partialorder %v1166, %v1116
        %vm1936 = vcmp.eq.f32.partialorder %v1166, %v1122
        %vm1937 = vcmp.eq.f32.partialorder %v1166, %v1128
        %vm1938 = vcmp.eq.f32.partialorder %v1166, %v1134
        %vm1939 = vcmp.eq.f32.partialorder %v1166, %v1140
        %vm1940 = vcmp.eq.f32.partialorder %v1166, %v1146
        %vm1941 = vcmp.eq.f32.partialorder %v1166, %v1152
        %vm1942 = vcmp.eq.f32.partialorder %v1166, %v1158
        %v1943 = vsel %vm1815, 1, 0
        %v1944 = vsel %vm1816, 1, 0
        %v1945 = vsel %vm1817, 1, 0
        %v1946 = vsel %vm1818, 1, 0
        %v1947 = vsel %vm1819, 1, 0
        %v1948 = vsel %vm1820, 1, 0
        %v1949 = vsel %vm1821, 1, 0
        %v1950 = vsel %vm1822, 1, 0
        %v1951 = vsel %vm1823, 1, 0
        %v1952 = vsel %vm1824, 1, 0
        %v1953 = vsel %vm1825, 1, 0
        %v1954 = vsel %vm1826, 1, 0
        %v1955 = vsel %vm1827, 1, 0
        %v1956 = vsel %vm1828, 1, 0
        %v1957 = vsel %vm1829, 1, 0
        %v1958 = vsel %vm1830, 1, 0
        %v1959 = vsel %vm1831, 1, 0
        %v1960 = vsel %vm1832, 1, 0
        %v1961 = vsel %vm1833, 1, 0
        %v1962 = vsel %vm1834, 1, 0
        %v1963 = vsel %vm1835, 1, 0
        %v1964 = vsel %vm1836, 1, 0
        %v1965 = vsel %vm1837, 1, 0
        %v1966 = vsel %vm1838, 1, 0
        %v1967 = vsel %vm1839, 1, 0
        %v1968 = vsel %vm1840, 1, 0
        %v1969 = vsel %vm1841, 1, 0
        %v1970 = vsel %vm1842, 1, 0
        %v1971 = vsel %vm1843, 1, 0
        %v1972 = vsel %vm1844, 1, 0
        %v1973 = vsel %vm1845, 1, 0
        %v1974 = vsel %vm1846, 1, 0
        %v1975 = vsel %vm1847, 1, 0
        %v1976 = vsel %vm1848, 1, 0
        %v1977 = vsel %vm1849, 1, 0
        %v1978 = vsel %vm1850, 1, 0
        %v1979 = vsel %vm1851, 1, 0
        %v1980 = vsel %vm1852, 1, 0
        %v1981 = vsel %vm1853, 1, 0
        %v1982 = vsel %vm1854, 1, 0
        %v1983 = vsel %vm1855, 1, 0
        %v1984 = vsel %vm1856, 1, 0
        %v1985 = vsel %vm1857, 1, 0
        %v1986 = vsel %vm1858, 1, 0
        %v1987 = vsel %vm1859, 1, 0
        %v1988 = vsel %vm1860, 1, 0
        %v1989 = vsel %vm1861, 1, 0
        %v1990 = vsel %vm1862, 1, 0
        %v1991 = vsel %vm1863, 1, 0
        %v1992 = vsel %vm1864, 1, 0
        %v1993 = vsel %vm1865, 1, 0
        %v1994 = vsel %vm1866, 1, 0
        %v1995 = vsel %vm1867, 1, 0
        %v1996 = vsel %vm1868, 1, 0
        %v1997 = vsel %vm1869, 1, 0
        %v1998 = vsel %vm1870, 1, 0
        %v1999 = vsel %vm1871, 1, 0
        %v2000 = vsel %vm1872, 1, 0
        %v2001 = vsel %vm1873, 1, 0
        %v2002 = vsel %vm1874, 1, 0
        %v2003 = vsel %vm1875, 1, 0
        %v2004 = vsel %vm1876, 1, 0
        %v2005 = vsel %vm1877, 1, 0
        %v2006 = vsel %vm1878, 1, 0
        %v2007 = vsel %vm1879, 1, 0
        %v2008 = vsel %vm1880, 1, 0
        %v2009 = vsel %vm1881, 1, 0
        %v2010 = vsel %vm1882, 1, 0
        %v2011 = vsel %vm1883, 1, 0
        %v2012 = vsel %vm1884, 1, 0
        %v2013 = vsel %vm1885, 1, 0
        %v2014 = vsel %vm1886, 1, 0
        %v2015 = vsel %vm1887, 1, 0
        %v2016 = vsel %vm1888, 1, 0
        %v2017 = vsel %vm1889, 1, 0
        %v2018 = vsel %vm1890, 1, 0
        %v2019 = vsel %vm1891, 1, 0
        %v2020 = vsel %vm1892, 1, 0
        %v2021 = vsel %vm1893, 1, 0
        %v2022 = vsel %vm1894, 1, 0
        %v2023 = vsel %vm1895, 1, 0
        %v2024 = vsel %vm1896, 1, 0
        %v2025 = vsel %vm1897, 1, 0
        %v2026 = vsel %vm1898, 1, 0
        %v2027 = vsel %vm1899, 1, 0
        %v2028 = vsel %vm1900, 1, 0
        %v2029 = vsel %vm1901, 1, 0
        %v2030 = vsel %vm1902, 1, 0
        %v2031 = vsel %vm1903, 1, 0
        %v2032 = vsel %vm1904, 1, 0
        %v2033 = vsel %vm1905, 1, 0
        %v2034 = vsel %vm1906, 1, 0
        %v2035 = vsel %vm1907, 1, 0
        %v2036 = vsel %vm1908, 1, 0
        %v2037 = vsel %vm1909, 1, 0
        %v2038 = vsel %vm1910, 1, 0
        %v2039 = vsel %vm1911, 1, 0
        %v2040 = vsel %vm1912, 1, 0
        %v2041 = vsel %vm1913, 1, 0
        %v2042 = vsel %vm1914, 1, 0
        %v2043 = vsel %vm1915, 1, 0
        %v2044 = vsel %vm1916, 1, 0
        %v2045 = vsel %vm1917, 1, 0
        %v2046 = vsel %vm1918, 1, 0
        %v2047 = vsel %vm1919, 1, 0
        %v2048 = vsel %vm1920, 1, 0
        %v2049 = vsel %vm1921, 1, 0
        %v2050 = vsel %vm1922, 1, 0
        %v2051 = vsel %vm1923, 1, 0
        %v2052 = vsel %vm1924, 1, 0
        %v2053 = vsel %vm1925, 1, 0
        %v2054 = vsel %vm1926, 1, 0
        %v2055 = vsel %vm1927, 1, 0
        %v2056 = vsel %vm1928, 1, 0
        %v2057 = vsel %vm1929, 1, 0
        %v2058 = vsel %vm1930, 1, 0
        %v2059 = vsel %vm1931, 1, 0
        %v2060 = vsel %vm1932, 1, 0
        %v2061 = vsel %vm1933, 1, 0
        %v2062 = vsel %vm1934, 1, 0
        %v2063 = vsel %vm1935, 1, 0
        %v2064 = vsel %vm1936, 1, 0
        %v2065 = vsel %vm1937, 1, 0
        %v2066 = vsel %vm1938, 1, 0
        %v2067 = vsel %vm1939, 1, 0
        %v2068 = vsel %vm1940, 1, 0
        %v2069 = vsel %vm1941, 1, 0
        %v2070 = vsel %vm1942, 1, 0
        %v2071 = vcvt.s32.f32 %v1943
        %v2072 = vcvt.s32.f32 %v1944
        %v2073 = vcvt.s32.f32 %v1945
        %v2074 = vcvt.s32.f32 %v1946
        %v2075 = vcvt.s32.f32 %v1947
        %v2076 = vcvt.s32.f32 %v1948
        %v2077 = vcvt.s32.f32 %v1949
        %v2078 = vcvt.s32.f32 %v1950
        %v2079 = vcvt.s32.f32 %v1951
        %v2080 = vcvt.s32.f32 %v1952
        %v2081 = vcvt.s32.f32 %v1953
        %v2082 = vcvt.s32.f32 %v1954
        %v2083 = vcvt.s32.f32 %v1955
        %v2084 = vcvt.s32.f32 %v1956
        %v2085 = vcvt.s32.f32 %v1957
        %v2086 = vcvt.s32.f32 %v1958
        %v2087 = vcvt.s32.f32 %v1959
        %v2088 = vcvt.s32.f32 %v1960
        %v2089 = vcvt.s32.f32 %v1961
        %v2090 = vcvt.s32.f32 %v1962
        %v2091 = vcvt.s32.f32 %v1963
        %v2092 = vcvt.s32.f32 %v1964
        %v2093 = vcvt.s32.f32 %v1965
        %v2094 = vcvt.s32.f32 %v1966
        %v2095 = vcvt.s32.f32 %v1967
        %v2096 = vcvt.s32.f32 %v1968
        %v2097 = vcvt.s32.f32 %v1969
        %v2098 = vcvt.s32.f32 %v1970
        %v2099 = vcvt.s32.f32 %v1971
        %v2100 = vcvt.s32.f32 %v1972
        %v2101 = vcvt.s32.f32 %v1973
        %v2102 = vcvt.s32.f32 %v1974
        %v2103 = vcvt.s32.f32 %v1975
        %v2104 = vcvt.s32.f32 %v1976
        %v2105 = vcvt.s32.f32 %v1977
        %v2106 = vcvt.s32.f32 %v1978
        %v2107 = vcvt.s32.f32 %v1979
        %v2108 = vcvt.s32.f32 %v1980
        %v2109 = vcvt.s32.f32 %v1981
        %v2110 = vcvt.s32.f32 %v1982
        %v2111 = vcvt.s32.f32 %v1983
        %v2112 = vcvt.s32.f32 %v1984
        %v2113 = vcvt.s32.f32 %v1985
        %v2114 = vcvt.s32.f32 %v1986
        %v2115 = vcvt.s32.f32 %v1987
        %v2116 = vcvt.s32.f32 %v1988
        %v2117 = vcvt.s32.f32 %v1989
        %v2118 = vcvt.s32.f32 %v1990
        %v2119 = vcvt.s32.f32 %v1991
        %v2120 = vcvt.s32.f32 %v1992
        %v2121 = vcvt.s32.f32 %v1993
        %v2122 = vcvt.s32.f32 %v1994
        %v2123 = vcvt.s32.f32 %v1995
        %v2124 = vcvt.s32.f32 %v1996
        %v2125 = vcvt.s32.f32 %v1997
        %v2126 = vcvt.s32.f32 %v1998
        %v2127 = vcvt.s32.f32 %v1999
        %v2128 = vcvt.s32.f32 %v2000
        %v2129 = vcvt.s32.f32 %v2001
        %v2130 = vcvt.s32.f32 %v2002
        %v2131 = vcvt.s32.f32 %v2003
        %v2132 = vcvt.s32.f32 %v2004
        %v2133 = vcvt.s32.f32 %v2005
        %v2134 = vcvt.s32.f32 %v2006
        %v2135 = vcvt.s32.f32 %v2007
        %v2136 = vcvt.s32.f32 %v2008
        %v2137 = vcvt.s32.f32 %v2009
        %v2138 = vcvt.s32.f32 %v2010
        %v2139 = vcvt.s32.f32 %v2011
        %v2140 = vcvt.s32.f32 %v2012
        %v2141 = vcvt.s32.f32 %v2013
        %v2142 = vcvt.s32.f32 %v2014
        %v2143 = vcvt.s32.f32 %v2015
        %v2144 = vcvt.s32.f32 %v2016
        %v2145 = vcvt.s32.f32 %v2017
        %v2146 = vcvt.s32.f32 %v2018
        %v2147 = vcvt.s32.f32 %v2019
        %v2148 = vcvt.s32.f32 %v2020
        %v2149 = vcvt.s32.f32 %v2021
        %v2150 = vcvt.s32.f32 %v2022
        %v2151 = vcvt.s32.f32 %v2023
        %v2152 = vcvt.s32.f32 %v2024
        %v2153 = vcvt.s32.f32 %v2025
        %v2154 = vcvt.s32.f32 %v2026
        %v2155 = vcvt.s32.f32 %v2027
        %v2156 = vcvt.s32.f32 %v2028
        %v2157 = vcvt.s32.f32 %v2029
        %v2158 = vcvt.s32.f32 %v2030
        %v2159 = vcvt.s32.f32 %v2031
        %v2160 = vcvt.s32.f32 %v2032
        %v2161 = vcvt.s32.f32 %v2033
        %v2162 = vcvt.s32.f32 %v2034
        %v2163 = vcvt.s32.f32 %v2035
        %v2164 = vcvt.s32.f32 %v2036
        %v2165 = vcvt.s32.f32 %v2037
        %v2166 = vcvt.s32.f32 %v2038
        %v2167 = vcvt.s32.f32 %v2039
        %v2168 = vcvt.s32.f32 %v2040
        %v2169 = vcvt.s32.f32 %v2041
        %v2170 = vcvt.s32.f32 %v2042
        %v2171 = vcvt.s32.f32 %v2043
        %v2172 = vcvt.s32.f32 %v2044
        %v2173 = vcvt.s32.f32 %v2045
        %v2174 = vcvt.s32.f32 %v2046
        %v2175 = vcvt.s32.f32 %v2047
        %v2176 = vcvt.s32.f32 %v2048
        %v2177 = vcvt.s32.f32 %v2049
        %v2178 = vcvt.s32.f32 %v2050
        %v2179 = vcvt.s32.f32 %v2051
        %v2180 = vcvt.s32.f32 %v2052
        %v2181 = vcvt.s32.f32 %v2053
        %v2182 = vcvt.s32.f32 %v2054
        %v2183 = vcvt.s32.f32 %v2055
        %v2184 = vcvt.s32.f32 %v2056
        %v2185 = vcvt.s32.f32 %v2057
        %v2186 = vcvt.s32.f32 %v2058
        %v2187 = vcvt.s32.f32 %v2059
        %v2188 = vcvt.s32.f32 %v2060
        %v2189 = vcvt.s32.f32 %v2061
        %v2190 = vcvt.s32.f32 %v2062
        %v2191 = vcvt.s32.f32 %v2063
        %v2192 = vcvt.s32.f32 %v2064
        %v2193 = vcvt.s32.f32 %v2065
        %v2194 = vcvt.s32.f32 %v2066
        %v2195 = vcvt.s32.f32 %v2067
        %v2196 = vcvt.s32.f32 %v2068
        %v2197 = vcvt.s32.f32 %v2069
        %v2198 = vcvt.s32.f32 %v2070
        %2199 = vadd.xlane.f32.xlu0 %v2071
        %v2200 = vpop.xlane.xlu0 %2199
        %2201 = vadd.xlane.f32.xlu0 %v2072
        %v2202 = vpop.xlane.xlu0 %2201
        %2203 = vadd.xlane.f32.xlu0 %v2073
        %v2204 = vpop.xlane.xlu0 %2203
        %2205 = vadd.xlane.f32.xlu0 %v2074
        %v2206 = vpop.xlane.xlu0 %2205
        %2207 = vadd.xlane.f32.xlu0 %v2075
        %v2208 = vpop.xlane.xlu0 %2207
        %2209 = vadd.xlane.f32.xlu0 %v2076
        %v2210 = vpop.xlane.xlu0 %2209
        %2211 = vadd.xlane.f32.xlu0 %v2077
        %v2212 = vpop.xlane.xlu0 %2211
        %2213 = vadd.xlane.f32.xlu0 %v2078
        %v2214 = vpop.xlane.xlu0 %2213
        %2215 = vadd.xlane.f32.xlu0 %v2079
        %v2216 = vpop.xlane.xlu0 %2215
        %2217 = vadd.xlane.f32.xlu0 %v2080
        %v2218 = vpop.xlane.xlu0 %2217
        %2219 = vadd.xlane.f32.xlu0 %v2081
        %v2220 = vpop.xlane.xlu0 %2219
        %2221 = vadd.xlane.f32.xlu0 %v2082
        %v2222 = vpop.xlane.xlu0 %2221
        %2223 = vadd.xlane.f32.xlu0 %v2083
        %v2224 = vpop.xlane.xlu0 %2223
        %2225 = vadd.xlane.f32.xlu0 %v2084
        %v2226 = vpop.xlane.xlu0 %2225
        %2227 = vadd.xlane.f32.xlu0 %v2085
        %v2228 = vpop.xlane.xlu0 %2227
        %2229 = vadd.xlane.f32.xlu0 %v2086
        %v2230 = vpop.xlane.xlu0 %2229
        %2231 = vadd.xlane.f32.xlu0 %v2087
        %v2232 = vpop.xlane.xlu0 %2231
        %2233 = vadd.xlane.f32.xlu0 %v2088
        %v2234 = vpop.xlane.xlu0 %2233
        %2235 = vadd.xlane.f32.xlu0 %v2089
        %v2236 = vpop.xlane.xlu0 %2235
        %2237 = vadd.xlane.f32.xlu0 %v2090
        %v2238 = vpop.xlane.xlu0 %2237
        %2239 = vadd.xlane.f32.xlu0 %v2091
        %v2240 = vpop.xlane.xlu0 %2239
        %2241 = vadd.xlane.f32.xlu0 %v2092
        %v2242 = vpop.xlane.xlu0 %2241
        %2243 = vadd.xlane.f32.xlu0 %v2093
        %v2244 = vpop.xlane.xlu0 %2243
        %2245 = vadd.xlane.f32.xlu0 %v2094
        %v2246 = vpop.xlane.xlu0 %2245
        %2247 = vadd.xlane.f32.xlu0 %v2095
        %v2248 = vpop.xlane.xlu0 %2247
        %2249 = vadd.xlane.f32.xlu0 %v2096
        %v2250 = vpop.xlane.xlu0 %2249
        %2251 = vadd.xlane.f32.xlu0 %v2097
        %v2252 = vpop.xlane.xlu0 %2251
        %2253 = vadd.xlane.f32.xlu0 %v2098
        %v2254 = vpop.xlane.xlu0 %2253
        %2255 = vadd.xlane.f32.xlu0 %v2099
        %v2256 = vpop.xlane.xlu0 %2255
        %2257 = vadd.xlane.f32.xlu0 %v2100
        %v2258 = vpop.xlane.xlu0 %2257
        %2259 = vadd.xlane.f32.xlu0 %v2101
        %v2260 = vpop.xlane.xlu0 %2259
        %2261 = vadd.xlane.f32.xlu0 %v2102
        %v2262 = vpop.xlane.xlu0 %2261
        %2263 = vadd.xlane.f32.xlu0 %v2103
        %v2264 = vpop.xlane.xlu0 %2263
        %2265 = vadd.xlane.f32.xlu0 %v2104
        %v2266 = vpop.xlane.xlu0 %2265
        %2267 = vadd.xlane.f32.xlu0 %v2105
        %v2268 = vpop.xlane.xlu0 %2267
        %2269 = vadd.xlane.f32.xlu0 %v2106
        %v2270 = vpop.xlane.xlu0 %2269
        %2271 = vadd.xlane.f32.xlu0 %v2107
        %v2272 = vpop.xlane.xlu0 %2271
        %2273 = vadd.xlane.f32.xlu0 %v2108
        %v2274 = vpop.xlane.xlu0 %2273
        %2275 = vadd.xlane.f32.xlu0 %v2109
        %v2276 = vpop.xlane.xlu0 %2275
        %2277 = vadd.xlane.f32.xlu0 %v2110
        %v2278 = vpop.xlane.xlu0 %2277
        %2279 = vadd.xlane.f32.xlu0 %v2111
        %v2280 = vpop.xlane.xlu0 %2279
        %2281 = vadd.xlane.f32.xlu0 %v2112
        %v2282 = vpop.xlane.xlu0 %2281
        %2283 = vadd.xlane.f32.xlu0 %v2113
        %v2284 = vpop.xlane.xlu0 %2283
        %2285 = vadd.xlane.f32.xlu0 %v2114
        %v2286 = vpop.xlane.xlu0 %2285
        %2287 = vadd.xlane.f32.xlu0 %v2115
        %v2288 = vpop.xlane.xlu0 %2287
        %2289 = vadd.xlane.f32.xlu0 %v2116
        %v2290 = vpop.xlane.xlu0 %2289
        %2291 = vadd.xlane.f32.xlu0 %v2117
        %v2292 = vpop.xlane.xlu0 %2291
        %2293 = vadd.xlane.f32.xlu0 %v2118
        %v2294 = vpop.xlane.xlu0 %2293
        %2295 = vadd.xlane.f32.xlu0 %v2119
        %v2296 = vpop.xlane.xlu0 %2295
        %2297 = vadd.xlane.f32.xlu0 %v2120
        %v2298 = vpop.xlane.xlu0 %2297
        %2299 = vadd.xlane.f32.xlu0 %v2121
        %v2300 = vpop.xlane.xlu0 %2299
        %2301 = vadd.xlane.f32.xlu0 %v2122
        %v2302 = vpop.xlane.xlu0 %2301
        %2303 = vadd.xlane.f32.xlu0 %v2123
        %v2304 = vpop.xlane.xlu0 %2303
        %2305 = vadd.xlane.f32.xlu0 %v2124
        %v2306 = vpop.xlane.xlu0 %2305
        %2307 = vadd.xlane.f32.xlu0 %v2125
        %v2308 = vpop.xlane.xlu0 %2307
        %2309 = vadd.xlane.f32.xlu0 %v2126
        %v2310 = vpop.xlane.xlu0 %2309
        %2311 = vadd.xlane.f32.xlu0 %v2127
        %v2312 = vpop.xlane.xlu0 %2311
        %2313 = vadd.xlane.f32.xlu0 %v2128
        %v2314 = vpop.xlane.xlu0 %2313
        %2315 = vadd.xlane.f32.xlu0 %v2129
        %v2316 = vpop.xlane.xlu0 %2315
        %2317 = vadd.xlane.f32.xlu0 %v2130
        %v2318 = vpop.xlane.xlu0 %2317
        %2319 = vadd.xlane.f32.xlu0 %v2131
        %v2320 = vpop.xlane.xlu0 %2319
        %2321 = vadd.xlane.f32.xlu0 %v2132
        %v2322 = vpop.xlane.xlu0 %2321
        %2323 = vadd.xlane.f32.xlu0 %v2133
        %v2324 = vpop.xlane.xlu0 %2323
        %2325 = vadd.xlane.f32.xlu0 %v2134
        %v2326 = vpop.xlane.xlu0 %2325
        %2327 = vadd.xlane.f32.xlu0 %v2135
        %v2328 = vpop.xlane.xlu0 %2327
        %2329 = vadd.xlane.f32.xlu0 %v2136
        %v2330 = vpop.xlane.xlu0 %2329
        %2331 = vadd.xlane.f32.xlu0 %v2137
        %v2332 = vpop.xlane.xlu0 %2331
        %2333 = vadd.xlane.f32.xlu0 %v2138
        %v2334 = vpop.xlane.xlu0 %2333
        %2335 = vadd.xlane.f32.xlu0 %v2139
        %v2336 = vpop.xlane.xlu0 %2335
        %2337 = vadd.xlane.f32.xlu0 %v2140
        %v2338 = vpop.xlane.xlu0 %2337
        %2339 = vadd.xlane.f32.xlu0 %v2141
        %v2340 = vpop.xlane.xlu0 %2339
        %2341 = vadd.xlane.f32.xlu0 %v2142
        %v2342 = vpop.xlane.xlu0 %2341
        %2343 = vadd.xlane.f32.xlu0 %v2143
        %v2344 = vpop.xlane.xlu0 %2343
        %2345 = vadd.xlane.f32.xlu0 %v2144
        %v2346 = vpop.xlane.xlu0 %2345
        %2347 = vadd.xlane.f32.xlu0 %v2145
        %v2348 = vpop.xlane.xlu0 %2347
        %2349 = vadd.xlane.f32.xlu0 %v2146
        %v2350 = vpop.xlane.xlu0 %2349
        %2351 = vadd.xlane.f32.xlu0 %v2147
        %v2352 = vpop.xlane.xlu0 %2351
        %2353 = vadd.xlane.f32.xlu0 %v2148
        %v2354 = vpop.xlane.xlu0 %2353
        %2355 = vadd.xlane.f32.xlu0 %v2149
        %v2356 = vpop.xlane.xlu0 %2355
        %2357 = vadd.xlane.f32.xlu0 %v2150
        %v2358 = vpop.xlane.xlu0 %2357
        %2359 = vadd.xlane.f32.xlu0 %v2151
        %v2360 = vpop.xlane.xlu0 %2359
        %2361 = vadd.xlane.f32.xlu0 %v2152
        %v2362 = vpop.xlane.xlu0 %2361
        %2363 = vadd.xlane.f32.xlu0 %v2153
        %v2364 = vpop.xlane.xlu0 %2363
        %2365 = vadd.xlane.f32.xlu0 %v2154
        %v2366 = vpop.xlane.xlu0 %2365
        %2367 = vadd.xlane.f32.xlu0 %v2155
        %v2368 = vpop.xlane.xlu0 %2367
        %2369 = vadd.xlane.f32.xlu0 %v2156
        %v2370 = vpop.xlane.xlu0 %2369
        %2371 = vadd.xlane.f32.xlu0 %v2157
        %v2372 = vpop.xlane.xlu0 %2371
        %2373 = vadd.xlane.f32.xlu0 %v2158
        %v2374 = vpop.xlane.xlu0 %2373
        %2375 = vadd.xlane.f32.xlu0 %v2159
        %v2376 = vpop.xlane.xlu0 %2375
        %2377 = vadd.xlane.f32.xlu0 %v2160
        %v2378 = vpop.xlane.xlu0 %2377
        %2379 = vadd.xlane.f32.xlu0 %v2161
        %v2380 = vpop.xlane.xlu0 %2379
        %2381 = vadd.xlane.f32.xlu0 %v2162
        %v2382 = vpop.xlane.xlu0 %2381
        %2383 = vadd.xlane.f32.xlu0 %v2163
        %v2384 = vpop.xlane.xlu0 %2383
        %2385 = vadd.xlane.f32.xlu0 %v2164
        %v2386 = vpop.xlane.xlu0 %2385
        %2387 = vadd.xlane.f32.xlu0 %v2165
        %v2388 = vpop.xlane.xlu0 %2387
        %2389 = vadd.xlane.f32.xlu0 %v2166
        %v2390 = vpop.xlane.xlu0 %2389
        %2391 = vadd.xlane.f32.xlu0 %v2167
        %v2392 = vpop.xlane.xlu0 %2391
        %2393 = vadd.xlane.f32.xlu0 %v2168
        %v2394 = vpop.xlane.xlu0 %2393
        %2395 = vadd.xlane.f32.xlu0 %v2169
        %v2396 = vpop.xlane.xlu0 %2395
        %2397 = vadd.xlane.f32.xlu0 %v2170
        %v2398 = vpop.xlane.xlu0 %2397
        %2399 = vadd.xlane.f32.xlu0 %v2171
        %v2400 = vpop.xlane.xlu0 %2399
        %2401 = vadd.xlane.f32.xlu0 %v2172
        %v2402 = vpop.xlane.xlu0 %2401
        %2403 = vadd.xlane.f32.xlu0 %v2173
        %v2404 = vpop.xlane.xlu0 %2403
        %2405 = vadd.xlane.f32.xlu0 %v2174
        %v2406 = vpop.xlane.xlu0 %2405
        %2407 = vadd.xlane.f32.xlu0 %v2175
        %v2408 = vpop.xlane.xlu0 %2407
        %2409 = vadd.xlane.f32.xlu0 %v2176
        %v2410 = vpop.xlane.xlu0 %2409
        %2411 = vadd.xlane.f32.xlu0 %v2177
        %v2412 = vpop.xlane.xlu0 %2411
        %2413 = vadd.xlane.f32.xlu0 %v2178
        %v2414 = vpop.xlane.xlu0 %2413
        %2415 = vadd.xlane.f32.xlu0 %v2179
        %v2416 = vpop.xlane.xlu0 %2415
        %2417 = vadd.xlane.f32.xlu0 %v2180
        %v2418 = vpop.xlane.xlu0 %2417
        %2419 = vadd.xlane.f32.xlu0 %v2181
        %v2420 = vpop.xlane.xlu0 %2419
        %2421 = vadd.xlane.f32.xlu0 %v2182
        %v2422 = vpop.xlane.xlu0 %2421
        %2423 = vadd.xlane.f32.xlu0 %v2183
        %v2424 = vpop.xlane.xlu0 %2423
        %2425 = vadd.xlane.f32.xlu0 %v2184
        %v2426 = vpop.xlane.xlu0 %2425
        %2427 = vadd.xlane.f32.xlu0 %v2185
        %v2428 = vpop.xlane.xlu0 %2427
        %2429 = vadd.xlane.f32.xlu0 %v2186
        %v2430 = vpop.xlane.xlu0 %2429
        %2431 = vadd.xlane.f32.xlu0 %v2187
        %v2432 = vpop.xlane.xlu0 %2431
        %2433 = vadd.xlane.f32.xlu0 %v2188
        %v2434 = vpop.xlane.xlu0 %2433
        %2435 = vadd.xlane.f32.xlu0 %v2189
        %v2436 = vpop.xlane.xlu0 %2435
        %2437 = vadd.xlane.f32.xlu0 %v2190
        %v2438 = vpop.xlane.xlu0 %2437
        %2439 = vadd.xlane.f32.xlu0 %v2191
        %v2440 = vpop.xlane.xlu0 %2439
        %2441 = vadd.xlane.f32.xlu0 %v2192
        %v2442 = vpop.xlane.xlu0 %2441
        %2443 = vadd.xlane.f32.xlu0 %v2193
        %v2444 = vpop.xlane.xlu0 %2443
        %2445 = vadd.xlane.f32.xlu0 %v2194
        %v2446 = vpop.xlane.xlu0 %2445
        %2447 = vadd.xlane.f32.xlu0 %v2195
        %v2448 = vpop.xlane.xlu0 %2447
        %2449 = vadd.xlane.f32.xlu0 %v2196
        %v2450 = vpop.xlane.xlu0 %2449
        %2451 = vadd.xlane.f32.xlu0 %v2197
        %v2452 = vpop.xlane.xlu0 %2451
        %2453 = vadd.xlane.f32.xlu0 %v2198
        %v2454 = vpop.xlane.xlu0 %2453
        %v2455 = vmax.f32 %v2200, 1.0
        %v2456 = vmax.f32 %v2202, 1.0
        %v2457 = vmax.f32 %v2204, 1.0
        %v2458 = vmax.f32 %v2206, 1.0
        %v2459 = vmax.f32 %v2208, 1.0
        %v2460 = vmax.f32 %v2210, 1.0
        %v2461 = vmax.f32 %v2212, 1.0
        %v2462 = vmax.f32 %v2214, 1.0
        %v2463 = vmax.f32 %v2216, 1.0
        %v2464 = vmax.f32 %v2218, 1.0
        %v2465 = vmax.f32 %v2220, 1.0
        %v2466 = vmax.f32 %v2222, 1.0
        %v2467 = vmax.f32 %v2224, 1.0
        %v2468 = vmax.f32 %v2226, 1.0
        %v2469 = vmax.f32 %v2228, 1.0
        %v2470 = vmax.f32 %v2230, 1.0
        %v2471 = vmax.f32 %v2232, 1.0
        %v2472 = vmax.f32 %v2234, 1.0
        %v2473 = vmax.f32 %v2236, 1.0
        %v2474 = vmax.f32 %v2238, 1.0
        %v2475 = vmax.f32 %v2240, 1.0
        %v2476 = vmax.f32 %v2242, 1.0
        %v2477 = vmax.f32 %v2244, 1.0
        %v2478 = vmax.f32 %v2246, 1.0
        %v2479 = vmax.f32 %v2248, 1.0
        %v2480 = vmax.f32 %v2250, 1.0
        %v2481 = vmax.f32 %v2252, 1.0
        %v2482 = vmax.f32 %v2254, 1.0
        %v2483 = vmax.f32 %v2256, 1.0
        %v2484 = vmax.f32 %v2258, 1.0
        %v2485 = vmax.f32 %v2260, 1.0
        %v2486 = vmax.f32 %v2262, 1.0
        %v2487 = vmax.f32 %v2264, 1.0
        %v2488 = vmax.f32 %v2266, 1.0
        %v2489 = vmax.f32 %v2268, 1.0
        %v2490 = vmax.f32 %v2270, 1.0
        %v2491 = vmax.f32 %v2272, 1.0
        %v2492 = vmax.f32 %v2274, 1.0
        %v2493 = vmax.f32 %v2276, 1.0
        %v2494 = vmax.f32 %v2278, 1.0
        %v2495 = vmax.f32 %v2280, 1.0
        %v2496 = vmax.f32 %v2282, 1.0
        %v2497 = vmax.f32 %v2284, 1.0
        %v2498 = vmax.f32 %v2286, 1.0
        %v2499 = vmax.f32 %v2288, 1.0
        %v2500 = vmax.f32 %v2290, 1.0
        %v2501 = vmax.f32 %v2292, 1.0
        %v2502 = vmax.f32 %v2294, 1.0
        %v2503 = vmax.f32 %v2296, 1.0
        %v2504 = vmax.f32 %v2298, 1.0
        %v2505 = vmax.f32 %v2300, 1.0
        %v2506 = vmax.f32 %v2302, 1.0
        %v2507 = vmax.f32 %v2304, 1.0
        %v2508 = vmax.f32 %v2306, 1.0
        %v2509 = vmax.f32 %v2308, 1.0
        %v2510 = vmax.f32 %v2310, 1.0
        %v2511 = vmax.f32 %v2312, 1.0
        %v2512 = vmax.f32 %v2314, 1.0
        %v2513 = vmax.f32 %v2316, 1.0
        %v2514 = vmax.f32 %v2318, 1.0
        %v2515 = vmax.f32 %v2320, 1.0
        %v2516 = vmax.f32 %v2322, 1.0
        %v2517 = vmax.f32 %v2324, 1.0
        %v2518 = vmax.f32 %v2326, 1.0
        %v2519 = vmax.f32 %v2328, 1.0
        %v2520 = vmax.f32 %v2330, 1.0
        %v2521 = vmax.f32 %v2332, 1.0
        %v2522 = vmax.f32 %v2334, 1.0
        %v2523 = vmax.f32 %v2336, 1.0
        %v2524 = vmax.f32 %v2338, 1.0
        %v2525 = vmax.f32 %v2340, 1.0
        %v2526 = vmax.f32 %v2342, 1.0
        %v2527 = vmax.f32 %v2344, 1.0
        %v2528 = vmax.f32 %v2346, 1.0
        %v2529 = vmax.f32 %v2348, 1.0
        %v2530 = vmax.f32 %v2350, 1.0
        %v2531 = vmax.f32 %v2352, 1.0
        %v2532 = vmax.f32 %v2354, 1.0
        %v2533 = vmax.f32 %v2356, 1.0
        %v2534 = vmax.f32 %v2358, 1.0
        %v2535 = vmax.f32 %v2360, 1.0
        %v2536 = vmax.f32 %v2362, 1.0
        %v2537 = vmax.f32 %v2364, 1.0
        %v2538 = vmax.f32 %v2366, 1.0
        %v2539 = vmax.f32 %v2368, 1.0
        %v2540 = vmax.f32 %v2370, 1.0
        %v2541 = vmax.f32 %v2372, 1.0
        %v2542 = vmax.f32 %v2374, 1.0
        %v2543 = vmax.f32 %v2376, 1.0
        %v2544 = vmax.f32 %v2378, 1.0
        %v2545 = vmax.f32 %v2380, 1.0
        %v2546 = vmax.f32 %v2382, 1.0
        %v2547 = vmax.f32 %v2384, 1.0
        %v2548 = vmax.f32 %v2386, 1.0
        %v2549 = vmax.f32 %v2388, 1.0
        %v2550 = vmax.f32 %v2390, 1.0
        %v2551 = vmax.f32 %v2392, 1.0
        %v2552 = vmax.f32 %v2394, 1.0
        %v2553 = vmax.f32 %v2396, 1.0
        %v2554 = vmax.f32 %v2398, 1.0
        %v2555 = vmax.f32 %v2400, 1.0
        %v2556 = vmax.f32 %v2402, 1.0
        %v2557 = vmax.f32 %v2404, 1.0
        %v2558 = vmax.f32 %v2406, 1.0
        %v2559 = vmax.f32 %v2408, 1.0
        %v2560 = vmax.f32 %v2410, 1.0
        %v2561 = vmax.f32 %v2412, 1.0
        %v2562 = vmax.f32 %v2414, 1.0
        %v2563 = vmax.f32 %v2416, 1.0
        %v2564 = vmax.f32 %v2418, 1.0
        %v2565 = vmax.f32 %v2420, 1.0
        %v2566 = vmax.f32 %v2422, 1.0
        %v2567 = vmax.f32 %v2424, 1.0
        %v2568 = vmax.f32 %v2426, 1.0
        %v2569 = vmax.f32 %v2428, 1.0
        %v2570 = vmax.f32 %v2430, 1.0
        %v2571 = vmax.f32 %v2432, 1.0
        %v2572 = vmax.f32 %v2434, 1.0
        %v2573 = vmax.f32 %v2436, 1.0
        %v2574 = vmax.f32 %v2438, 1.0
        %v2575 = vmax.f32 %v2440, 1.0
        %v2576 = vmax.f32 %v2442, 1.0
        %v2577 = vmax.f32 %v2444, 1.0
        %v2578 = vmax.f32 %v2446, 1.0
        %v2579 = vmax.f32 %v2448, 1.0
        %v2580 = vmax.f32 %v2450, 1.0
        %v2581 = vmax.f32 %v2452, 1.0
        %v2582 = vmax.f32 %v2454, 1.0
        %v2583 = vsub.f32 1.0, %v1560
        %v2584 = vsub.f32 1.0, %v1562
        %v2585 = vsub.f32 1.0, %v1564
        %v2586 = vsub.f32 1.0, %v1566
        %v2587 = vsub.f32 1.0, %v1568
        %v2588 = vsub.f32 1.0, %v1570
        %v2589 = vsub.f32 1.0, %v1572
        %v2590 = vsub.f32 1.0, %v1574
        %v2591 = vsub.f32 1.0, %v1576
        %v2592 = vsub.f32 1.0, %v1578
        %v2593 = vsub.f32 1.0, %v1580
        %v2594 = vsub.f32 1.0, %v1582
        %v2595 = vsub.f32 1.0, %v1584
        %v2596 = vsub.f32 1.0, %v1586
        %v2597 = vsub.f32 1.0, %v1588
        %v2598 = vsub.f32 1.0, %v1590
        %v2599 = vsub.f32 1.0, %v1592
        %v2600 = vsub.f32 1.0, %v1594
        %v2601 = vsub.f32 1.0, %v1596
        %v2602 = vsub.f32 1.0, %v1598
        %v2603 = vsub.f32 1.0, %v1600
        %v2604 = vsub.f32 1.0, %v1602
        %v2605 = vsub.f32 1.0, %v1604
        %v2606 = vsub.f32 1.0, %v1606
        %v2607 = vsub.f32 1.0, %v1608
        %v2608 = vsub.f32 1.0, %v1610
        %v2609 = vsub.f32 1.0, %v1612
        %v2610 = vsub.f32 1.0, %v1614
        %v2611 = vsub.f32 1.0, %v1616
        %v2612 = vsub.f32 1.0, %v1618
        %v2613 = vsub.f32 1.0, %v1620
        %v2614 = vsub.f32 1.0, %v1622
        %v2615 = vsub.f32 1.0, %v1624
        %v2616 = vsub.f32 1.0, %v1626
        %v2617 = vsub.f32 1.0, %v1628
        %v2618 = vsub.f32 1.0, %v1630
        %v2619 = vsub.f32 1.0, %v1632
        %v2620 = vsub.f32 1.0, %v1634
        %v2621 = vsub.f32 1.0, %v1636
        %v2622 = vsub.f32 1.0, %v1638
        %v2623 = vsub.f32 1.0, %v1640
        %v2624 = vsub.f32 1.0, %v1642
        %v2625 = vsub.f32 1.0, %v1644
        %v2626 = vsub.f32 1.0, %v1646
        %v2627 = vsub.f32 1.0, %v1648
        %v2628 = vsub.f32 1.0, %v1650
        %v2629 = vsub.f32 1.0, %v1652
        %v2630 = vsub.f32 1.0, %v1654
        %v2631 = vsub.f32 1.0, %v1656
        %v2632 = vsub.f32 1.0, %v1658
        %v2633 = vsub.f32 1.0, %v1660
        %v2634 = vsub.f32 1.0, %v1662
        %v2635 = vsub.f32 1.0, %v1664
        %v2636 = vsub.f32 1.0, %v1666
        %v2637 = vsub.f32 1.0, %v1668
        %v2638 = vsub.f32 1.0, %v1670
        %v2639 = vsub.f32 1.0, %v1672
        %v2640 = vsub.f32 1.0, %v1674
        %v2641 = vsub.f32 1.0, %v1676
        %v2642 = vsub.f32 1.0, %v1678
        %v2643 = vsub.f32 1.0, %v1680
        %v2644 = vsub.f32 1.0, %v1682
        %v2645 = vsub.f32 1.0, %v1684
        %v2646 = vsub.f32 1.0, %v1686
        %v2647 = vsub.f32 1.0, %v1688
        %v2648 = vsub.f32 1.0, %v1690
        %v2649 = vsub.f32 1.0, %v1692
        %v2650 = vsub.f32 1.0, %v1694
        %v2651 = vsub.f32 1.0, %v1696
        %v2652 = vsub.f32 1.0, %v1698
        %v2653 = vsub.f32 1.0, %v1700
        %v2654 = vsub.f32 1.0, %v1702
        %v2655 = vsub.f32 1.0, %v1704
        %v2656 = vsub.f32 1.0, %v1706
        %v2657 = vsub.f32 1.0, %v1708
        %v2658 = vsub.f32 1.0, %v1710
        %v2659 = vsub.f32 1.0, %v1712
        %v2660 = vsub.f32 1.0, %v1714
        %v2661 = vsub.f32 1.0, %v1716
        %v2662 = vsub.f32 1.0, %v1718
        %v2663 = vsub.f32 1.0, %v1720
        %v2664 = vsub.f32 1.0, %v1722
        %v2665 = vsub.f32 1.0, %v1724
        %v2666 = vsub.f32 1.0, %v1726
        %v2667 = vsub.f32 1.0, %v1728
        %v2668 = vsub.f32 1.0, %v1730
        %v2669 = vsub.f32 1.0, %v1732
        %v2670 = vsub.f32 1.0, %v1734
        %v2671 = vsub.f32 1.0, %v1736
        %v2672 = vsub.f32 1.0, %v1738
        %v2673 = vsub.f32 1.0, %v1740
        %v2674 = vsub.f32 1.0, %v1742
        %v2675 = vsub.f32 1.0, %v1744
        %v2676 = vsub.f32 1.0, %v1746
        %v2677 = vsub.f32 1.0, %v1748
        %v2678 = vsub.f32 1.0, %v1750
        %v2679 = vsub.f32 1.0, %v1752
        %v2680 = vsub.f32 1.0, %v1754
        %v2681 = vsub.f32 1.0, %v1756
        %v2682 = vsub.f32 1.0, %v1758
        %v2683 = vsub.f32 1.0, %v1760
        %v2684 = vsub.f32 1.0, %v1762
        %v2685 = vsub.f32 1.0, %v1764
        %v2686 = vsub.f32 1.0, %v1766
        %v2687 = vsub.f32 1.0, %v1768
        %v2688 = vsub.f32 1.0, %v1770
        %v2689 = vsub.f32 1.0, %v1772
        %v2690 = vsub.f32 1.0, %v1774
        %v2691 = vsub.f32 1.0, %v1776
        %v2692 = vsub.f32 1.0, %v1778
        %v2693 = vsub.f32 1.0, %v1780
        %v2694 = vsub.f32 1.0, %v1782
        %v2695 = vsub.f32 1.0, %v1784
        %v2696 = vsub.f32 1.0, %v1786
        %v2697 = vsub.f32 1.0, %v1788
        %v2698 = vsub.f32 1.0, %v1790
        %v2699 = vsub.f32 1.0, %v1792
        %v2700 = vsub.f32 1.0, %v1794
        %v2701 = vsub.f32 1.0, %v1796
        %v2702 = vsub.f32 1.0, %v1798
        %v2703 = vsub.f32 1.0, %v1800
        %v2704 = vsub.f32 1.0, %v1802
        %v2705 = vsub.f32 1.0, %v1804
        %v2706 = vsub.f32 1.0, %v1806
        %v2707 = vsub.f32 1.0, %v1808
        %v2708 = vsub.f32 1.0, %v1810
        %v2709 = vsub.f32 1.0, %v1812
        %v2710 = vsub.f32 1.0, %v1814
        %v2711 = vmul.f32 %v2583, 0.25
        %v2712 = vmul.f32 %v2584, 0.25
        %v2713 = vmul.f32 %v2585, 0.25
        %v2714 = vmul.f32 %v2586, 0.25
        %v2715 = vmul.f32 %v2587, 0.25
        %v2716 = vmul.f32 %v2588, 0.25
        %v2717 = vmul.f32 %v2589, 0.25
        %v2718 = vmul.f32 %v2590, 0.25
        %v2719 = vmul.f32 %v2591, 0.25
        %v2720 = vmul.f32 %v2592, 0.25
        %v2721 = vmul.f32 %v2593, 0.25
        %v2722 = vmul.f32 %v2594, 0.25
        %v2723 = vmul.f32 %v2595, 0.25
        %v2724 = vmul.f32 %v2596, 0.25
        %v2725 = vmul.f32 %v2597, 0.25
        %v2726 = vmul.f32 %v2598, 0.25
        %v2727 = vmul.f32 %v2599, 0.25
        %v2728 = vmul.f32 %v2600, 0.25
        %v2729 = vmul.f32 %v2601, 0.25
        %v2730 = vmul.f32 %v2602, 0.25
        %v2731 = vmul.f32 %v2603, 0.25
        %v2732 = vmul.f32 %v2604, 0.25
        %v2733 = vmul.f32 %v2605, 0.25
        %v2734 = vmul.f32 %v2606, 0.25
        %v2735 = vmul.f32 %v2607, 0.25
        %v2736 = vmul.f32 %v2608, 0.25
        %v2737 = vmul.f32 %v2609, 0.25
        %v2738 = vmul.f32 %v2610, 0.25
        %v2739 = vmul.f32 %v2611, 0.25
        %v2740 = vmul.f32 %v2612, 0.25
        %v2741 = vmul.f32 %v2613, 0.25
        %v2742 = vmul.f32 %v2614, 0.25
        %v2743 = vmul.f32 %v2615, 0.25
        %v2744 = vmul.f32 %v2616, 0.25
        %v2745 = vmul.f32 %v2617, 0.25
        %v2746 = vmul.f32 %v2618, 0.25
        %v2747 = vmul.f32 %v2619, 0.25
        %v2748 = vmul.f32 %v2620, 0.25
        %v2749 = vmul.f32 %v2621, 0.25
        %v2750 = vmul.f32 %v2622, 0.25
        %v2751 = vmul.f32 %v2623, 0.25
        %v2752 = vmul.f32 %v2624, 0.25
        %v2753 = vmul.f32 %v2625, 0.25
        %v2754 = vmul.f32 %v2626, 0.25
        %v2755 = vmul.f32 %v2627, 0.25
        %v2756 = vmul.f32 %v2628, 0.25
        %v2757 = vmul.f32 %v2629, 0.25
        %v2758 = vmul.f32 %v2630, 0.25
        %v2759 = vmul.f32 %v2631, 0.25
        %v2760 = vmul.f32 %v2632, 0.25
        %v2761 = vmul.f32 %v2633, 0.25
        %v2762 = vmul.f32 %v2634, 0.25
        %v2763 = vmul.f32 %v2635, 0.25
        %v2764 = vmul.f32 %v2636, 0.25
        %v2765 = vmul.f32 %v2637, 0.25
        %v2766 = vmul.f32 %v2638, 0.25
        %v2767 = vmul.f32 %v2639, 0.25
        %v2768 = vmul.f32 %v2640, 0.25
        %v2769 = vmul.f32 %v2641, 0.25
        %v2770 = vmul.f32 %v2642, 0.25
        %v2771 = vmul.f32 %v2643, 0.25
        %v2772 = vmul.f32 %v2644, 0.25
        %v2773 = vmul.f32 %v2645, 0.25
        %v2774 = vmul.f32 %v2646, 0.25
        %v2775 = vmul.f32 %v2647, 0.25
        %v2776 = vmul.f32 %v2648, 0.25
        %v2777 = vmul.f32 %v2649, 0.25
        %v2778 = vmul.f32 %v2650, 0.25
        %v2779 = vmul.f32 %v2651, 0.25
        %v2780 = vmul.f32 %v2652, 0.25
        %v2781 = vmul.f32 %v2653, 0.25
        %v2782 = vmul.f32 %v2654, 0.25
        %v2783 = vmul.f32 %v2655, 0.25
        %v2784 = vmul.f32 %v2656, 0.25
        %v2785 = vmul.f32 %v2657, 0.25
        %v2786 = vmul.f32 %v2658, 0.25
        %v2787 = vmul.f32 %v2659, 0.25
        %v2788 = vmul.f32 %v2660, 0.25
        %v2789 = vmul.f32 %v2661, 0.25
        %v2790 = vmul.f32 %v2662, 0.25
        %v2791 = vmul.f32 %v2663, 0.25
        %v2792 = vmul.f32 %v2664, 0.25
        %v2793 = vmul.f32 %v2665, 0.25
        %v2794 = vmul.f32 %v2666, 0.25
        %v2795 = vmul.f32 %v2667, 0.25
        %v2796 = vmul.f32 %v2668, 0.25
        %v2797 = vmul.f32 %v2669, 0.25
        %v2798 = vmul.f32 %v2670, 0.25
        %v2799 = vmul.f32 %v2671, 0.25
        %v2800 = vmul.f32 %v2672, 0.25
        %v2801 = vmul.f32 %v2673, 0.25
        %v2802 = vmul.f32 %v2674, 0.25
        %v2803 = vmul.f32 %v2675, 0.25
        %v2804 = vmul.f32 %v2676, 0.25
        %v2805 = vmul.f32 %v2677, 0.25
        %v2806 = vmul.f32 %v2678, 0.25
        %v2807 = vmul.f32 %v2679, 0.25
        %v2808 = vmul.f32 %v2680, 0.25
        %v2809 = vmul.f32 %v2681, 0.25
        %v2810 = vmul.f32 %v2682, 0.25
        %v2811 = vmul.f32 %v2683, 0.25
        %v2812 = vmul.f32 %v2684, 0.25
        %v2813 = vmul.f32 %v2685, 0.25
        %v2814 = vmul.f32 %v2686, 0.25
        %v2815 = vmul.f32 %v2687, 0.25
        %v2816 = vmul.f32 %v2688, 0.25
        %v2817 = vmul.f32 %v2689, 0.25
        %v2818 = vmul.f32 %v2690, 0.25
        %v2819 = vmul.f32 %v2691, 0.25
        %v2820 = vmul.f32 %v2692, 0.25
        %v2821 = vmul.f32 %v2693, 0.25
        %v2822 = vmul.f32 %v2694, 0.25
        %v2823 = vmul.f32 %v2695, 0.25
        %v2824 = vmul.f32 %v2696, 0.25
        %v2825 = vmul.f32 %v2697, 0.25
        %v2826 = vmul.f32 %v2698, 0.25
        %v2827 = vmul.f32 %v2699, 0.25
        %v2828 = vmul.f32 %v2700, 0.25
        %v2829 = vmul.f32 %v2701, 0.25
        %v2830 = vmul.f32 %v2702, 0.25
        %v2831 = vmul.f32 %v2703, 0.25
        %v2832 = vmul.f32 %v2704, 0.25
        %v2833 = vmul.f32 %v2705, 0.25
        %v2834 = vmul.f32 %v2706, 0.25
        %v2835 = vmul.f32 %v2707, 0.25
        %v2836 = vmul.f32 %v2708, 0.25
        %v2837 = vmul.f32 %v2709, 0.25
        %v2838 = vmul.f32 %v2710, 0.25
        %v2839 = vmul.f32 %v2711, 1.442695
        %v2840 = vpow.pop %v2839
        %v2841 = vmul.f32 %v2712, 1.442695
        %v2842 = vpow.pop %v2841
        %v2843 = vmul.f32 %v2713, 1.442695
        %v2844 = vpow.pop %v2843
        %v2845 = vmul.f32 %v2714, 1.442695
        %v2846 = vpow.pop %v2845
        %v2847 = vmul.f32 %v2715, 1.442695
        %v2848 = vpow.pop %v2847
        %v2849 = vmul.f32 %v2716, 1.442695
        %v2850 = vpow.pop %v2849
        %v2851 = vmul.f32 %v2717, 1.442695
        %v2852 = vpow.pop %v2851
        %v2853 = vmul.f32 %v2718, 1.442695
        %v2854 = vpow.pop %v2853
        %v2855 = vmul.f32 %v2719, 1.442695
        %v2856 = vpow.pop %v2855
        %v2857 = vmul.f32 %v2720, 1.442695
        %v2858 = vpow.pop %v2857
        %v2859 = vmul.f32 %v2721, 1.442695
        %v2860 = vpow.pop %v2859
        %v2861 = vmul.f32 %v2722, 1.442695
        %v2862 = vpow.pop %v2861
        %v2863 = vmul.f32 %v2723, 1.442695
        %v2864 = vpow.pop %v2863
        %v2865 = vmul.f32 %v2724, 1.442695
        %v2866 = vpow.pop %v2865
        %v2867 = vmul.f32 %v2725, 1.442695
        %v2868 = vpow.pop %v2867
        %v2869 = vmul.f32 %v2726, 1.442695
        %v2870 = vpow.pop %v2869
        %v2871 = vmul.f32 %v2727, 1.442695
        %v2872 = vpow.pop %v2871
        %v2873 = vmul.f32 %v2728, 1.442695
        %v2874 = vpow.pop %v2873
        %v2875 = vmul.f32 %v2729, 1.442695
        %v2876 = vpow.pop %v2875
        %v2877 = vmul.f32 %v2730, 1.442695
        %v2878 = vpow.pop %v2877
        %v2879 = vmul.f32 %v2731, 1.442695
        %v2880 = vpow.pop %v2879
        %v2881 = vmul.f32 %v2732, 1.442695
        %v2882 = vpow.pop %v2881
        %v2883 = vmul.f32 %v2733, 1.442695
        %v2884 = vpow.pop %v2883
        %v2885 = vmul.f32 %v2734, 1.442695
        %v2886 = vpow.pop %v2885
        %v2887 = vmul.f32 %v2735, 1.442695
        %v2888 = vpow.pop %v2887
        %v2889 = vmul.f32 %v2736, 1.442695
        %v2890 = vpow.pop %v2889
        %v2891 = vmul.f32 %v2737, 1.442695
        %v2892 = vpow.pop %v2891
        %v2893 = vmul.f32 %v2738, 1.442695
        %v2894 = vpow.pop %v2893
        %v2895 = vmul.f32 %v2739, 1.442695
        %v2896 = vpow.pop %v2895
        %v2897 = vmul.f32 %v2740, 1.442695
        %v2898 = vpow.pop %v2897
        %v2899 = vmul.f32 %v2741, 1.442695
        %v2900 = vpow.pop %v2899
        %v2901 = vmul.f32 %v2742, 1.442695
        %v2902 = vpow.pop %v2901
        %v2903 = vmul.f32 %v2743, 1.442695
        %v2904 = vpow.pop %v2903
        %v2905 = vmul.f32 %v2744, 1.442695
        %v2906 = vpow.pop %v2905
        %v2907 = vmul.f32 %v2745, 1.442695
        %v2908 = vpow.pop %v2907
        %v2909 = vmul.f32 %v2746, 1.442695
        %v2910 = vpow.pop %v2909
        %v2911 = vmul.f32 %v2747, 1.442695
        %v2912 = vpow.pop %v2911
        %v2913 = vmul.f32 %v2748, 1.442695
        %v2914 = vpow.pop %v2913
        %v2915 = vmul.f32 %v2749, 1.442695
        %v2916 = vpow.pop %v2915
        %v2917 = vmul.f32 %v2750, 1.442695
        %v2918 = vpow.pop %v2917
        %v2919 = vmul.f32 %v2751, 1.442695
        %v2920 = vpow.pop %v2919
        %v2921 = vmul.f32 %v2752, 1.442695
        %v2922 = vpow.pop %v2921
        %v2923 = vmul.f32 %v2753, 1.442695
        %v2924 = vpow.pop %v2923
        %v2925 = vmul.f32 %v2754, 1.442695
        %v2926 = vpow.pop %v2925
        %v2927 = vmul.f32 %v2755, 1.442695
        %v2928 = vpow.pop %v2927
        %v2929 = vmul.f32 %v2756, 1.442695
        %v2930 = vpow.pop %v2929
        %v2931 = vmul.f32 %v2757, 1.442695
        %v2932 = vpow.pop %v2931
        %v2933 = vmul.f32 %v2758, 1.442695
        %v2934 = vpow.pop %v2933
        %v2935 = vmul.f32 %v2759, 1.442695
        %v2936 = vpow.pop %v2935
        %v2937 = vmul.f32 %v2760, 1.442695
        %v2938 = vpow.pop %v2937
        %v2939 = vmul.f32 %v2761, 1.442695
        %v2940 = vpow.pop %v2939
        %v2941 = vmul.f32 %v2762, 1.442695
        %v2942 = vpow.pop %v2941
        %v2943 = vmul.f32 %v2763, 1.442695
        %v2944 = vpow.pop %v2943
        %v2945 = vmul.f32 %v2764, 1.442695
        %v2946 = vpow.pop %v2945
        %v2947 = vmul.f32 %v2765, 1.442695
        %v2948 = vpow.pop %v2947
        %v2949 = vmul.f32 %v2766, 1.442695
        %v2950 = vpow.pop %v2949
        %v2951 = vmul.f32 %v2767, 1.442695
        %v2952 = vpow.pop %v2951
        %v2953 = vmul.f32 %v2768, 1.442695
        %v2954 = vpow.pop %v2953
        %v2955 = vmul.f32 %v2769, 1.442695
        %v2956 = vpow.pop %v2955
        %v2957 = vmul.f32 %v2770, 1.442695
        %v2958 = vpow.pop %v2957
        %v2959 = vmul.f32 %v2771, 1.442695
        %v2960 = vpow.pop %v2959
        %v2961 = vmul.f32 %v2772, 1.442695
        %v2962 = vpow.pop %v2961
        %v2963 = vmul.f32 %v2773, 1.442695
        %v2964 = vpow.pop %v2963
        %v2965 = vmul.f32 %v2774, 1.442695
        %v2966 = vpow.pop %v2965
        %v2967 = vmul.f32 %v2775, 1.442695
        %v2968 = vpow.pop %v2967
        %v2969 = vmul.f32 %v2776, 1.442695
        %v2970 = vpow.pop %v2969
        %v2971 = vmul.f32 %v2777, 1.442695
        %v2972 = vpow.pop %v2971
        %v2973 = vmul.f32 %v2778, 1.442695
        %v2974 = vpow.pop %v2973
        %v2975 = vmul.f32 %v2779, 1.442695
        %v2976 = vpow.pop %v2975
        %v2977 = vmul.f32 %v2780, 1.442695
        %v2978 = vpow.pop %v2977
        %v2979 = vmul.f32 %v2781, 1.442695
        %v2980 = vpow.pop %v2979
        %v2981 = vmul.f32 %v2782, 1.442695
        %v2982 = vpow.pop %v2981
        %v2983 = vmul.f32 %v2783, 1.442695
        %v2984 = vpow.pop %v2983
        %v2985 = vmul.f32 %v2784, 1.442695
        %v2986 = vpow.pop %v2985
        %v2987 = vmul.f32 %v2785, 1.442695
        %v2988 = vpow.pop %v2987
        %v2989 = vmul.f32 %v2786, 1.442695
        %v2990 = vpow.pop %v2989
        %v2991 = vmul.f32 %v2787, 1.442695
        %v2992 = vpow.pop %v2991
        %v2993 = vmul.f32 %v2788, 1.442695
        %v2994 = vpow.pop %v2993
        %v2995 = vmul.f32 %v2789, 1.442695
        %v2996 = vpow.pop %v2995
        %v2997 = vmul.f32 %v2790, 1.442695
        %v2998 = vpow.pop %v2997
        %v2999 = vmul.f32 %v2791, 1.442695
        %v3000 = vpow.pop %v2999
        %v3001 = vmul.f32 %v2792, 1.442695
        %v3002 = vpow.pop %v3001
        %v3003 = vmul.f32 %v2793, 1.442695
        %v3004 = vpow.pop %v3003
        %v3005 = vmul.f32 %v2794, 1.442695
        %v3006 = vpow.pop %v3005
        %v3007 = vmul.f32 %v2795, 1.442695
        %v3008 = vpow.pop %v3007
        %v3009 = vmul.f32 %v2796, 1.442695
        %v3010 = vpow.pop %v3009
        %v3011 = vmul.f32 %v2797, 1.442695
        %v3012 = vpow.pop %v3011
        %v3013 = vmul.f32 %v2798, 1.442695
        %v3014 = vpow.pop %v3013
        %v3015 = vmul.f32 %v2799, 1.442695
        %v3016 = vpow.pop %v3015
        %v3017 = vmul.f32 %v2800, 1.442695
        %v3018 = vpow.pop %v3017
        %v3019 = vmul.f32 %v2801, 1.442695
        %v3020 = vpow.pop %v3019
        %v3021 = vmul.f32 %v2802, 1.442695
        %v3022 = vpow.pop %v3021
        %v3023 = vmul.f32 %v2803, 1.442695
        %v3024 = vpow.pop %v3023
        %v3025 = vmul.f32 %v2804, 1.442695
        %v3026 = vpow.pop %v3025
        %v3027 = vmul.f32 %v2805, 1.442695
        %v3028 = vpow.pop %v3027
        %v3029 = vmul.f32 %v2806, 1.442695
        %v3030 = vpow.pop %v3029
        %v3031 = vmul.f32 %v2807, 1.442695
        %v3032 = vpow.pop %v3031
        %v3033 = vmul.f32 %v2808, 1.442695
        %v3034 = vpow.pop %v3033
        %v3035 = vmul.f32 %v2809, 1.442695
        %v3036 = vpow.pop %v3035
        %v3037 = vmul.f32 %v2810, 1.442695
        %v3038 = vpow.pop %v3037
        %v3039 = vmul.f32 %v2811, 1.442695
        %v3040 = vpow.pop %v3039
        %v3041 = vmul.f32 %v2812, 1.442695
        %v3042 = vpow.pop %v3041
        %v3043 = vmul.f32 %v2813, 1.442695
        %v3044 = vpow.pop %v3043
        %v3045 = vmul.f32 %v2814, 1.442695
        %v3046 = vpow.pop %v3045
        %v3047 = vmul.f32 %v2815, 1.442695
        %v3048 = vpow.pop %v3047
        %v3049 = vmul.f32 %v2816, 1.442695
        %v3050 = vpow.pop %v3049
        %v3051 = vmul.f32 %v2817, 1.442695
        %v3052 = vpow.pop %v3051
        %v3053 = vmul.f32 %v2818, 1.442695
        %v3054 = vpow.pop %v3053
        %v3055 = vmul.f32 %v2819, 1.442695
        %v3056 = vpow.pop %v3055
        %v3057 = vmul.f32 %v2820, 1.442695
        %v3058 = vpow.pop %v3057
        %v3059 = vmul.f32 %v2821, 1.442695
        %v3060 = vpow.pop %v3059
        %v3061 = vmul.f32 %v2822, 1.442695
        %v3062 = vpow.pop %v3061
        %v3063 = vmul.f32 %v2823, 1.442695
        %v3064 = vpow.pop %v3063
        %v3065 = vmul.f32 %v2824, 1.442695
        %v3066 = vpow.pop %v3065
        %v3067 = vmul.f32 %v2825, 1.442695
        %v3068 = vpow.pop %v3067
        %v3069 = vmul.f32 %v2826, 1.442695
        %v3070 = vpow.pop %v3069
        %v3071 = vmul.f32 %v2827, 1.442695
        %v3072 = vpow.pop %v3071
        %v3073 = vmul.f32 %v2828, 1.442695
        %v3074 = vpow.pop %v3073
        %v3075 = vmul.f32 %v2829, 1.442695
        %v3076 = vpow.pop %v3075
        %v3077 = vmul.f32 %v2830, 1.442695
        %v3078 = vpow.pop %v3077
        %v3079 = vmul.f32 %v2831, 1.442695
        %v3080 = vpow.pop %v3079
        %v3081 = vmul.f32 %v2832, 1.442695
        %v3082 = vpow.pop %v3081
        %v3083 = vmul.f32 %v2833, 1.442695
        %v3084 = vpow.pop %v3083
        %v3085 = vmul.f32 %v2834, 1.442695
        %v3086 = vpow.pop %v3085
        %v3087 = vmul.f32 %v2835, 1.442695
        %v3088 = vpow.pop %v3087
        %v3089 = vmul.f32 %v2836, 1.442695
        %v3090 = vpow.pop %v3089
        %v3091 = vmul.f32 %v2837, 1.442695
        %v3092 = vpow.pop %v3091
        %v3093 = vmul.f32 %v2838, 1.442695
        %v3094 = vpow.pop %v3093
        %v3095 = vsub.f32 0.0, %v2455
        %v3096 = vsub.f32 0.0, %v2456
        %v3097 = vsub.f32 0.0, %v2457
        %v3098 = vsub.f32 0.0, %v2458
        %v3099 = vsub.f32 0.0, %v2459
        %v3100 = vsub.f32 0.0, %v2460
        %v3101 = vsub.f32 0.0, %v2461
        %v3102 = vsub.f32 0.0, %v2462
        %v3103 = vsub.f32 0.0, %v2463
        %v3104 = vsub.f32 0.0, %v2464
        %v3105 = vsub.f32 0.0, %v2465
        %v3106 = vsub.f32 0.0, %v2466
        %v3107 = vsub.f32 0.0, %v2467
        %v3108 = vsub.f32 0.0, %v2468
        %v3109 = vsub.f32 0.0, %v2469
        %v3110 = vsub.f32 0.0, %v2470
        %v3111 = vsub.f32 0.0, %v2471
        %v3112 = vsub.f32 0.0, %v2472
        %v3113 = vsub.f32 0.0, %v2473
        %v3114 = vsub.f32 0.0, %v2474
        %v3115 = vsub.f32 0.0, %v2475
        %v3116 = vsub.f32 0.0, %v2476
        %v3117 = vsub.f32 0.0, %v2477
        %v3118 = vsub.f32 0.0, %v2478
        %v3119 = vsub.f32 0.0, %v2479
        %v3120 = vsub.f32 0.0, %v2480
        %v3121 = vsub.f32 0.0, %v2481
        %v3122 = vsub.f32 0.0, %v2482
        %v3123 = vsub.f32 0.0, %v2483
        %v3124 = vsub.f32 0.0, %v2484
        %v3125 = vsub.f32 0.0, %v2485
        %v3126 = vsub.f32 0.0, %v2486
        %v3127 = vsub.f32 0.0, %v2487
        %v3128 = vsub.f32 0.0, %v2488
        %v3129 = vsub.f32 0.0, %v2489
        %v3130 = vsub.f32 0.0, %v2490
        %v3131 = vsub.f32 0.0, %v2491
        %v3132 = vsub.f32 0.0, %v2492
        %v3133 = vsub.f32 0.0, %v2493
        %v3134 = vsub.f32 0.0, %v2494
        %v3135 = vsub.f32 0.0, %v2495
        %v3136 = vsub.f32 0.0, %v2496
        %v3137 = vsub.f32 0.0, %v2497
        %v3138 = vsub.f32 0.0, %v2498
        %v3139 = vsub.f32 0.0, %v2499
        %v3140 = vsub.f32 0.0, %v2500
        %v3141 = vsub.f32 0.0, %v2501
        %v3142 = vsub.f32 0.0, %v2502
        %v3143 = vsub.f32 0.0, %v2503
        %v3144 = vsub.f32 0.0, %v2504
        %v3145 = vsub.f32 0.0, %v2505
        %v3146 = vsub.f32 0.0, %v2506
        %v3147 = vsub.f32 0.0, %v2507
        %v3148 = vsub.f32 0.0, %v2508
        %v3149 = vsub.f32 0.0, %v2509
        %v3150 = vsub.f32 0.0, %v2510
        %v3151 = vsub.f32 0.0, %v2511
        %v3152 = vsub.f32 0.0, %v2512
        %v3153 = vsub.f32 0.0, %v2513
        %v3154 = vsub.f32 0.0, %v2514
        %v3155 = vsub.f32 0.0, %v2515
        %v3156 = vsub.f32 0.0, %v2516
        %v3157 = vsub.f32 0.0, %v2517
        %v3158 = vsub.f32 0.0, %v2518
        %v3159 = vsub.f32 0.0, %v2519
        %v3160 = vsub.f32 0.0, %v2520
        %v3161 = vsub.f32 0.0, %v2521
        %v3162 = vsub.f32 0.0, %v2522
        %v3163 = vsub.f32 0.0, %v2523
        %v3164 = vsub.f32 0.0, %v2524
        %v3165 = vsub.f32 0.0, %v2525
        %v3166 = vsub.f32 0.0, %v2526
        %v3167 = vsub.f32 0.0, %v2527
        %v3168 = vsub.f32 0.0, %v2528
        %v3169 = vsub.f32 0.0, %v2529
        %v3170 = vsub.f32 0.0, %v2530
        %v3171 = vsub.f32 0.0, %v2531
        %v3172 = vsub.f32 0.0, %v2532
        %v3173 = vsub.f32 0.0, %v2533
        %v3174 = vsub.f32 0.0, %v2534
        %v3175 = vsub.f32 0.0, %v2535
        %v3176 = vsub.f32 0.0, %v2536
        %v3177 = vsub.f32 0.0, %v2537
        %v3178 = vsub.f32 0.0, %v2538
        %v3179 = vsub.f32 0.0, %v2539
        %v3180 = vsub.f32 0.0, %v2540
        %v3181 = vsub.f32 0.0, %v2541
        %v3182 = vsub.f32 0.0, %v2542
        %v3183 = vsub.f32 0.0, %v2543
        %v3184 = vsub.f32 0.0, %v2544
        %v3185 = vsub.f32 0.0, %v2545
        %v3186 = vsub.f32 0.0, %v2546
        %v3187 = vsub.f32 0.0, %v2547
        %v3188 = vsub.f32 0.0, %v2548
        %v3189 = vsub.f32 0.0, %v2549
        %v3190 = vsub.f32 0.0, %v2550
        %v3191 = vsub.f32 0.0, %v2551
        %v3192 = vsub.f32 0.0, %v2552
        %v3193 = vsub.f32 0.0, %v2553
        %v3194 = vsub.f32 0.0, %v2554
        %v3195 = vsub.f32 0.0, %v2555
        %v3196 = vsub.f32 0.0, %v2556
        %v3197 = vsub.f32 0.0, %v2557
        %v3198 = vsub.f32 0.0, %v2558
        %v3199 = vsub.f32 0.0, %v2559
        %v3200 = vsub.f32 0.0, %v2560
        %v3201 = vsub.f32 0.0, %v2561
        %v3202 = vsub.f32 0.0, %v2562
        %v3203 = vsub.f32 0.0, %v2563
        %v3204 = vsub.f32 0.0, %v2564
        %v3205 = vsub.f32 0.0, %v2565
        %v3206 = vsub.f32 0.0, %v2566
        %v3207 = vsub.f32 0.0, %v2567
        %v3208 = vsub.f32 0.0, %v2568
        %v3209 = vsub.f32 0.0, %v2569
        %v3210 = vsub.f32 0.0, %v2570
        %v3211 = vsub.f32 0.0, %v2571
        %v3212 = vsub.f32 0.0, %v2572
        %v3213 = vsub.f32 0.0, %v2573
        %v3214 = vsub.f32 0.0, %v2574
        %v3215 = vsub.f32 0.0, %v2575
        %v3216 = vsub.f32 0.0, %v2576
        %v3217 = vsub.f32 0.0, %v2577
        %v3218 = vsub.f32 0.0, %v2578
        %v3219 = vsub.f32 0.0, %v2579
        %v3220 = vsub.f32 0.0, %v2580
        %v3221 = vsub.f32 0.0, %v2581
        %v3222 = vsub.f32 0.0, %v2582
        %v3223 = vmul.f32 %v3095, 0.25
        %v3224 = vmul.f32 %v3096, 0.25
        %v3225 = vmul.f32 %v3097, 0.25
        %v3226 = vmul.f32 %v3098, 0.25
        %v3227 = vmul.f32 %v3099, 0.25
        %v3228 = vmul.f32 %v3100, 0.25
        %v3229 = vmul.f32 %v3101, 0.25
        %v3230 = vmul.f32 %v3102, 0.25
        %v3231 = vmul.f32 %v3103, 0.25
        %v3232 = vmul.f32 %v3104, 0.25
        %v3233 = vmul.f32 %v3105, 0.25
        %v3234 = vmul.f32 %v3106, 0.25
        %v3235 = vmul.f32 %v3107, 0.25
        %v3236 = vmul.f32 %v3108, 0.25
        %v3237 = vmul.f32 %v3109, 0.25
        %v3238 = vmul.f32 %v3110, 0.25
        %v3239 = vmul.f32 %v3111, 0.25
        %v3240 = vmul.f32 %v3112, 0.25
        %v3241 = vmul.f32 %v3113, 0.25
        %v3242 = vmul.f32 %v3114, 0.25
        %v3243 = vmul.f32 %v3115, 0.25
        %v3244 = vmul.f32 %v3116, 0.25
        %v3245 = vmul.f32 %v3117, 0.25
        %v3246 = vmul.f32 %v3118, 0.25
        %v3247 = vmul.f32 %v3119, 0.25
        %v3248 = vmul.f32 %v3120, 0.25
        %v3249 = vmul.f32 %v3121, 0.25
        %v3250 = vmul.f32 %v3122, 0.25
        %v3251 = vmul.f32 %v3123, 0.25
        %v3252 = vmul.f32 %v3124, 0.25
        %v3253 = vmul.f32 %v3125, 0.25
        %v3254 = vmul.f32 %v3126, 0.25
        %v3255 = vmul.f32 %v3127, 0.25
        %v3256 = vmul.f32 %v3128, 0.25
        %v3257 = vmul.f32 %v3129, 0.25
        %v3258 = vmul.f32 %v3130, 0.25
        %v3259 = vmul.f32 %v3131, 0.25
        %v3260 = vmul.f32 %v3132, 0.25
        %v3261 = vmul.f32 %v3133, 0.25
        %v3262 = vmul.f32 %v3134, 0.25
        %v3263 = vmul.f32 %v3135, 0.25
        %v3264 = vmul.f32 %v3136, 0.25
        %v3265 = vmul.f32 %v3137, 0.25
        %v3266 = vmul.f32 %v3138, 0.25
        %v3267 = vmul.f32 %v3139, 0.25
        %v3268 = vmul.f32 %v3140, 0.25
        %v3269 = vmul.f32 %v3141, 0.25
        %v3270 = vmul.f32 %v3142, 0.25
        %v3271 = vmul.f32 %v3143, 0.25
        %v3272 = vmul.f32 %v3144, 0.25
        %v3273 = vmul.f32 %v3145, 0.25
        %v3274 = vmul.f32 %v3146, 0.25
        %v3275 = vmul.f32 %v3147, 0.25
        %v3276 = vmul.f32 %v3148, 0.25
        %v3277 = vmul.f32 %v3149, 0.25
        %v3278 = vmul.f32 %v3150, 0.25
        %v3279 = vmul.f32 %v3151, 0.25
        %v3280 = vmul.f32 %v3152, 0.25
        %v3281 = vmul.f32 %v3153, 0.25
        %v3282 = vmul.f32 %v3154, 0.25
        %v3283 = vmul.f32 %v3155, 0.25
        %v3284 = vmul.f32 %v3156, 0.25
        %v3285 = vmul.f32 %v3157, 0.25
        %v3286 = vmul.f32 %v3158, 0.25
        %v3287 = vmul.f32 %v3159, 0.25
        %v3288 = vmul.f32 %v3160, 0.25
        %v3289 = vmul.f32 %v3161, 0.25
        %v3290 = vmul.f32 %v3162, 0.25
        %v3291 = vmul.f32 %v3163, 0.25
        %v3292 = vmul.f32 %v3164, 0.25
        %v3293 = vmul.f32 %v3165, 0.25
        %v3294 = vmul.f32 %v3166, 0.25
        %v3295 = vmul.f32 %v3167, 0.25
        %v3296 = vmul.f32 %v3168, 0.25
        %v3297 = vmul.f32 %v3169, 0.25
        %v3298 = vmul.f32 %v3170, 0.25
        %v3299 = vmul.f32 %v3171, 0.25
        %v3300 = vmul.f32 %v3172, 0.25
        %v3301 = vmul.f32 %v3173, 0.25
        %v3302 = vmul.f32 %v3174, 0.25
        %v3303 = vmul.f32 %v3175, 0.25
        %v3304 = vmul.f32 %v3176, 0.25
        %v3305 = vmul.f32 %v3177, 0.25
        %v3306 = vmul.f32 %v3178, 0.25
        %v3307 = vmul.f32 %v3179, 0.25
        %v3308 = vmul.f32 %v3180, 0.25
        %v3309 = vmul.f32 %v3181, 0.25
        %v3310 = vmul.f32 %v3182, 0.25
        %v3311 = vmul.f32 %v3183, 0.25
        %v3312 = vmul.f32 %v3184, 0.25
        %v3313 = vmul.f32 %v3185, 0.25
        %v3314 = vmul.f32 %v3186, 0.25
        %v3315 = vmul.f32 %v3187, 0.25
        %v3316 = vmul.f32 %v3188, 0.25
        %v3317 = vmul.f32 %v3189, 0.25
        %v3318 = vmul.f32 %v3190, 0.25
        %v3319 = vmul.f32 %v3191, 0.25
        %v3320 = vmul.f32 %v3192, 0.25
        %v3321 = vmul.f32 %v3193, 0.25
        %v3322 = vmul.f32 %v3194, 0.25
        %v3323 = vmul.f32 %v3195, 0.25
        %v3324 = vmul.f32 %v3196, 0.25
        %v3325 = vmul.f32 %v3197, 0.25
        %v3326 = vmul.f32 %v3198, 0.25
        %v3327 = vmul.f32 %v3199, 0.25
        %v3328 = vmul.f32 %v3200, 0.25
        %v3329 = vmul.f32 %v3201, 0.25
        %v3330 = vmul.f32 %v3202, 0.25
        %v3331 = vmul.f32 %v3203, 0.25
        %v3332 = vmul.f32 %v3204, 0.25
        %v3333 = vmul.f32 %v3205, 0.25
        %v3334 = vmul.f32 %v3206, 0.25
        %v3335 = vmul.f32 %v3207, 0.25
        %v3336 = vmul.f32 %v3208, 0.25
        %v3337 = vmul.f32 %v3209, 0.25
        %v3338 = vmul.f32 %v3210, 0.25
        %v3339 = vmul.f32 %v3211, 0.25
        %v3340 = vmul.f32 %v3212, 0.25
        %v3341 = vmul.f32 %v3213, 0.25
        %v3342 = vmul.f32 %v3214, 0.25
        %v3343 = vmul.f32 %v3215, 0.25
        %v3344 = vmul.f32 %v3216, 0.25
        %v3345 = vmul.f32 %v3217, 0.25
        %v3346 = vmul.f32 %v3218, 0.25
        %v3347 = vmul.f32 %v3219, 0.25
        %v3348 = vmul.f32 %v3220, 0.25
        %v3349 = vmul.f32 %v3221, 0.25
        %v3350 = vmul.f32 %v3222, 0.25
        %v3351 = vmul.f32 %v3223, 1.442695
        %v3352 = vpow.pop %v3351
        %v3353 = vmul.f32 %v3224, 1.442695
        %v3354 = vpow.pop %v3353
        %v3355 = vmul.f32 %v3225, 1.442695
        %v3356 = vpow.pop %v3355
        %v3357 = vmul.f32 %v3226, 1.442695
        %v3358 = vpow.pop %v3357
        %v3359 = vmul.f32 %v3227, 1.442695
        %v3360 = vpow.pop %v3359
        %v3361 = vmul.f32 %v3228, 1.442695
        %v3362 = vpow.pop %v3361
        %v3363 = vmul.f32 %v3229, 1.442695
        %v3364 = vpow.pop %v3363
        %v3365 = vmul.f32 %v3230, 1.442695
        %v3366 = vpow.pop %v3365
        %v3367 = vmul.f32 %v3231, 1.442695
        %v3368 = vpow.pop %v3367
        %v3369 = vmul.f32 %v3232, 1.442695
        %v3370 = vpow.pop %v3369
        %v3371 = vmul.f32 %v3233, 1.442695
        %v3372 = vpow.pop %v3371
        %v3373 = vmul.f32 %v3234, 1.442695
        %v3374 = vpow.pop %v3373
        %v3375 = vmul.f32 %v3235, 1.442695
        %v3376 = vpow.pop %v3375
        %v3377 = vmul.f32 %v3236, 1.442695
        %v3378 = vpow.pop %v3377
        %v3379 = vmul.f32 %v3237, 1.442695
        %v3380 = vpow.pop %v3379
        %v3381 = vmul.f32 %v3238, 1.442695
        %v3382 = vpow.pop %v3381
        %v3383 = vmul.f32 %v3239, 1.442695
        %v3384 = vpow.pop %v3383
        %v3385 = vmul.f32 %v3240, 1.442695
        %v3386 = vpow.pop %v3385
        %v3387 = vmul.f32 %v3241, 1.442695
        %v3388 = vpow.pop %v3387
        %v3389 = vmul.f32 %v3242, 1.442695
        %v3390 = vpow.pop %v3389
        %v3391 = vmul.f32 %v3243, 1.442695
        %v3392 = vpow.pop %v3391
        %v3393 = vmul.f32 %v3244, 1.442695
        %v3394 = vpow.pop %v3393
        %v3395 = vmul.f32 %v3245, 1.442695
        %v3396 = vpow.pop %v3395
        %v3397 = vmul.f32 %v3246, 1.442695
        %v3398 = vpow.pop %v3397
        %v3399 = vmul.f32 %v3247, 1.442695
        %v3400 = vpow.pop %v3399
        %v3401 = vmul.f32 %v3248, 1.442695
        %v3402 = vpow.pop %v3401
        %v3403 = vmul.f32 %v3249, 1.442695
        %v3404 = vpow.pop %v3403
        %v3405 = vmul.f32 %v3250, 1.442695
        %v3406 = vpow.pop %v3405
        %v3407 = vmul.f32 %v3251, 1.442695
        %v3408 = vpow.pop %v3407
        %v3409 = vmul.f32 %v3252, 1.442695
        %v3410 = vpow.pop %v3409
        %v3411 = vmul.f32 %v3253, 1.442695
        %v3412 = vpow.pop %v3411
        %v3413 = vmul.f32 %v3254, 1.442695
        %v3414 = vpow.pop %v3413
        %v3415 = vmul.f32 %v3255, 1.442695
        %v3416 = vpow.pop %v3415
        %v3417 = vmul.f32 %v3256, 1.442695
        %v3418 = vpow.pop %v3417
        %v3419 = vmul.f32 %v3257, 1.442695
        %v3420 = vpow.pop %v3419
        %v3421 = vmul.f32 %v3258, 1.442695
        %v3422 = vpow.pop %v3421
        %v3423 = vmul.f32 %v3259, 1.442695
        %v3424 = vpow.pop %v3423
        %v3425 = vmul.f32 %v3260, 1.442695
        %v3426 = vpow.pop %v3425
        %v3427 = vmul.f32 %v3261, 1.442695
        %v3428 = vpow.pop %v3427
        %v3429 = vmul.f32 %v3262, 1.442695
        %v3430 = vpow.pop %v3429
        %v3431 = vmul.f32 %v3263, 1.442695
        %v3432 = vpow.pop %v3431
        %v3433 = vmul.f32 %v3264, 1.442695
        %v3434 = vpow.pop %v3433
        %v3435 = vmul.f32 %v3265, 1.442695
        %v3436 = vpow.pop %v3435
        %v3437 = vmul.f32 %v3266, 1.442695
        %v3438 = vpow.pop %v3437
        %v3439 = vmul.f32 %v3267, 1.442695
        %v3440 = vpow.pop %v3439
        %v3441 = vmul.f32 %v3268, 1.442695
        %v3442 = vpow.pop %v3441
        %v3443 = vmul.f32 %v3269, 1.442695
        %v3444 = vpow.pop %v3443
        %v3445 = vmul.f32 %v3270, 1.442695
        %v3446 = vpow.pop %v3445
        %v3447 = vmul.f32 %v3271, 1.442695
        %v3448 = vpow.pop %v3447
        %v3449 = vmul.f32 %v3272, 1.442695
        %v3450 = vpow.pop %v3449
        %v3451 = vmul.f32 %v3273, 1.442695
        %v3452 = vpow.pop %v3451
        %v3453 = vmul.f32 %v3274, 1.442695
        %v3454 = vpow.pop %v3453
        %v3455 = vmul.f32 %v3275, 1.442695
        %v3456 = vpow.pop %v3455
        %v3457 = vmul.f32 %v3276, 1.442695
        %v3458 = vpow.pop %v3457
        %v3459 = vmul.f32 %v3277, 1.442695
        %v3460 = vpow.pop %v3459
        %v3461 = vmul.f32 %v3278, 1.442695
        %v3462 = vpow.pop %v3461
        %v3463 = vmul.f32 %v3279, 1.442695
        %v3464 = vpow.pop %v3463
        %v3465 = vmul.f32 %v3280, 1.442695
        %v3466 = vpow.pop %v3465
        %v3467 = vmul.f32 %v3281, 1.442695
        %v3468 = vpow.pop %v3467
        %v3469 = vmul.f32 %v3282, 1.442695
        %v3470 = vpow.pop %v3469
        %v3471 = vmul.f32 %v3283, 1.442695
        %v3472 = vpow.pop %v3471
        %v3473 = vmul.f32 %v3284, 1.442695
        %v3474 = vpow.pop %v3473
        %v3475 = vmul.f32 %v3285, 1.442695
        %v3476 = vpow.pop %v3475
        %v3477 = vmul.f32 %v3286, 1.442695
        %v3478 = vpow.pop %v3477
        %v3479 = vmul.f32 %v3287, 1.442695
        %v3480 = vpow.pop %v3479
        %v3481 = vmul.f32 %v3288, 1.442695
        %v3482 = vpow.pop %v3481
        %v3483 = vmul.f32 %v3289, 1.442695
        %v3484 = vpow.pop %v3483
        %v3485 = vmul.f32 %v3290, 1.442695
        %v3486 = vpow.pop %v3485
        %v3487 = vmul.f32 %v3291, 1.442695
        %v3488 = vpow.pop %v3487
        %v3489 = vmul.f32 %v3292, 1.442695
        %v3490 = vpow.pop %v3489
        %v3491 = vmul.f32 %v3293, 1.442695
        %v3492 = vpow.pop %v3491
        %v3493 = vmul.f32 %v3294, 1.442695
        %v3494 = vpow.pop %v3493
        %v3495 = vmul.f32 %v3295, 1.442695
        %v3496 = vpow.pop %v3495
        %v3497 = vmul.f32 %v3296, 1.442695
        %v3498 = vpow.pop %v3497
        %v3499 = vmul.f32 %v3297, 1.442695
        %v3500 = vpow.pop %v3499
        %v3501 = vmul.f32 %v3298, 1.442695
        %v3502 = vpow.pop %v3501
        %v3503 = vmul.f32 %v3299, 1.442695
        %v3504 = vpow.pop %v3503
        %v3505 = vmul.f32 %v3300, 1.442695
        %v3506 = vpow.pop %v3505
        %v3507 = vmul.f32 %v3301, 1.442695
        %v3508 = vpow.pop %v3507
        %v3509 = vmul.f32 %v3302, 1.442695
        %v3510 = vpow.pop %v3509
        %v3511 = vmul.f32 %v3303, 1.442695
        %v3512 = vpow.pop %v3511
        %v3513 = vmul.f32 %v3304, 1.442695
        %v3514 = vpow.pop %v3513
        %v3515 = vmul.f32 %v3305, 1.442695
        %v3516 = vpow.pop %v3515
        %v3517 = vmul.f32 %v3306, 1.442695
        %v3518 = vpow.pop %v3517
        %v3519 = vmul.f32 %v3307, 1.442695
        %v3520 = vpow.pop %v3519
        %v3521 = vmul.f32 %v3308, 1.442695
        %v3522 = vpow.pop %v3521
        %v3523 = vmul.f32 %v3309, 1.442695
        %v3524 = vpow.pop %v3523
        %v3525 = vmul.f32 %v3310, 1.442695
        %v3526 = vpow.pop %v3525
        %v3527 = vmul.f32 %v3311, 1.442695
        %v3528 = vpow.pop %v3527
        %v3529 = vmul.f32 %v3312, 1.442695
        %v3530 = vpow.pop %v3529
        %v3531 = vmul.f32 %v3313, 1.442695
        %v3532 = vpow.pop %v3531
        %v3533 = vmul.f32 %v3314, 1.442695
        %v3534 = vpow.pop %v3533
        %v3535 = vmul.f32 %v3315, 1.442695
        %v3536 = vpow.pop %v3535
        %v3537 = vmul.f32 %v3316, 1.442695
        %v3538 = vpow.pop %v3537
        %v3539 = vmul.f32 %v3317, 1.442695
        %v3540 = vpow.pop %v3539
        %v3541 = vmul.f32 %v3318, 1.442695
        %v3542 = vpow.pop %v3541
        %v3543 = vmul.f32 %v3319, 1.442695
        %v3544 = vpow.pop %v3543
        %v3545 = vmul.f32 %v3320, 1.442695
        %v3546 = vpow.pop %v3545
        %v3547 = vmul.f32 %v3321, 1.442695
        %v3548 = vpow.pop %v3547
        %v3549 = vmul.f32 %v3322, 1.442695
        %v3550 = vpow.pop %v3549
        %v3551 = vmul.f32 %v3323, 1.442695
        %v3552 = vpow.pop %v3551
        %v3553 = vmul.f32 %v3324, 1.442695
        %v3554 = vpow.pop %v3553
        %v3555 = vmul.f32 %v3325, 1.442695
        %v3556 = vpow.pop %v3555
        %v3557 = vmul.f32 %v3326, 1.442695
        %v3558 = vpow.pop %v3557
        %v3559 = vmul.f32 %v3327, 1.442695
        %v3560 = vpow.pop %v3559
        %v3561 = vmul.f32 %v3328, 1.442695
        %v3562 = vpow.pop %v3561
        %v3563 = vmul.f32 %v3329, 1.442695
        %v3564 = vpow.pop %v3563
        %v3565 = vmul.f32 %v3330, 1.442695
        %v3566 = vpow.pop %v3565
        %v3567 = vmul.f32 %v3331, 1.442695
        %v3568 = vpow.pop %v3567
        %v3569 = vmul.f32 %v3332, 1.442695
        %v3570 = vpow.pop %v3569
        %v3571 = vmul.f32 %v3333, 1.442695
        %v3572 = vpow.pop %v3571
        %v3573 = vmul.f32 %v3334, 1.442695
        %v3574 = vpow.pop %v3573
        %v3575 = vmul.f32 %v3335, 1.442695
        %v3576 = vpow.pop %v3575
        %v3577 = vmul.f32 %v3336, 1.442695
        %v3578 = vpow.pop %v3577
        %v3579 = vmul.f32 %v3337, 1.442695
        %v3580 = vpow.pop %v3579
        %v3581 = vmul.f32 %v3338, 1.442695
        %v3582 = vpow.pop %v3581
        %v3583 = vmul.f32 %v3339, 1.442695
        %v3584 = vpow.pop %v3583
        %v3585 = vmul.f32 %v3340, 1.442695
        %v3586 = vpow.pop %v3585
        %v3587 = vmul.f32 %v3341, 1.442695
        %v3588 = vpow.pop %v3587
        %v3589 = vmul.f32 %v3342, 1.442695
        %v3590 = vpow.pop %v3589
        %v3591 = vmul.f32 %v3343, 1.442695
        %v3592 = vpow.pop %v3591
        %v3593 = vmul.f32 %v3344, 1.442695
        %v3594 = vpow.pop %v3593
        %v3595 = vmul.f32 %v3345, 1.442695
        %v3596 = vpow.pop %v3595
        %v3597 = vmul.f32 %v3346, 1.442695
        %v3598 = vpow.pop %v3597
        %v3599 = vmul.f32 %v3347, 1.442695
        %v3600 = vpow.pop %v3599
        %v3601 = vmul.f32 %v3348, 1.442695
        %v3602 = vpow.pop %v3601
        %v3603 = vmul.f32 %v3349, 1.442695
        %v3604 = vpow.pop %v3603
        %v3605 = vmul.f32 %v3350, 1.442695
        %v3606 = vpow.pop %v3605
        %v3607 = vsub.f32 1.0, %v3352
        %v3608 = vsub.f32 1.0, %v3354
        %v3609 = vsub.f32 1.0, %v3356
        %v3610 = vsub.f32 1.0, %v3358
        %v3611 = vsub.f32 1.0, %v3360
        %v3612 = vsub.f32 1.0, %v3362
        %v3613 = vsub.f32 1.0, %v3364
        %v3614 = vsub.f32 1.0, %v3366
        %v3615 = vsub.f32 1.0, %v3368
        %v3616 = vsub.f32 1.0, %v3370
        %v3617 = vsub.f32 1.0, %v3372
        %v3618 = vsub.f32 1.0, %v3374
        %v3619 = vsub.f32 1.0, %v3376
        %v3620 = vsub.f32 1.0, %v3378
        %v3621 = vsub.f32 1.0, %v3380
        %v3622 = vsub.f32 1.0, %v3382
        %v3623 = vsub.f32 1.0, %v3384
        %v3624 = vsub.f32 1.0, %v3386
        %v3625 = vsub.f32 1.0, %v3388
        %v3626 = vsub.f32 1.0, %v3390
        %v3627 = vsub.f32 1.0, %v3392
        %v3628 = vsub.f32 1.0, %v3394
        %v3629 = vsub.f32 1.0, %v3396
        %v3630 = vsub.f32 1.0, %v3398
        %v3631 = vsub.f32 1.0, %v3400
        %v3632 = vsub.f32 1.0, %v3402
        %v3633 = vsub.f32 1.0, %v3404
        %v3634 = vsub.f32 1.0, %v3406
        %v3635 = vsub.f32 1.0, %v3408
        %v3636 = vsub.f32 1.0, %v3410
        %v3637 = vsub.f32 1.0, %v3412
        %v3638 = vsub.f32 1.0, %v3414
        %v3639 = vsub.f32 1.0, %v3416
        %v3640 = vsub.f32 1.0, %v3418
        %v3641 = vsub.f32 1.0, %v3420
        %v3642 = vsub.f32 1.0, %v3422
        %v3643 = vsub.f32 1.0, %v3424
        %v3644 = vsub.f32 1.0, %v3426
        %v3645 = vsub.f32 1.0, %v3428
        %v3646 = vsub.f32 1.0, %v3430
        %v3647 = vsub.f32 1.0, %v3432
        %v3648 = vsub.f32 1.0, %v3434
        %v3649 = vsub.f32 1.0, %v3436
        %v3650 = vsub.f32 1.0, %v3438
        %v3651 = vsub.f32 1.0, %v3440
        %v3652 = vsub.f32 1.0, %v3442
        %v3653 = vsub.f32 1.0, %v3444
        %v3654 = vsub.f32 1.0, %v3446
        %v3655 = vsub.f32 1.0, %v3448
        %v3656 = vsub.f32 1.0, %v3450
        %v3657 = vsub.f32 1.0, %v3452
        %v3658 = vsub.f32 1.0, %v3454
        %v3659 = vsub.f32 1.0, %v3456
        %v3660 = vsub.f32 1.0, %v3458
        %v3661 = vsub.f32 1.0, %v3460
        %v3662 = vsub.f32 1.0, %v3462
        %v3663 = vsub.f32 1.0, %v3464
        %v3664 = vsub.f32 1.0, %v3466
        %v3665 = vsub.f32 1.0, %v3468
        %v3666 = vsub.f32 1.0, %v3470
        %v3667 = vsub.f32 1.0, %v3472
        %v3668 = vsub.f32 1.0, %v3474
        %v3669 = vsub.f32 1.0, %v3476
        %v3670 = vsub.f32 1.0, %v3478
        %v3671 = vsub.f32 1.0, %v3480
        %v3672 = vsub.f32 1.0, %v3482
        %v3673 = vsub.f32 1.0, %v3484
        %v3674 = vsub.f32 1.0, %v3486
        %v3675 = vsub.f32 1.0, %v3488
        %v3676 = vsub.f32 1.0, %v3490
        %v3677 = vsub.f32 1.0, %v3492
        %v3678 = vsub.f32 1.0, %v3494
        %v3679 = vsub.f32 1.0, %v3496
        %v3680 = vsub.f32 1.0, %v3498
        %v3681 = vsub.f32 1.0, %v3500
        %v3682 = vsub.f32 1.0, %v3502
        %v3683 = vsub.f32 1.0, %v3504
        %v3684 = vsub.f32 1.0, %v3506
        %v3685 = vsub.f32 1.0, %v3508
        %v3686 = vsub.f32 1.0, %v3510
        %v3687 = vsub.f32 1.0, %v3512
        %v3688 = vsub.f32 1.0, %v3514
        %v3689 = vsub.f32 1.0, %v3516
        %v3690 = vsub.f32 1.0, %v3518
        %v3691 = vsub.f32 1.0, %v3520
        %v3692 = vsub.f32 1.0, %v3522
        %v3693 = vsub.f32 1.0, %v3524
        %v3694 = vsub.f32 1.0, %v3526
        %v3695 = vsub.f32 1.0, %v3528
        %v3696 = vsub.f32 1.0, %v3530
        %v3697 = vsub.f32 1.0, %v3532
        %v3698 = vsub.f32 1.0, %v3534
        %v3699 = vsub.f32 1.0, %v3536
        %v3700 = vsub.f32 1.0, %v3538
        %v3701 = vsub.f32 1.0, %v3540
        %v3702 = vsub.f32 1.0, %v3542
        %v3703 = vsub.f32 1.0, %v3544
        %v3704 = vsub.f32 1.0, %v3546
        %v3705 = vsub.f32 1.0, %v3548
        %v3706 = vsub.f32 1.0, %v3550
        %v3707 = vsub.f32 1.0, %v3552
        %v3708 = vsub.f32 1.0, %v3554
        %v3709 = vsub.f32 1.0, %v3556
        %v3710 = vsub.f32 1.0, %v3558
        %v3711 = vsub.f32 1.0, %v3560
        %v3712 = vsub.f32 1.0, %v3562
        %v3713 = vsub.f32 1.0, %v3564
        %v3714 = vsub.f32 1.0, %v3566
        %v3715 = vsub.f32 1.0, %v3568
        %v3716 = vsub.f32 1.0, %v3570
        %v3717 = vsub.f32 1.0, %v3572
        %v3718 = vsub.f32 1.0, %v3574
        %v3719 = vsub.f32 1.0, %v3576
        %v3720 = vsub.f32 1.0, %v3578
        %v3721 = vsub.f32 1.0, %v3580
        %v3722 = vsub.f32 1.0, %v3582
        %v3723 = vsub.f32 1.0, %v3584
        %v3724 = vsub.f32 1.0, %v3586
        %v3725 = vsub.f32 1.0, %v3588
        %v3726 = vsub.f32 1.0, %v3590
        %v3727 = vsub.f32 1.0, %v3592
        %v3728 = vsub.f32 1.0, %v3594
        %v3729 = vsub.f32 1.0, %v3596
        %v3730 = vsub.f32 1.0, %v3598
        %v3731 = vsub.f32 1.0, %v3600
        %v3732 = vsub.f32 1.0, %v3602
        %v3733 = vsub.f32 1.0, %v3604
        %v3734 = vsub.f32 1.0, %v3606
        %v3735 = vmul.f32 %v2840, %v3607
        %v3736 = vmul.f32 %v2842, %v3608
        %v3737 = vmul.f32 %v2844, %v3609
        %v3738 = vmul.f32 %v2846, %v3610
        %v3739 = vmul.f32 %v2848, %v3611
        %v3740 = vmul.f32 %v2850, %v3612
        %v3741 = vmul.f32 %v2852, %v3613
        %v3742 = vmul.f32 %v2854, %v3614
        %v3743 = vmul.f32 %v2856, %v3615
        %v3744 = vmul.f32 %v2858, %v3616
        %v3745 = vmul.f32 %v2860, %v3617
        %v3746 = vmul.f32 %v2862, %v3618
        %v3747 = vmul.f32 %v2864, %v3619
        %v3748 = vmul.f32 %v2866, %v3620
        %v3749 = vmul.f32 %v2868, %v3621
        %v3750 = vmul.f32 %v2870, %v3622
        %v3751 = vmul.f32 %v2872, %v3623
        %v3752 = vmul.f32 %v2874, %v3624
        %v3753 = vmul.f32 %v2876, %v3625
        %v3754 = vmul.f32 %v2878, %v3626
        %v3755 = vmul.f32 %v2880, %v3627
        %v3756 = vmul.f32 %v2882, %v3628
        %v3757 = vmul.f32 %v2884, %v3629
        %v3758 = vmul.f32 %v2886, %v3630
        %v3759 = vmul.f32 %v2888, %v3631
        %v3760 = vmul.f32 %v2890, %v3632
        %v3761 = vmul.f32 %v2892, %v3633
        %v3762 = vmul.f32 %v2894, %v3634
        %v3763 = vmul.f32 %v2896, %v3635
        %v3764 = vmul.f32 %v2898, %v3636
        %v3765 = vmul.f32 %v2900, %v3637
        %v3766 = vmul.f32 %v2902, %v3638
        %v3767 = vmul.f32 %v2904, %v3639
        %v3768 = vmul.f32 %v2906, %v3640
        %v3769 = vmul.f32 %v2908, %v3641
        %v3770 = vmul.f32 %v2910, %v3642
        %v3771 = vmul.f32 %v2912, %v3643
        %v3772 = vmul.f32 %v2914, %v3644
        %v3773 = vmul.f32 %v2916, %v3645
        %v3774 = vmul.f32 %v2918, %v3646
        %v3775 = vmul.f32 %v2920, %v3647
        %v3776 = vmul.f32 %v2922, %v3648
        %v3777 = vmul.f32 %v2924, %v3649
        %v3778 = vmul.f32 %v2926, %v3650
        %v3779 = vmul.f32 %v2928, %v3651
        %v3780 = vmul.f32 %v2930, %v3652
        %v3781 = vmul.f32 %v2932, %v3653
        %v3782 = vmul.f32 %v2934, %v3654
        %v3783 = vmul.f32 %v2936, %v3655
        %v3784 = vmul.f32 %v2938, %v3656
        %v3785 = vmul.f32 %v2940, %v3657
        %v3786 = vmul.f32 %v2942, %v3658
        %v3787 = vmul.f32 %v2944, %v3659
        %v3788 = vmul.f32 %v2946, %v3660
        %v3789 = vmul.f32 %v2948, %v3661
        %v3790 = vmul.f32 %v2950, %v3662
        %v3791 = vmul.f32 %v2952, %v3663
        %v3792 = vmul.f32 %v2954, %v3664
        %v3793 = vmul.f32 %v2956, %v3665
        %v3794 = vmul.f32 %v2958, %v3666
        %v3795 = vmul.f32 %v2960, %v3667
        %v3796 = vmul.f32 %v2962, %v3668
        %v3797 = vmul.f32 %v2964, %v3669
        %v3798 = vmul.f32 %v2966, %v3670
        %v3799 = vmul.f32 %v2968, %v3671
        %v3800 = vmul.f32 %v2970, %v3672
        %v3801 = vmul.f32 %v2972, %v3673
        %v3802 = vmul.f32 %v2974, %v3674
        %v3803 = vmul.f32 %v2976, %v3675
        %v3804 = vmul.f32 %v2978, %v3676
        %v3805 = vmul.f32 %v2980, %v3677
        %v3806 = vmul.f32 %v2982, %v3678
        %v3807 = vmul.f32 %v2984, %v3679
        %v3808 = vmul.f32 %v2986, %v3680
        %v3809 = vmul.f32 %v2988, %v3681
        %v3810 = vmul.f32 %v2990, %v3682
        %v3811 = vmul.f32 %v2992, %v3683
        %v3812 = vmul.f32 %v2994, %v3684
        %v3813 = vmul.f32 %v2996, %v3685
        %v3814 = vmul.f32 %v2998, %v3686
        %v3815 = vmul.f32 %v3000, %v3687
        %v3816 = vmul.f32 %v3002, %v3688
        %v3817 = vmul.f32 %v3004, %v3689
        %v3818 = vmul.f32 %v3006, %v3690
        %v3819 = vmul.f32 %v3008, %v3691
        %v3820 = vmul.f32 %v3010, %v3692
        %v3821 = vmul.f32 %v3012, %v3693
        %v3822 = vmul.f32 %v3014, %v3694
        %v3823 = vmul.f32 %v3016, %v3695
        %v3824 = vmul.f32 %v3018, %v3696
        %v3825 = vmul.f32 %v3020, %v3697
        %v3826 = vmul.f32 %v3022, %v3698
        %v3827 = vmul.f32 %v3024, %v3699
        %v3828 = vmul.f32 %v3026, %v3700
        %v3829 = vmul.f32 %v3028, %v3701
        %v3830 = vmul.f32 %v3030, %v3702
        %v3831 = vmul.f32 %v3032, %v3703
        %v3832 = vmul.f32 %v3034, %v3704
        %v3833 = vmul.f32 %v3036, %v3705
        %v3834 = vmul.f32 %v3038, %v3706
        %v3835 = vmul.f32 %v3040, %v3707
        %v3836 = vmul.f32 %v3042, %v3708
        %v3837 = vmul.f32 %v3044, %v3709
        %v3838 = vmul.f32 %v3046, %v3710
        %v3839 = vmul.f32 %v3048, %v3711
        %v3840 = vmul.f32 %v3050, %v3712
        %v3841 = vmul.f32 %v3052, %v3713
        %v3842 = vmul.f32 %v3054, %v3714
        %v3843 = vmul.f32 %v3056, %v3715
        %v3844 = vmul.f32 %v3058, %v3716
        %v3845 = vmul.f32 %v3060, %v3717
        %v3846 = vmul.f32 %v3062, %v3718
        %v3847 = vmul.f32 %v3064, %v3719
        %v3848 = vmul.f32 %v3066, %v3720
        %v3849 = vmul.f32 %v3068, %v3721
        %v3850 = vmul.f32 %v3070, %v3722
        %v3851 = vmul.f32 %v3072, %v3723
        %v3852 = vmul.f32 %v3074, %v3724
        %v3853 = vmul.f32 %v3076, %v3725
        %v3854 = vmul.f32 %v3078, %v3726
        %v3855 = vmul.f32 %v3080, %v3727
        %v3856 = vmul.f32 %v3082, %v3728
        %v3857 = vmul.f32 %v3084, %v3729
        %v3858 = vmul.f32 %v3086, %v3730
        %v3859 = vmul.f32 %v3088, %v3731
        %v3860 = vmul.f32 %v3090, %v3732
        %v3861 = vmul.f32 %v3092, %v3733
        %v3862 = vmul.f32 %v3094, %v3734
        %v3863 = vmul.f32 %v3735, 4.5208116
        %v3864 = vmul.f32 %v3736, 4.5208116
        %v3865 = vmul.f32 %v3737, 4.5208116
        %v3866 = vmul.f32 %v3738, 4.5208116
        %v3867 = vmul.f32 %v3739, 4.5208116
        %v3868 = vmul.f32 %v3740, 4.5208116
        %v3869 = vmul.f32 %v3741, 4.5208116
        %v3870 = vmul.f32 %v3742, 4.5208116
        %v3871 = vmul.f32 %v3743, 4.5208116
        %v3872 = vmul.f32 %v3744, 4.5208116
        %v3873 = vmul.f32 %v3745, 4.5208116
        %v3874 = vmul.f32 %v3746, 4.5208116
        %v3875 = vmul.f32 %v3747, 4.5208116
        %v3876 = vmul.f32 %v3748, 4.5208116
        %v3877 = vmul.f32 %v3749, 4.5208116
        %v3878 = vmul.f32 %v3750, 4.5208116
        %v3879 = vmul.f32 %v3751, 4.5208116
        %v3880 = vmul.f32 %v3752, 4.5208116
        %v3881 = vmul.f32 %v3753, 4.5208116
        %v3882 = vmul.f32 %v3754, 4.5208116
        %v3883 = vmul.f32 %v3755, 4.5208116
        %v3884 = vmul.f32 %v3756, 4.5208116
        %v3885 = vmul.f32 %v3757, 4.5208116
        %v3886 = vmul.f32 %v3758, 4.5208116
        %v3887 = vmul.f32 %v3759, 4.5208116
        %v3888 = vmul.f32 %v3760, 4.5208116
        %v3889 = vmul.f32 %v3761, 4.5208116
        %v3890 = vmul.f32 %v3762, 4.5208116
        %v3891 = vmul.f32 %v3763, 4.5208116
        %v3892 = vmul.f32 %v3764, 4.5208116
        %v3893 = vmul.f32 %v3765, 4.5208116
        %v3894 = vmul.f32 %v3766, 4.5208116
        %v3895 = vmul.f32 %v3767, 4.5208116
        %v3896 = vmul.f32 %v3768, 4.5208116
        %v3897 = vmul.f32 %v3769, 4.5208116
        %v3898 = vmul.f32 %v3770, 4.5208116
        %v3899 = vmul.f32 %v3771, 4.5208116
        %v3900 = vmul.f32 %v3772, 4.5208116
        %v3901 = vmul.f32 %v3773, 4.5208116
        %v3902 = vmul.f32 %v3774, 4.5208116
        %v3903 = vmul.f32 %v3775, 4.5208116
        %v3904 = vmul.f32 %v3776, 4.5208116
        %v3905 = vmul.f32 %v3777, 4.5208116
        %v3906 = vmul.f32 %v3778, 4.5208116
        %v3907 = vmul.f32 %v3779, 4.5208116
        %v3908 = vmul.f32 %v3780, 4.5208116
        %v3909 = vmul.f32 %v3781, 4.5208116
        %v3910 = vmul.f32 %v3782, 4.5208116
        %v3911 = vmul.f32 %v3783, 4.5208116
        %v3912 = vmul.f32 %v3784, 4.5208116
        %v3913 = vmul.f32 %v3785, 4.5208116
        %v3914 = vmul.f32 %v3786, 4.5208116
        %v3915 = vmul.f32 %v3787, 4.5208116
        %v3916 = vmul.f32 %v3788, 4.5208116
        %v3917 = vmul.f32 %v3789, 4.5208116
        %v3918 = vmul.f32 %v3790, 4.5208116
        %v3919 = vmul.f32 %v3791, 4.5208116
        %v3920 = vmul.f32 %v3792, 4.5208116
        %v3921 = vmul.f32 %v3793, 4.5208116
        %v3922 = vmul.f32 %v3794, 4.5208116
        %v3923 = vmul.f32 %v3795, 4.5208116
        %v3924 = vmul.f32 %v3796, 4.5208116
        %v3925 = vmul.f32 %v3797, 4.5208116
        %v3926 = vmul.f32 %v3798, 4.5208116
        %v3927 = vmul.f32 %v3799, 4.5208116
        %v3928 = vmul.f32 %v3800, 4.5208116
        %v3929 = vmul.f32 %v3801, 4.5208116
        %v3930 = vmul.f32 %v3802, 4.5208116
        %v3931 = vmul.f32 %v3803, 4.5208116
        %v3932 = vmul.f32 %v3804, 4.5208116
        %v3933 = vmul.f32 %v3805, 4.5208116
        %v3934 = vmul.f32 %v3806, 4.5208116
        %v3935 = vmul.f32 %v3807, 4.5208116
        %v3936 = vmul.f32 %v3808, 4.5208116
        %v3937 = vmul.f32 %v3809, 4.5208116
        %v3938 = vmul.f32 %v3810, 4.5208116
        %v3939 = vmul.f32 %v3811, 4.5208116
        %v3940 = vmul.f32 %v3812, 4.5208116
        %v3941 = vmul.f32 %v3813, 4.5208116
        %v3942 = vmul.f32 %v3814, 4.5208116
        %v3943 = vmul.f32 %v3815, 4.5208116
        %v3944 = vmul.f32 %v3816, 4.5208116
        %v3945 = vmul.f32 %v3817, 4.5208116
        %v3946 = vmul.f32 %v3818, 4.5208116
        %v3947 = vmul.f32 %v3819, 4.5208116
        %v3948 = vmul.f32 %v3820, 4.5208116
        %v3949 = vmul.f32 %v3821, 4.5208116
        %v3950 = vmul.f32 %v3822, 4.5208116
        %v3951 = vmul.f32 %v3823, 4.5208116
        %v3952 = vmul.f32 %v3824, 4.5208116
        %v3953 = vmul.f32 %v3825, 4.5208116
        %v3954 = vmul.f32 %v3826, 4.5208116
        %v3955 = vmul.f32 %v3827, 4.5208116
        %v3956 = vmul.f32 %v3828, 4.5208116
        %v3957 = vmul.f32 %v3829, 4.5208116
        %v3958 = vmul.f32 %v3830, 4.5208116
        %v3959 = vmul.f32 %v3831, 4.5208116
        %v3960 = vmul.f32 %v3832, 4.5208116
        %v3961 = vmul.f32 %v3833, 4.5208116
        %v3962 = vmul.f32 %v3834, 4.5208116
        %v3963 = vmul.f32 %v3835, 4.5208116
        %v3964 = vmul.f32 %v3836, 4.5208116
        %v3965 = vmul.f32 %v3837, 4.5208116
        %v3966 = vmul.f32 %v3838, 4.5208116
        %v3967 = vmul.f32 %v3839, 4.5208116
        %v3968 = vmul.f32 %v3840, 4.5208116
        %v3969 = vmul.f32 %v3841, 4.5208116
        %v3970 = vmul.f32 %v3842, 4.5208116
        %v3971 = vmul.f32 %v3843, 4.5208116
        %v3972 = vmul.f32 %v3844, 4.5208116
        %v3973 = vmul.f32 %v3845, 4.5208116
        %v3974 = vmul.f32 %v3846, 4.5208116
        %v3975 = vmul.f32 %v3847, 4.5208116
        %v3976 = vmul.f32 %v3848, 4.5208116
        %v3977 = vmul.f32 %v3849, 4.5208116
        %v3978 = vmul.f32 %v3850, 4.5208116
        %v3979 = vmul.f32 %v3851, 4.5208116
        %v3980 = vmul.f32 %v3852, 4.5208116
        %v3981 = vmul.f32 %v3853, 4.5208116
        %v3982 = vmul.f32 %v3854, 4.5208116
        %v3983 = vmul.f32 %v3855, 4.5208116
        %v3984 = vmul.f32 %v3856, 4.5208116
        %v3985 = vmul.f32 %v3857, 4.5208116
        %v3986 = vmul.f32 %v3858, 4.5208116
        %v3987 = vmul.f32 %v3859, 4.5208116
        %v3988 = vmul.f32 %v3860, 4.5208116
        %v3989 = vmul.f32 %v3861, 4.5208116
        %v3990 = vmul.f32 %v3862, 4.5208116
        %v3991 = vrcp.pop %v2455
        %v3992 = vmul.f32 %v2455, %v3991
        %v3993 = vsub.f32 1.0, %v3992
        %v3994 = vmul.f32 %v3991, %v3993
        %v3995 = vadd.f32 %v3991, %v3994
        %vm3996 = vweird.f32 %v2455
        %vm3997 = vweird.f32 %v3991
        %vm3998 = vmor %vm3996, %vm3997
        %v3999 = vsel %vm3998, %v3991, %v3995
        %v4000 = vand.u32 2147483647, %v2455
        %vm4001 = vcmp.eq.f32.partialorder %v4000, 8.507059e+37
        %v4002 = vand.u32 %v2455, 2147483648
        %v4003 = vor.u32 1.1754944e-38, %v4002
        %v4004 = vsel %vm4001, %v4003, %v3999
        %v4005 = vmul.f32 %v3863, %v4004
        %v4006 = vrcp.pop %v2456
        %v4007 = vmul.f32 %v2456, %v4006
        %v4008 = vsub.f32 1.0, %v4007
        %v4009 = vmul.f32 %v4006, %v4008
        %v4010 = vadd.f32 %v4006, %v4009
        %vm4011 = vweird.f32 %v2456
        %vm4012 = vweird.f32 %v4006
        %vm4013 = vmor %vm4011, %vm4012
        %v4014 = vsel %vm4013, %v4006, %v4010
        %v4015 = vand.u32 2147483647, %v2456
        %vm4016 = vcmp.eq.f32.partialorder %v4015, 8.507059e+37
        %v4017 = vand.u32 %v2456, 2147483648
        %v4018 = vor.u32 1.1754944e-38, %v4017
        %v4019 = vsel %vm4016, %v4018, %v4014
        %v4020 = vmul.f32 %v3864, %v4019
        %v4021 = vrcp.pop %v2457
        %v4022 = vmul.f32 %v2457, %v4021
        %v4023 = vsub.f32 1.0, %v4022
        %v4024 = vmul.f32 %v4021, %v4023
        %v4025 = vadd.f32 %v4021, %v4024
        %vm4026 = vweird.f32 %v2457
        %vm4027 = vweird.f32 %v4021
        %vm4028 = vmor %vm4026, %vm4027
        %v4029 = vsel %vm4028, %v4021, %v4025
        %v4030 = vand.u32 2147483647, %v2457
        %vm4031 = vcmp.eq.f32.partialorder %v4030, 8.507059e+37
        %v4032 = vand.u32 %v2457, 2147483648
        %v4033 = vor.u32 1.1754944e-38, %v4032
        %v4034 = vsel %vm4031, %v4033, %v4029
        %v4035 = vmul.f32 %v3865, %v4034
        %v4036 = vrcp.pop %v2458
        %v4037 = vmul.f32 %v2458, %v4036
        %v4038 = vsub.f32 1.0, %v4037
        %v4039 = vmul.f32 %v4036, %v4038
        %v4040 = vadd.f32 %v4036, %v4039
        %vm4041 = vweird.f32 %v2458
        %vm4042 = vweird.f32 %v4036
        %vm4043 = vmor %vm4041, %vm4042
        %v4044 = vsel %vm4043, %v4036, %v4040
        %v4045 = vand.u32 2147483647, %v2458
        %vm4046 = vcmp.eq.f32.partialorder %v4045, 8.507059e+37
        %v4047 = vand.u32 %v2458, 2147483648
        %v4048 = vor.u32 1.1754944e-38, %v4047
        %v4049 = vsel %vm4046, %v4048, %v4044
        %v4050 = vmul.f32 %v3866, %v4049
        %v4051 = vrcp.pop %v2459
        %v4052 = vmul.f32 %v2459, %v4051
        %v4053 = vsub.f32 1.0, %v4052
        %v4054 = vmul.f32 %v4051, %v4053
        %v4055 = vadd.f32 %v4051, %v4054
        %vm4056 = vweird.f32 %v2459
        %vm4057 = vweird.f32 %v4051
        %vm4058 = vmor %vm4056, %vm4057
        %v4059 = vsel %vm4058, %v4051, %v4055
        %v4060 = vand.u32 2147483647, %v2459
        %vm4061 = vcmp.eq.f32.partialorder %v4060, 8.507059e+37
        %v4062 = vand.u32 %v2459, 2147483648
        %v4063 = vor.u32 1.1754944e-38, %v4062
        %v4064 = vsel %vm4061, %v4063, %v4059
        %v4065 = vmul.f32 %v3867, %v4064
        %v4066 = vrcp.pop %v2460
        %v4067 = vmul.f32 %v2460, %v4066
        %v4068 = vsub.f32 1.0, %v4067
        %v4069 = vmul.f32 %v4066, %v4068
        %v4070 = vadd.f32 %v4066, %v4069
        %vm4071 = vweird.f32 %v2460
        %vm4072 = vweird.f32 %v4066
        %vm4073 = vmor %vm4071, %vm4072
        %v4074 = vsel %vm4073, %v4066, %v4070
        %v4075 = vand.u32 2147483647, %v2460
        %vm4076 = vcmp.eq.f32.partialorder %v4075, 8.507059e+37
        %v4077 = vand.u32 %v2460, 2147483648
        %v4078 = vor.u32 1.1754944e-38, %v4077
        %v4079 = vsel %vm4076, %v4078, %v4074
        %v4080 = vmul.f32 %v3868, %v4079
        %v4081 = vrcp.pop %v2461
        %v4082 = vmul.f32 %v2461, %v4081
        %v4083 = vsub.f32 1.0, %v4082
        %v4084 = vmul.f32 %v4081, %v4083
        %v4085 = vadd.f32 %v4081, %v4084
        %vm4086 = vweird.f32 %v2461
        %vm4087 = vweird.f32 %v4081
        %vm4088 = vmor %vm4086, %vm4087
        %v4089 = vsel %vm4088, %v4081, %v4085
        %v4090 = vand.u32 2147483647, %v2461
        %vm4091 = vcmp.eq.f32.partialorder %v4090, 8.507059e+37
        %v4092 = vand.u32 %v2461, 2147483648
        %v4093 = vor.u32 1.1754944e-38, %v4092
        %v4094 = vsel %vm4091, %v4093, %v4089
        %v4095 = vmul.f32 %v3869, %v4094
        %v4096 = vrcp.pop %v2462
        %v4097 = vmul.f32 %v2462, %v4096
        %v4098 = vsub.f32 1.0, %v4097
        %v4099 = vmul.f32 %v4096, %v4098
        %v4100 = vadd.f32 %v4096, %v4099
        %vm4101 = vweird.f32 %v2462
        %vm4102 = vweird.f32 %v4096
        %vm4103 = vmor %vm4101, %vm4102
        %v4104 = vsel %vm4103, %v4096, %v4100
        %v4105 = vand.u32 2147483647, %v2462
        %vm4106 = vcmp.eq.f32.partialorder %v4105, 8.507059e+37
        %v4107 = vand.u32 %v2462, 2147483648
        %v4108 = vor.u32 1.1754944e-38, %v4107
        %v4109 = vsel %vm4106, %v4108, %v4104
        %v4110 = vmul.f32 %v3870, %v4109
        %v4111 = vrcp.pop %v2463
        %v4112 = vmul.f32 %v2463, %v4111
        %v4113 = vsub.f32 1.0, %v4112
        %v4114 = vmul.f32 %v4111, %v4113
        %v4115 = vadd.f32 %v4111, %v4114
        %vm4116 = vweird.f32 %v2463
        %vm4117 = vweird.f32 %v4111
        %vm4118 = vmor %vm4116, %vm4117
        %v4119 = vsel %vm4118, %v4111, %v4115
        %v4120 = vand.u32 2147483647, %v2463
        %vm4121 = vcmp.eq.f32.partialorder %v4120, 8.507059e+37
        %v4122 = vand.u32 %v2463, 2147483648
        %v4123 = vor.u32 1.1754944e-38, %v4122
        %v4124 = vsel %vm4121, %v4123, %v4119
        %v4125 = vmul.f32 %v3871, %v4124
        %v4126 = vrcp.pop %v2464
        %v4127 = vmul.f32 %v2464, %v4126
        %v4128 = vsub.f32 1.0, %v4127
        %v4129 = vmul.f32 %v4126, %v4128
        %v4130 = vadd.f32 %v4126, %v4129
        %vm4131 = vweird.f32 %v2464
        %vm4132 = vweird.f32 %v4126
        %vm4133 = vmor %vm4131, %vm4132
        %v4134 = vsel %vm4133, %v4126, %v4130
        %v4135 = vand.u32 2147483647, %v2464
        %vm4136 = vcmp.eq.f32.partialorder %v4135, 8.507059e+37
        %v4137 = vand.u32 %v2464, 2147483648
        %v4138 = vor.u32 1.1754944e-38, %v4137
        %v4139 = vsel %vm4136, %v4138, %v4134
        %v4140 = vmul.f32 %v3872, %v4139
        %v4141 = vrcp.pop %v2465
        %v4142 = vmul.f32 %v2465, %v4141
        %v4143 = vsub.f32 1.0, %v4142
        %v4144 = vmul.f32 %v4141, %v4143
        %v4145 = vadd.f32 %v4141, %v4144
        %vm4146 = vweird.f32 %v2465
        %vm4147 = vweird.f32 %v4141
        %vm4148 = vmor %vm4146, %vm4147
        %v4149 = vsel %vm4148, %v4141, %v4145
        %v4150 = vand.u32 2147483647, %v2465
        %vm4151 = vcmp.eq.f32.partialorder %v4150, 8.507059e+37
        %v4152 = vand.u32 %v2465, 2147483648
        %v4153 = vor.u32 1.1754944e-38, %v4152
        %v4154 = vsel %vm4151, %v4153, %v4149
        %v4155 = vmul.f32 %v3873, %v4154
        %v4156 = vrcp.pop %v2466
        %v4157 = vmul.f32 %v2466, %v4156
        %v4158 = vsub.f32 1.0, %v4157
        %v4159 = vmul.f32 %v4156, %v4158
        %v4160 = vadd.f32 %v4156, %v4159
        %vm4161 = vweird.f32 %v2466
        %vm4162 = vweird.f32 %v4156
        %vm4163 = vmor %vm4161, %vm4162
        %v4164 = vsel %vm4163, %v4156, %v4160
        %v4165 = vand.u32 2147483647, %v2466
        %vm4166 = vcmp.eq.f32.partialorder %v4165, 8.507059e+37
        %v4167 = vand.u32 %v2466, 2147483648
        %v4168 = vor.u32 1.1754944e-38, %v4167
        %v4169 = vsel %vm4166, %v4168, %v4164
        %v4170 = vmul.f32 %v3874, %v4169
        %v4171 = vrcp.pop %v2467
        %v4172 = vmul.f32 %v2467, %v4171
        %v4173 = vsub.f32 1.0, %v4172
        %v4174 = vmul.f32 %v4171, %v4173
        %v4175 = vadd.f32 %v4171, %v4174
        %vm4176 = vweird.f32 %v2467
        %vm4177 = vweird.f32 %v4171
        %vm4178 = vmor %vm4176, %vm4177
        %v4179 = vsel %vm4178, %v4171, %v4175
        %v4180 = vand.u32 2147483647, %v2467
        %vm4181 = vcmp.eq.f32.partialorder %v4180, 8.507059e+37
        %v4182 = vand.u32 %v2467, 2147483648
        %v4183 = vor.u32 1.1754944e-38, %v4182
        %v4184 = vsel %vm4181, %v4183, %v4179
        %v4185 = vmul.f32 %v3875, %v4184
        %v4186 = vrcp.pop %v2468
        %v4187 = vmul.f32 %v2468, %v4186
        %v4188 = vsub.f32 1.0, %v4187
        %v4189 = vmul.f32 %v4186, %v4188
        %v4190 = vadd.f32 %v4186, %v4189
        %vm4191 = vweird.f32 %v2468
        %vm4192 = vweird.f32 %v4186
        %vm4193 = vmor %vm4191, %vm4192
        %v4194 = vsel %vm4193, %v4186, %v4190
        %v4195 = vand.u32 2147483647, %v2468
        %vm4196 = vcmp.eq.f32.partialorder %v4195, 8.507059e+37
        %v4197 = vand.u32 %v2468, 2147483648
        %v4198 = vor.u32 1.1754944e-38, %v4197
        %v4199 = vsel %vm4196, %v4198, %v4194
        %v4200 = vmul.f32 %v3876, %v4199
        %v4201 = vrcp.pop %v2469
        %v4202 = vmul.f32 %v2469, %v4201
        %v4203 = vsub.f32 1.0, %v4202
        %v4204 = vmul.f32 %v4201, %v4203
        %v4205 = vadd.f32 %v4201, %v4204
        %vm4206 = vweird.f32 %v2469
        %vm4207 = vweird.f32 %v4201
        %vm4208 = vmor %vm4206, %vm4207
        %v4209 = vsel %vm4208, %v4201, %v4205
        %v4210 = vand.u32 2147483647, %v2469
        %vm4211 = vcmp.eq.f32.partialorder %v4210, 8.507059e+37
        %v4212 = vand.u32 %v2469, 2147483648
        %v4213 = vor.u32 1.1754944e-38, %v4212
        %v4214 = vsel %vm4211, %v4213, %v4209
        %v4215 = vmul.f32 %v3877, %v4214
        %v4216 = vrcp.pop %v2470
        %v4217 = vmul.f32 %v2470, %v4216
        %v4218 = vsub.f32 1.0, %v4217
        %v4219 = vmul.f32 %v4216, %v4218
        %v4220 = vadd.f32 %v4216, %v4219
        %vm4221 = vweird.f32 %v2470
        %vm4222 = vweird.f32 %v4216
        %vm4223 = vmor %vm4221, %vm4222
        %v4224 = vsel %vm4223, %v4216, %v4220
        %v4225 = vand.u32 2147483647, %v2470
        %vm4226 = vcmp.eq.f32.partialorder %v4225, 8.507059e+37
        %v4227 = vand.u32 %v2470, 2147483648
        %v4228 = vor.u32 1.1754944e-38, %v4227
        %v4229 = vsel %vm4226, %v4228, %v4224
        %v4230 = vmul.f32 %v3878, %v4229
        %v4231 = vrcp.pop %v2471
        %v4232 = vmul.f32 %v2471, %v4231
        %v4233 = vsub.f32 1.0, %v4232
        %v4234 = vmul.f32 %v4231, %v4233
        %v4235 = vadd.f32 %v4231, %v4234
        %vm4236 = vweird.f32 %v2471
        %vm4237 = vweird.f32 %v4231
        %vm4238 = vmor %vm4236, %vm4237
        %v4239 = vsel %vm4238, %v4231, %v4235
        %v4240 = vand.u32 2147483647, %v2471
        %vm4241 = vcmp.eq.f32.partialorder %v4240, 8.507059e+37
        %v4242 = vand.u32 %v2471, 2147483648
        %v4243 = vor.u32 1.1754944e-38, %v4242
        %v4244 = vsel %vm4241, %v4243, %v4239
        %v4245 = vmul.f32 %v3879, %v4244
        %v4246 = vrcp.pop %v2472
        %v4247 = vmul.f32 %v2472, %v4246
        %v4248 = vsub.f32 1.0, %v4247
        %v4249 = vmul.f32 %v4246, %v4248
        %v4250 = vadd.f32 %v4246, %v4249
        %vm4251 = vweird.f32 %v2472
        %vm4252 = vweird.f32 %v4246
        %vm4253 = vmor %vm4251, %vm4252
        %v4254 = vsel %vm4253, %v4246, %v4250
        %v4255 = vand.u32 2147483647, %v2472
        %vm4256 = vcmp.eq.f32.partialorder %v4255, 8.507059e+37
        %v4257 = vand.u32 %v2472, 2147483648
        %v4258 = vor.u32 1.1754944e-38, %v4257
        %v4259 = vsel %vm4256, %v4258, %v4254
        %v4260 = vmul.f32 %v3880, %v4259
        %v4261 = vrcp.pop %v2473
        %v4262 = vmul.f32 %v2473, %v4261
        %v4263 = vsub.f32 1.0, %v4262
        %v4264 = vmul.f32 %v4261, %v4263
        %v4265 = vadd.f32 %v4261, %v4264
        %vm4266 = vweird.f32 %v2473
        %vm4267 = vweird.f32 %v4261
        %vm4268 = vmor %vm4266, %vm4267
        %v4269 = vsel %vm4268, %v4261, %v4265
        %v4270 = vand.u32 2147483647, %v2473
        %vm4271 = vcmp.eq.f32.partialorder %v4270, 8.507059e+37
        %v4272 = vand.u32 %v2473, 2147483648
        %v4273 = vor.u32 1.1754944e-38, %v4272
        %v4274 = vsel %vm4271, %v4273, %v4269
        %v4275 = vmul.f32 %v3881, %v4274
        %v4276 = vrcp.pop %v2474
        %v4277 = vmul.f32 %v2474, %v4276
        %v4278 = vsub.f32 1.0, %v4277
        %v4279 = vmul.f32 %v4276, %v4278
        %v4280 = vadd.f32 %v4276, %v4279
        %vm4281 = vweird.f32 %v2474
        %vm4282 = vweird.f32 %v4276
        %vm4283 = vmor %vm4281, %vm4282
        %v4284 = vsel %vm4283, %v4276, %v4280
        %v4285 = vand.u32 2147483647, %v2474
        %vm4286 = vcmp.eq.f32.partialorder %v4285, 8.507059e+37
        %v4287 = vand.u32 %v2474, 2147483648
        %v4288 = vor.u32 1.1754944e-38, %v4287
        %v4289 = vsel %vm4286, %v4288, %v4284
        %v4290 = vmul.f32 %v3882, %v4289
        %v4291 = vrcp.pop %v2475
        %v4292 = vmul.f32 %v2475, %v4291
        %v4293 = vsub.f32 1.0, %v4292
        %v4294 = vmul.f32 %v4291, %v4293
        %v4295 = vadd.f32 %v4291, %v4294
        %vm4296 = vweird.f32 %v2475
        %vm4297 = vweird.f32 %v4291
        %vm4298 = vmor %vm4296, %vm4297
        %v4299 = vsel %vm4298, %v4291, %v4295
        %v4300 = vand.u32 2147483647, %v2475
        %vm4301 = vcmp.eq.f32.partialorder %v4300, 8.507059e+37
        %v4302 = vand.u32 %v2475, 2147483648
        %v4303 = vor.u32 1.1754944e-38, %v4302
        %v4304 = vsel %vm4301, %v4303, %v4299
        %v4305 = vmul.f32 %v3883, %v4304
        %v4306 = vrcp.pop %v2476
        %v4307 = vmul.f32 %v2476, %v4306
        %v4308 = vsub.f32 1.0, %v4307
        %v4309 = vmul.f32 %v4306, %v4308
        %v4310 = vadd.f32 %v4306, %v4309
        %vm4311 = vweird.f32 %v2476
        %vm4312 = vweird.f32 %v4306
        %vm4313 = vmor %vm4311, %vm4312
        %v4314 = vsel %vm4313, %v4306, %v4310
        %v4315 = vand.u32 2147483647, %v2476
        %vm4316 = vcmp.eq.f32.partialorder %v4315, 8.507059e+37
        %v4317 = vand.u32 %v2476, 2147483648
        %v4318 = vor.u32 1.1754944e-38, %v4317
        %v4319 = vsel %vm4316, %v4318, %v4314
        %v4320 = vmul.f32 %v3884, %v4319
        %v4321 = vrcp.pop %v2477
        %v4322 = vmul.f32 %v2477, %v4321
        %v4323 = vsub.f32 1.0, %v4322
        %v4324 = vmul.f32 %v4321, %v4323
        %v4325 = vadd.f32 %v4321, %v4324
        %vm4326 = vweird.f32 %v2477
        %vm4327 = vweird.f32 %v4321
        %vm4328 = vmor %vm4326, %vm4327
        %v4329 = vsel %vm4328, %v4321, %v4325
        %v4330 = vand.u32 2147483647, %v2477
        %vm4331 = vcmp.eq.f32.partialorder %v4330, 8.507059e+37
        %v4332 = vand.u32 %v2477, 2147483648
        %v4333 = vor.u32 1.1754944e-38, %v4332
        %v4334 = vsel %vm4331, %v4333, %v4329
        %v4335 = vmul.f32 %v3885, %v4334
        %v4336 = vrcp.pop %v2478
        %v4337 = vmul.f32 %v2478, %v4336
        %v4338 = vsub.f32 1.0, %v4337
        %v4339 = vmul.f32 %v4336, %v4338
        %v4340 = vadd.f32 %v4336, %v4339
        %vm4341 = vweird.f32 %v2478
        %vm4342 = vweird.f32 %v4336
        %vm4343 = vmor %vm4341, %vm4342
        %v4344 = vsel %vm4343, %v4336, %v4340
        %v4345 = vand.u32 2147483647, %v2478
        %vm4346 = vcmp.eq.f32.partialorder %v4345, 8.507059e+37
        %v4347 = vand.u32 %v2478, 2147483648
        %v4348 = vor.u32 1.1754944e-38, %v4347
        %v4349 = vsel %vm4346, %v4348, %v4344
        %v4350 = vmul.f32 %v3886, %v4349
        %v4351 = vrcp.pop %v2479
        %v4352 = vmul.f32 %v2479, %v4351
        %v4353 = vsub.f32 1.0, %v4352
        %v4354 = vmul.f32 %v4351, %v4353
        %v4355 = vadd.f32 %v4351, %v4354
        %vm4356 = vweird.f32 %v2479
        %vm4357 = vweird.f32 %v4351
        %vm4358 = vmor %vm4356, %vm4357
        %v4359 = vsel %vm4358, %v4351, %v4355
        %v4360 = vand.u32 2147483647, %v2479
        %vm4361 = vcmp.eq.f32.partialorder %v4360, 8.507059e+37
        %v4362 = vand.u32 %v2479, 2147483648
        %v4363 = vor.u32 1.1754944e-38, %v4362
        %v4364 = vsel %vm4361, %v4363, %v4359
        %v4365 = vmul.f32 %v3887, %v4364
        %v4366 = vrcp.pop %v2480
        %v4367 = vmul.f32 %v2480, %v4366
        %v4368 = vsub.f32 1.0, %v4367
        %v4369 = vmul.f32 %v4366, %v4368
        %v4370 = vadd.f32 %v4366, %v4369
        %vm4371 = vweird.f32 %v2480
        %vm4372 = vweird.f32 %v4366
        %vm4373 = vmor %vm4371, %vm4372
        %v4374 = vsel %vm4373, %v4366, %v4370
        %v4375 = vand.u32 2147483647, %v2480
        %vm4376 = vcmp.eq.f32.partialorder %v4375, 8.507059e+37
        %v4377 = vand.u32 %v2480, 2147483648
        %v4378 = vor.u32 1.1754944e-38, %v4377
        %v4379 = vsel %vm4376, %v4378, %v4374
        %v4380 = vmul.f32 %v3888, %v4379
        %v4381 = vrcp.pop %v2481
        %v4382 = vmul.f32 %v2481, %v4381
        %v4383 = vsub.f32 1.0, %v4382
        %v4384 = vmul.f32 %v4381, %v4383
        %v4385 = vadd.f32 %v4381, %v4384
        %vm4386 = vweird.f32 %v2481
        %vm4387 = vweird.f32 %v4381
        %vm4388 = vmor %vm4386, %vm4387
        %v4389 = vsel %vm4388, %v4381, %v4385
        %v4390 = vand.u32 2147483647, %v2481
        %vm4391 = vcmp.eq.f32.partialorder %v4390, 8.507059e+37
        %v4392 = vand.u32 %v2481, 2147483648
        %v4393 = vor.u32 1.1754944e-38, %v4392
        %v4394 = vsel %vm4391, %v4393, %v4389
        %v4395 = vmul.f32 %v3889, %v4394
        %v4396 = vrcp.pop %v2482
        %v4397 = vmul.f32 %v2482, %v4396
        %v4398 = vsub.f32 1.0, %v4397
        %v4399 = vmul.f32 %v4396, %v4398
        %v4400 = vadd.f32 %v4396, %v4399
        %vm4401 = vweird.f32 %v2482
        %vm4402 = vweird.f32 %v4396
        %vm4403 = vmor %vm4401, %vm4402
        %v4404 = vsel %vm4403, %v4396, %v4400
        %v4405 = vand.u32 2147483647, %v2482
        %vm4406 = vcmp.eq.f32.partialorder %v4405, 8.507059e+37
        %v4407 = vand.u32 %v2482, 2147483648
        %v4408 = vor.u32 1.1754944e-38, %v4407
        %v4409 = vsel %vm4406, %v4408, %v4404
        %v4410 = vmul.f32 %v3890, %v4409
        %v4411 = vrcp.pop %v2483
        %v4412 = vmul.f32 %v2483, %v4411
        %v4413 = vsub.f32 1.0, %v4412
        %v4414 = vmul.f32 %v4411, %v4413
        %v4415 = vadd.f32 %v4411, %v4414
        %vm4416 = vweird.f32 %v2483
        %vm4417 = vweird.f32 %v4411
        %vm4418 = vmor %vm4416, %vm4417
        %v4419 = vsel %vm4418, %v4411, %v4415
        %v4420 = vand.u32 2147483647, %v2483
        %vm4421 = vcmp.eq.f32.partialorder %v4420, 8.507059e+37
        %v4422 = vand.u32 %v2483, 2147483648
        %v4423 = vor.u32 1.1754944e-38, %v4422
        %v4424 = vsel %vm4421, %v4423, %v4419
        %v4425 = vmul.f32 %v3891, %v4424
        %v4426 = vrcp.pop %v2484
        %v4427 = vmul.f32 %v2484, %v4426
        %v4428 = vsub.f32 1.0, %v4427
        %v4429 = vmul.f32 %v4426, %v4428
        %v4430 = vadd.f32 %v4426, %v4429
        %vm4431 = vweird.f32 %v2484
        %vm4432 = vweird.f32 %v4426
        %vm4433 = vmor %vm4431, %vm4432
        %v4434 = vsel %vm4433, %v4426, %v4430
        %v4435 = vand.u32 2147483647, %v2484
        %vm4436 = vcmp.eq.f32.partialorder %v4435, 8.507059e+37
        %v4437 = vand.u32 %v2484, 2147483648
        %v4438 = vor.u32 1.1754944e-38, %v4437
        %v4439 = vsel %vm4436, %v4438, %v4434
        %v4440 = vmul.f32 %v3892, %v4439
        %v4441 = vrcp.pop %v2485
        %v4442 = vmul.f32 %v2485, %v4441
        %v4443 = vsub.f32 1.0, %v4442
        %v4444 = vmul.f32 %v4441, %v4443
        %v4445 = vadd.f32 %v4441, %v4444
        %vm4446 = vweird.f32 %v2485
        %vm4447 = vweird.f32 %v4441
        %vm4448 = vmor %vm4446, %vm4447
        %v4449 = vsel %vm4448, %v4441, %v4445
        %v4450 = vand.u32 2147483647, %v2485
        %vm4451 = vcmp.eq.f32.partialorder %v4450, 8.507059e+37
        %v4452 = vand.u32 %v2485, 2147483648
        %v4453 = vor.u32 1.1754944e-38, %v4452
        %v4454 = vsel %vm4451, %v4453, %v4449
        %v4455 = vmul.f32 %v3893, %v4454
        %v4456 = vrcp.pop %v2486
        %v4457 = vmul.f32 %v2486, %v4456
        %v4458 = vsub.f32 1.0, %v4457
        %v4459 = vmul.f32 %v4456, %v4458
        %v4460 = vadd.f32 %v4456, %v4459
        %vm4461 = vweird.f32 %v2486
        %vm4462 = vweird.f32 %v4456
        %vm4463 = vmor %vm4461, %vm4462
        %v4464 = vsel %vm4463, %v4456, %v4460
        %v4465 = vand.u32 2147483647, %v2486
        %vm4466 = vcmp.eq.f32.partialorder %v4465, 8.507059e+37
        %v4467 = vand.u32 %v2486, 2147483648
        %v4468 = vor.u32 1.1754944e-38, %v4467
        %v4469 = vsel %vm4466, %v4468, %v4464
        %v4470 = vmul.f32 %v3894, %v4469
        %v4471 = vrcp.pop %v2487
        %v4472 = vmul.f32 %v2487, %v4471
        %v4473 = vsub.f32 1.0, %v4472
        %v4474 = vmul.f32 %v4471, %v4473
        %v4475 = vadd.f32 %v4471, %v4474
        %vm4476 = vweird.f32 %v2487
        %vm4477 = vweird.f32 %v4471
        %vm4478 = vmor %vm4476, %vm4477
        %v4479 = vsel %vm4478, %v4471, %v4475
        %v4480 = vand.u32 2147483647, %v2487
        %vm4481 = vcmp.eq.f32.partialorder %v4480, 8.507059e+37
        %v4482 = vand.u32 %v2487, 2147483648
        %v4483 = vor.u32 1.1754944e-38, %v4482
        %v4484 = vsel %vm4481, %v4483, %v4479
        %v4485 = vmul.f32 %v3895, %v4484
        %v4486 = vrcp.pop %v2488
        %v4487 = vmul.f32 %v2488, %v4486
        %v4488 = vsub.f32 1.0, %v4487
        %v4489 = vmul.f32 %v4486, %v4488
        %v4490 = vadd.f32 %v4486, %v4489
        %vm4491 = vweird.f32 %v2488
        %vm4492 = vweird.f32 %v4486
        %vm4493 = vmor %vm4491, %vm4492
        %v4494 = vsel %vm4493, %v4486, %v4490
        %v4495 = vand.u32 2147483647, %v2488
        %vm4496 = vcmp.eq.f32.partialorder %v4495, 8.507059e+37
        %v4497 = vand.u32 %v2488, 2147483648
        %v4498 = vor.u32 1.1754944e-38, %v4497
        %v4499 = vsel %vm4496, %v4498, %v4494
        %v4500 = vmul.f32 %v3896, %v4499
        %v4501 = vrcp.pop %v2489
        %v4502 = vmul.f32 %v2489, %v4501
        %v4503 = vsub.f32 1.0, %v4502
        %v4504 = vmul.f32 %v4501, %v4503
        %v4505 = vadd.f32 %v4501, %v4504
        %vm4506 = vweird.f32 %v2489
        %vm4507 = vweird.f32 %v4501
        %vm4508 = vmor %vm4506, %vm4507
        %v4509 = vsel %vm4508, %v4501, %v4505
        %v4510 = vand.u32 2147483647, %v2489
        %vm4511 = vcmp.eq.f32.partialorder %v4510, 8.507059e+37
        %v4512 = vand.u32 %v2489, 2147483648
        %v4513 = vor.u32 1.1754944e-38, %v4512
        %v4514 = vsel %vm4511, %v4513, %v4509
        %v4515 = vmul.f32 %v3897, %v4514
        %v4516 = vrcp.pop %v2490
        %v4517 = vmul.f32 %v2490, %v4516
        %v4518 = vsub.f32 1.0, %v4517
        %v4519 = vmul.f32 %v4516, %v4518
        %v4520 = vadd.f32 %v4516, %v4519
        %vm4521 = vweird.f32 %v2490
        %vm4522 = vweird.f32 %v4516
        %vm4523 = vmor %vm4521, %vm4522
        %v4524 = vsel %vm4523, %v4516, %v4520
        %v4525 = vand.u32 2147483647, %v2490
        %vm4526 = vcmp.eq.f32.partialorder %v4525, 8.507059e+37
        %v4527 = vand.u32 %v2490, 2147483648
        %v4528 = vor.u32 1.1754944e-38, %v4527
        %v4529 = vsel %vm4526, %v4528, %v4524
        %v4530 = vmul.f32 %v3898, %v4529
        %v4531 = vrcp.pop %v2491
        %v4532 = vmul.f32 %v2491, %v4531
        %v4533 = vsub.f32 1.0, %v4532
        %v4534 = vmul.f32 %v4531, %v4533
        %v4535 = vadd.f32 %v4531, %v4534
        %vm4536 = vweird.f32 %v2491
        %vm4537 = vweird.f32 %v4531
        %vm4538 = vmor %vm4536, %vm4537
        %v4539 = vsel %vm4538, %v4531, %v4535
        %v4540 = vand.u32 2147483647, %v2491
        %vm4541 = vcmp.eq.f32.partialorder %v4540, 8.507059e+37
        %v4542 = vand.u32 %v2491, 2147483648
        %v4543 = vor.u32 1.1754944e-38, %v4542
        %v4544 = vsel %vm4541, %v4543, %v4539
        %v4545 = vmul.f32 %v3899, %v4544
        %v4546 = vrcp.pop %v2492
        %v4547 = vmul.f32 %v2492, %v4546
        %v4548 = vsub.f32 1.0, %v4547
        %v4549 = vmul.f32 %v4546, %v4548
        %v4550 = vadd.f32 %v4546, %v4549
        %vm4551 = vweird.f32 %v2492
        %vm4552 = vweird.f32 %v4546
        %vm4553 = vmor %vm4551, %vm4552
        %v4554 = vsel %vm4553, %v4546, %v4550
        %v4555 = vand.u32 2147483647, %v2492
        %vm4556 = vcmp.eq.f32.partialorder %v4555, 8.507059e+37
        %v4557 = vand.u32 %v2492, 2147483648
        %v4558 = vor.u32 1.1754944e-38, %v4557
        %v4559 = vsel %vm4556, %v4558, %v4554
        %v4560 = vmul.f32 %v3900, %v4559
        %v4561 = vrcp.pop %v2493
        %v4562 = vmul.f32 %v2493, %v4561
        %v4563 = vsub.f32 1.0, %v4562
        %v4564 = vmul.f32 %v4561, %v4563
        %v4565 = vadd.f32 %v4561, %v4564
        %vm4566 = vweird.f32 %v2493
        %vm4567 = vweird.f32 %v4561
        %vm4568 = vmor %vm4566, %vm4567
        %v4569 = vsel %vm4568, %v4561, %v4565
        %v4570 = vand.u32 2147483647, %v2493
        %vm4571 = vcmp.eq.f32.partialorder %v4570, 8.507059e+37
        %v4572 = vand.u32 %v2493, 2147483648
        %v4573 = vor.u32 1.1754944e-38, %v4572
        %v4574 = vsel %vm4571, %v4573, %v4569
        %v4575 = vmul.f32 %v3901, %v4574
        %v4576 = vrcp.pop %v2494
        %v4577 = vmul.f32 %v2494, %v4576
        %v4578 = vsub.f32 1.0, %v4577
        %v4579 = vmul.f32 %v4576, %v4578
        %v4580 = vadd.f32 %v4576, %v4579
        %vm4581 = vweird.f32 %v2494
        %vm4582 = vweird.f32 %v4576
        %vm4583 = vmor %vm4581, %vm4582
        %v4584 = vsel %vm4583, %v4576, %v4580
        %v4585 = vand.u32 2147483647, %v2494
        %vm4586 = vcmp.eq.f32.partialorder %v4585, 8.507059e+37
        %v4587 = vand.u32 %v2494, 2147483648
        %v4588 = vor.u32 1.1754944e-38, %v4587
        %v4589 = vsel %vm4586, %v4588, %v4584
        %v4590 = vmul.f32 %v3902, %v4589
        %v4591 = vrcp.pop %v2495
        %v4592 = vmul.f32 %v2495, %v4591
        %v4593 = vsub.f32 1.0, %v4592
        %v4594 = vmul.f32 %v4591, %v4593
        %v4595 = vadd.f32 %v4591, %v4594
        %vm4596 = vweird.f32 %v2495
        %vm4597 = vweird.f32 %v4591
        %vm4598 = vmor %vm4596, %vm4597
        %v4599 = vsel %vm4598, %v4591, %v4595
        %v4600 = vand.u32 2147483647, %v2495
        %vm4601 = vcmp.eq.f32.partialorder %v4600, 8.507059e+37
        %v4602 = vand.u32 %v2495, 2147483648
        %v4603 = vor.u32 1.1754944e-38, %v4602
        %v4604 = vsel %vm4601, %v4603, %v4599
        %v4605 = vmul.f32 %v3903, %v4604
        %v4606 = vrcp.pop %v2496
        %v4607 = vmul.f32 %v2496, %v4606
        %v4608 = vsub.f32 1.0, %v4607
        %v4609 = vmul.f32 %v4606, %v4608
        %v4610 = vadd.f32 %v4606, %v4609
        %vm4611 = vweird.f32 %v2496
        %vm4612 = vweird.f32 %v4606
        %vm4613 = vmor %vm4611, %vm4612
        %v4614 = vsel %vm4613, %v4606, %v4610
        %v4615 = vand.u32 2147483647, %v2496
        %vm4616 = vcmp.eq.f32.partialorder %v4615, 8.507059e+37
        %v4617 = vand.u32 %v2496, 2147483648
        %v4618 = vor.u32 1.1754944e-38, %v4617
        %v4619 = vsel %vm4616, %v4618, %v4614
        %v4620 = vmul.f32 %v3904, %v4619
        %v4621 = vrcp.pop %v2497
        %v4622 = vmul.f32 %v2497, %v4621
        %v4623 = vsub.f32 1.0, %v4622
        %v4624 = vmul.f32 %v4621, %v4623
        %v4625 = vadd.f32 %v4621, %v4624
        %vm4626 = vweird.f32 %v2497
        %vm4627 = vweird.f32 %v4621
        %vm4628 = vmor %vm4626, %vm4627
        %v4629 = vsel %vm4628, %v4621, %v4625
        %v4630 = vand.u32 2147483647, %v2497
        %vm4631 = vcmp.eq.f32.partialorder %v4630, 8.507059e+37
        %v4632 = vand.u32 %v2497, 2147483648
        %v4633 = vor.u32 1.1754944e-38, %v4632
        %v4634 = vsel %vm4631, %v4633, %v4629
        %v4635 = vmul.f32 %v3905, %v4634
        %v4636 = vrcp.pop %v2498
        %v4637 = vmul.f32 %v2498, %v4636
        %v4638 = vsub.f32 1.0, %v4637
        %v4639 = vmul.f32 %v4636, %v4638
        %v4640 = vadd.f32 %v4636, %v4639
        %vm4641 = vweird.f32 %v2498
        %vm4642 = vweird.f32 %v4636
        %vm4643 = vmor %vm4641, %vm4642
        %v4644 = vsel %vm4643, %v4636, %v4640
        %v4645 = vand.u32 2147483647, %v2498
        %vm4646 = vcmp.eq.f32.partialorder %v4645, 8.507059e+37
        %v4647 = vand.u32 %v2498, 2147483648
        %v4648 = vor.u32 1.1754944e-38, %v4647
        %v4649 = vsel %vm4646, %v4648, %v4644
        %v4650 = vmul.f32 %v3906, %v4649
        %v4651 = vrcp.pop %v2499
        %v4652 = vmul.f32 %v2499, %v4651
        %v4653 = vsub.f32 1.0, %v4652
        %v4654 = vmul.f32 %v4651, %v4653
        %v4655 = vadd.f32 %v4651, %v4654
        %vm4656 = vweird.f32 %v2499
        %vm4657 = vweird.f32 %v4651
        %vm4658 = vmor %vm4656, %vm4657
        %v4659 = vsel %vm4658, %v4651, %v4655
        %v4660 = vand.u32 2147483647, %v2499
        %vm4661 = vcmp.eq.f32.partialorder %v4660, 8.507059e+37
        %v4662 = vand.u32 %v2499, 2147483648
        %v4663 = vor.u32 1.1754944e-38, %v4662
        %v4664 = vsel %vm4661, %v4663, %v4659
        %v4665 = vmul.f32 %v3907, %v4664
        %v4666 = vrcp.pop %v2500
        %v4667 = vmul.f32 %v2500, %v4666
        %v4668 = vsub.f32 1.0, %v4667
        %v4669 = vmul.f32 %v4666, %v4668
        %v4670 = vadd.f32 %v4666, %v4669
        %vm4671 = vweird.f32 %v2500
        %vm4672 = vweird.f32 %v4666
        %vm4673 = vmor %vm4671, %vm4672
        %v4674 = vsel %vm4673, %v4666, %v4670
        %v4675 = vand.u32 2147483647, %v2500
        %vm4676 = vcmp.eq.f32.partialorder %v4675, 8.507059e+37
        %v4677 = vand.u32 %v2500, 2147483648
        %v4678 = vor.u32 1.1754944e-38, %v4677
        %v4679 = vsel %vm4676, %v4678, %v4674
        %v4680 = vmul.f32 %v3908, %v4679
        %v4681 = vrcp.pop %v2501
        %v4682 = vmul.f32 %v2501, %v4681
        %v4683 = vsub.f32 1.0, %v4682
        %v4684 = vmul.f32 %v4681, %v4683
        %v4685 = vadd.f32 %v4681, %v4684
        %vm4686 = vweird.f32 %v2501
        %vm4687 = vweird.f32 %v4681
        %vm4688 = vmor %vm4686, %vm4687
        %v4689 = vsel %vm4688, %v4681, %v4685
        %v4690 = vand.u32 2147483647, %v2501
        %vm4691 = vcmp.eq.f32.partialorder %v4690, 8.507059e+37
        %v4692 = vand.u32 %v2501, 2147483648
        %v4693 = vor.u32 1.1754944e-38, %v4692
        %v4694 = vsel %vm4691, %v4693, %v4689
        %v4695 = vmul.f32 %v3909, %v4694
        %v4696 = vrcp.pop %v2502
        %v4697 = vmul.f32 %v2502, %v4696
        %v4698 = vsub.f32 1.0, %v4697
        %v4699 = vmul.f32 %v4696, %v4698
        %v4700 = vadd.f32 %v4696, %v4699
        %vm4701 = vweird.f32 %v2502
        %vm4702 = vweird.f32 %v4696
        %vm4703 = vmor %vm4701, %vm4702
        %v4704 = vsel %vm4703, %v4696, %v4700
        %v4705 = vand.u32 2147483647, %v2502
        %vm4706 = vcmp.eq.f32.partialorder %v4705, 8.507059e+37
        %v4707 = vand.u32 %v2502, 2147483648
        %v4708 = vor.u32 1.1754944e-38, %v4707
        %v4709 = vsel %vm4706, %v4708, %v4704
        %v4710 = vmul.f32 %v3910, %v4709
        %v4711 = vrcp.pop %v2503
        %v4712 = vmul.f32 %v2503, %v4711
        %v4713 = vsub.f32 1.0, %v4712
        %v4714 = vmul.f32 %v4711, %v4713
        %v4715 = vadd.f32 %v4711, %v4714
        %vm4716 = vweird.f32 %v2503
        %vm4717 = vweird.f32 %v4711
        %vm4718 = vmor %vm4716, %vm4717
        %v4719 = vsel %vm4718, %v4711, %v4715
        %v4720 = vand.u32 2147483647, %v2503
        %vm4721 = vcmp.eq.f32.partialorder %v4720, 8.507059e+37
        %v4722 = vand.u32 %v2503, 2147483648
        %v4723 = vor.u32 1.1754944e-38, %v4722
        %v4724 = vsel %vm4721, %v4723, %v4719
        %v4725 = vmul.f32 %v3911, %v4724
        %v4726 = vrcp.pop %v2504
        %v4727 = vmul.f32 %v2504, %v4726
        %v4728 = vsub.f32 1.0, %v4727
        %v4729 = vmul.f32 %v4726, %v4728
        %v4730 = vadd.f32 %v4726, %v4729
        %vm4731 = vweird.f32 %v2504
        %vm4732 = vweird.f32 %v4726
        %vm4733 = vmor %vm4731, %vm4732
        %v4734 = vsel %vm4733, %v4726, %v4730
        %v4735 = vand.u32 2147483647, %v2504
        %vm4736 = vcmp.eq.f32.partialorder %v4735, 8.507059e+37
        %v4737 = vand.u32 %v2504, 2147483648
        %v4738 = vor.u32 1.1754944e-38, %v4737
        %v4739 = vsel %vm4736, %v4738, %v4734
        %v4740 = vmul.f32 %v3912, %v4739
        %v4741 = vrcp.pop %v2505
        %v4742 = vmul.f32 %v2505, %v4741
        %v4743 = vsub.f32 1.0, %v4742
        %v4744 = vmul.f32 %v4741, %v4743
        %v4745 = vadd.f32 %v4741, %v4744
        %vm4746 = vweird.f32 %v2505
        %vm4747 = vweird.f32 %v4741
        %vm4748 = vmor %vm4746, %vm4747
        %v4749 = vsel %vm4748, %v4741, %v4745
        %v4750 = vand.u32 2147483647, %v2505
        %vm4751 = vcmp.eq.f32.partialorder %v4750, 8.507059e+37
        %v4752 = vand.u32 %v2505, 2147483648
        %v4753 = vor.u32 1.1754944e-38, %v4752
        %v4754 = vsel %vm4751, %v4753, %v4749
        %v4755 = vmul.f32 %v3913, %v4754
        %v4756 = vrcp.pop %v2506
        %v4757 = vmul.f32 %v2506, %v4756
        %v4758 = vsub.f32 1.0, %v4757
        %v4759 = vmul.f32 %v4756, %v4758
        %v4760 = vadd.f32 %v4756, %v4759
        %vm4761 = vweird.f32 %v2506
        %vm4762 = vweird.f32 %v4756
        %vm4763 = vmor %vm4761, %vm4762
        %v4764 = vsel %vm4763, %v4756, %v4760
        %v4765 = vand.u32 2147483647, %v2506
        %vm4766 = vcmp.eq.f32.partialorder %v4765, 8.507059e+37
        %v4767 = vand.u32 %v2506, 2147483648
        %v4768 = vor.u32 1.1754944e-38, %v4767
        %v4769 = vsel %vm4766, %v4768, %v4764
        %v4770 = vmul.f32 %v3914, %v4769
        %v4771 = vrcp.pop %v2507
        %v4772 = vmul.f32 %v2507, %v4771
        %v4773 = vsub.f32 1.0, %v4772
        %v4774 = vmul.f32 %v4771, %v4773
        %v4775 = vadd.f32 %v4771, %v4774
        %vm4776 = vweird.f32 %v2507
        %vm4777 = vweird.f32 %v4771
        %vm4778 = vmor %vm4776, %vm4777
        %v4779 = vsel %vm4778, %v4771, %v4775
        %v4780 = vand.u32 2147483647, %v2507
        %vm4781 = vcmp.eq.f32.partialorder %v4780, 8.507059e+37
        %v4782 = vand.u32 %v2507, 2147483648
        %v4783 = vor.u32 1.1754944e-38, %v4782
        %v4784 = vsel %vm4781, %v4783, %v4779
        %v4785 = vmul.f32 %v3915, %v4784
        %v4786 = vrcp.pop %v2508
        %v4787 = vmul.f32 %v2508, %v4786
        %v4788 = vsub.f32 1.0, %v4787
        %v4789 = vmul.f32 %v4786, %v4788
        %v4790 = vadd.f32 %v4786, %v4789
        %vm4791 = vweird.f32 %v2508
        %vm4792 = vweird.f32 %v4786
        %vm4793 = vmor %vm4791, %vm4792
        %v4794 = vsel %vm4793, %v4786, %v4790
        %v4795 = vand.u32 2147483647, %v2508
        %vm4796 = vcmp.eq.f32.partialorder %v4795, 8.507059e+37
        %v4797 = vand.u32 %v2508, 2147483648
        %v4798 = vor.u32 1.1754944e-38, %v4797
        %v4799 = vsel %vm4796, %v4798, %v4794
        %v4800 = vmul.f32 %v3916, %v4799
        %v4801 = vrcp.pop %v2509
        %v4802 = vmul.f32 %v2509, %v4801
        %v4803 = vsub.f32 1.0, %v4802
        %v4804 = vmul.f32 %v4801, %v4803
        %v4805 = vadd.f32 %v4801, %v4804
        %vm4806 = vweird.f32 %v2509
        %vm4807 = vweird.f32 %v4801
        %vm4808 = vmor %vm4806, %vm4807
        %v4809 = vsel %vm4808, %v4801, %v4805
        %v4810 = vand.u32 2147483647, %v2509
        %vm4811 = vcmp.eq.f32.partialorder %v4810, 8.507059e+37
        %v4812 = vand.u32 %v2509, 2147483648
        %v4813 = vor.u32 1.1754944e-38, %v4812
        %v4814 = vsel %vm4811, %v4813, %v4809
        %v4815 = vmul.f32 %v3917, %v4814
        %v4816 = vrcp.pop %v2510
        %v4817 = vmul.f32 %v2510, %v4816
        %v4818 = vsub.f32 1.0, %v4817
        %v4819 = vmul.f32 %v4816, %v4818
        %v4820 = vadd.f32 %v4816, %v4819
        %vm4821 = vweird.f32 %v2510
        %vm4822 = vweird.f32 %v4816
        %vm4823 = vmor %vm4821, %vm4822
        %v4824 = vsel %vm4823, %v4816, %v4820
        %v4825 = vand.u32 2147483647, %v2510
        %vm4826 = vcmp.eq.f32.partialorder %v4825, 8.507059e+37
        %v4827 = vand.u32 %v2510, 2147483648
        %v4828 = vor.u32 1.1754944e-38, %v4827
        %v4829 = vsel %vm4826, %v4828, %v4824
        %v4830 = vmul.f32 %v3918, %v4829
        %v4831 = vrcp.pop %v2511
        %v4832 = vmul.f32 %v2511, %v4831
        %v4833 = vsub.f32 1.0, %v4832
        %v4834 = vmul.f32 %v4831, %v4833
        %v4835 = vadd.f32 %v4831, %v4834
        %vm4836 = vweird.f32 %v2511
        %vm4837 = vweird.f32 %v4831
        %vm4838 = vmor %vm4836, %vm4837
        %v4839 = vsel %vm4838, %v4831, %v4835
        %v4840 = vand.u32 2147483647, %v2511
        %vm4841 = vcmp.eq.f32.partialorder %v4840, 8.507059e+37
        %v4842 = vand.u32 %v2511, 2147483648
        %v4843 = vor.u32 1.1754944e-38, %v4842
        %v4844 = vsel %vm4841, %v4843, %v4839
        %v4845 = vmul.f32 %v3919, %v4844
        %v4846 = vrcp.pop %v2512
        %v4847 = vmul.f32 %v2512, %v4846
        %v4848 = vsub.f32 1.0, %v4847
        %v4849 = vmul.f32 %v4846, %v4848
        %v4850 = vadd.f32 %v4846, %v4849
        %vm4851 = vweird.f32 %v2512
        %vm4852 = vweird.f32 %v4846
        %vm4853 = vmor %vm4851, %vm4852
        %v4854 = vsel %vm4853, %v4846, %v4850
        %v4855 = vand.u32 2147483647, %v2512
        %vm4856 = vcmp.eq.f32.partialorder %v4855, 8.507059e+37
        %v4857 = vand.u32 %v2512, 2147483648
        %v4858 = vor.u32 1.1754944e-38, %v4857
        %v4859 = vsel %vm4856, %v4858, %v4854
        %v4860 = vmul.f32 %v3920, %v4859
        %v4861 = vrcp.pop %v2513
        %v4862 = vmul.f32 %v2513, %v4861
        %v4863 = vsub.f32 1.0, %v4862
        %v4864 = vmul.f32 %v4861, %v4863
        %v4865 = vadd.f32 %v4861, %v4864
        %vm4866 = vweird.f32 %v2513
        %vm4867 = vweird.f32 %v4861
        %vm4868 = vmor %vm4866, %vm4867
        %v4869 = vsel %vm4868, %v4861, %v4865
        %v4870 = vand.u32 2147483647, %v2513
        %vm4871 = vcmp.eq.f32.partialorder %v4870, 8.507059e+37
        %v4872 = vand.u32 %v2513, 2147483648
        %v4873 = vor.u32 1.1754944e-38, %v4872
        %v4874 = vsel %vm4871, %v4873, %v4869
        %v4875 = vmul.f32 %v3921, %v4874
        %v4876 = vrcp.pop %v2514
        %v4877 = vmul.f32 %v2514, %v4876
        %v4878 = vsub.f32 1.0, %v4877
        %v4879 = vmul.f32 %v4876, %v4878
        %v4880 = vadd.f32 %v4876, %v4879
        %vm4881 = vweird.f32 %v2514
        %vm4882 = vweird.f32 %v4876
        %vm4883 = vmor %vm4881, %vm4882
        %v4884 = vsel %vm4883, %v4876, %v4880
        %v4885 = vand.u32 2147483647, %v2514
        %vm4886 = vcmp.eq.f32.partialorder %v4885, 8.507059e+37
        %v4887 = vand.u32 %v2514, 2147483648
        %v4888 = vor.u32 1.1754944e-38, %v4887
        %v4889 = vsel %vm4886, %v4888, %v4884
        %v4890 = vmul.f32 %v3922, %v4889
        %v4891 = vrcp.pop %v2515
        %v4892 = vmul.f32 %v2515, %v4891
        %v4893 = vsub.f32 1.0, %v4892
        %v4894 = vmul.f32 %v4891, %v4893
        %v4895 = vadd.f32 %v4891, %v4894
        %vm4896 = vweird.f32 %v2515
        %vm4897 = vweird.f32 %v4891
        %vm4898 = vmor %vm4896, %vm4897
        %v4899 = vsel %vm4898, %v4891, %v4895
        %v4900 = vand.u32 2147483647, %v2515
        %vm4901 = vcmp.eq.f32.partialorder %v4900, 8.507059e+37
        %v4902 = vand.u32 %v2515, 2147483648
        %v4903 = vor.u32 1.1754944e-38, %v4902
        %v4904 = vsel %vm4901, %v4903, %v4899
        %v4905 = vmul.f32 %v3923, %v4904
        %v4906 = vrcp.pop %v2516
        %v4907 = vmul.f32 %v2516, %v4906
        %v4908 = vsub.f32 1.0, %v4907
        %v4909 = vmul.f32 %v4906, %v4908
        %v4910 = vadd.f32 %v4906, %v4909
        %vm4911 = vweird.f32 %v2516
        %vm4912 = vweird.f32 %v4906
        %vm4913 = vmor %vm4911, %vm4912
        %v4914 = vsel %vm4913, %v4906, %v4910
        %v4915 = vand.u32 2147483647, %v2516
        %vm4916 = vcmp.eq.f32.partialorder %v4915, 8.507059e+37
        %v4917 = vand.u32 %v2516, 2147483648
        %v4918 = vor.u32 1.1754944e-38, %v4917
        %v4919 = vsel %vm4916, %v4918, %v4914
        %v4920 = vmul.f32 %v3924, %v4919
        %v4921 = vrcp.pop %v2517
        %v4922 = vmul.f32 %v2517, %v4921
        %v4923 = vsub.f32 1.0, %v4922
        %v4924 = vmul.f32 %v4921, %v4923
        %v4925 = vadd.f32 %v4921, %v4924
        %vm4926 = vweird.f32 %v2517
        %vm4927 = vweird.f32 %v4921
        %vm4928 = vmor %vm4926, %vm4927
        %v4929 = vsel %vm4928, %v4921, %v4925
        %v4930 = vand.u32 2147483647, %v2517
        %vm4931 = vcmp.eq.f32.partialorder %v4930, 8.507059e+37
        %v4932 = vand.u32 %v2517, 2147483648
        %v4933 = vor.u32 1.1754944e-38, %v4932
        %v4934 = vsel %vm4931, %v4933, %v4929
        %v4935 = vmul.f32 %v3925, %v4934
        %v4936 = vrcp.pop %v2518
        %v4937 = vmul.f32 %v2518, %v4936
        %v4938 = vsub.f32 1.0, %v4937
        %v4939 = vmul.f32 %v4936, %v4938
        %v4940 = vadd.f32 %v4936, %v4939
        %vm4941 = vweird.f32 %v2518
        %vm4942 = vweird.f32 %v4936
        %vm4943 = vmor %vm4941, %vm4942
        %v4944 = vsel %vm4943, %v4936, %v4940
        %v4945 = vand.u32 2147483647, %v2518
        %vm4946 = vcmp.eq.f32.partialorder %v4945, 8.507059e+37
        %v4947 = vand.u32 %v2518, 2147483648
        %v4948 = vor.u32 1.1754944e-38, %v4947
        %v4949 = vsel %vm4946, %v4948, %v4944
        %v4950 = vmul.f32 %v3926, %v4949
        %v4951 = vrcp.pop %v2519
        %v4952 = vmul.f32 %v2519, %v4951
        %v4953 = vsub.f32 1.0, %v4952
        %v4954 = vmul.f32 %v4951, %v4953
        %v4955 = vadd.f32 %v4951, %v4954
        %vm4956 = vweird.f32 %v2519
        %vm4957 = vweird.f32 %v4951
        %vm4958 = vmor %vm4956, %vm4957
        %v4959 = vsel %vm4958, %v4951, %v4955
        %v4960 = vand.u32 2147483647, %v2519
        %vm4961 = vcmp.eq.f32.partialorder %v4960, 8.507059e+37
        %v4962 = vand.u32 %v2519, 2147483648
        %v4963 = vor.u32 1.1754944e-38, %v4962
        %v4964 = vsel %vm4961, %v4963, %v4959
        %v4965 = vmul.f32 %v3927, %v4964
        %v4966 = vrcp.pop %v2520
        %v4967 = vmul.f32 %v2520, %v4966
        %v4968 = vsub.f32 1.0, %v4967
        %v4969 = vmul.f32 %v4966, %v4968
        %v4970 = vadd.f32 %v4966, %v4969
        %vm4971 = vweird.f32 %v2520
        %vm4972 = vweird.f32 %v4966
        %vm4973 = vmor %vm4971, %vm4972
        %v4974 = vsel %vm4973, %v4966, %v4970
        %v4975 = vand.u32 2147483647, %v2520
        %vm4976 = vcmp.eq.f32.partialorder %v4975, 8.507059e+37
        %v4977 = vand.u32 %v2520, 2147483648
        %v4978 = vor.u32 1.1754944e-38, %v4977
        %v4979 = vsel %vm4976, %v4978, %v4974
        %v4980 = vmul.f32 %v3928, %v4979
        %v4981 = vrcp.pop %v2521
        %v4982 = vmul.f32 %v2521, %v4981
        %v4983 = vsub.f32 1.0, %v4982
        %v4984 = vmul.f32 %v4981, %v4983
        %v4985 = vadd.f32 %v4981, %v4984
        %vm4986 = vweird.f32 %v2521
        %vm4987 = vweird.f32 %v4981
        %vm4988 = vmor %vm4986, %vm4987
        %v4989 = vsel %vm4988, %v4981, %v4985
        %v4990 = vand.u32 2147483647, %v2521
        %vm4991 = vcmp.eq.f32.partialorder %v4990, 8.507059e+37
        %v4992 = vand.u32 %v2521, 2147483648
        %v4993 = vor.u32 1.1754944e-38, %v4992
        %v4994 = vsel %vm4991, %v4993, %v4989
        %v4995 = vmul.f32 %v3929, %v4994
        %v4996 = vrcp.pop %v2522
        %v4997 = vmul.f32 %v2522, %v4996
        %v4998 = vsub.f32 1.0, %v4997
        %v4999 = vmul.f32 %v4996, %v4998
        %v5000 = vadd.f32 %v4996, %v4999
        %vm5001 = vweird.f32 %v2522
        %vm5002 = vweird.f32 %v4996
        %vm5003 = vmor %vm5001, %vm5002
        %v5004 = vsel %vm5003, %v4996, %v5000
        %v5005 = vand.u32 2147483647, %v2522
        %vm5006 = vcmp.eq.f32.partialorder %v5005, 8.507059e+37
        %v5007 = vand.u32 %v2522, 2147483648
        %v5008 = vor.u32 1.1754944e-38, %v5007
        %v5009 = vsel %vm5006, %v5008, %v5004
        %v5010 = vmul.f32 %v3930, %v5009
        %v5011 = vrcp.pop %v2523
        %v5012 = vmul.f32 %v2523, %v5011
        %v5013 = vsub.f32 1.0, %v5012
        %v5014 = vmul.f32 %v5011, %v5013
        %v5015 = vadd.f32 %v5011, %v5014
        %vm5016 = vweird.f32 %v2523
        %vm5017 = vweird.f32 %v5011
        %vm5018 = vmor %vm5016, %vm5017
        %v5019 = vsel %vm5018, %v5011, %v5015
        %v5020 = vand.u32 2147483647, %v2523
        %vm5021 = vcmp.eq.f32.partialorder %v5020, 8.507059e+37
        %v5022 = vand.u32 %v2523, 2147483648
        %v5023 = vor.u32 1.1754944e-38, %v5022
        %v5024 = vsel %vm5021, %v5023, %v5019
        %v5025 = vmul.f32 %v3931, %v5024
        %v5026 = vrcp.pop %v2524
        %v5027 = vmul.f32 %v2524, %v5026
        %v5028 = vsub.f32 1.0, %v5027
        %v5029 = vmul.f32 %v5026, %v5028
        %v5030 = vadd.f32 %v5026, %v5029
        %vm5031 = vweird.f32 %v2524
        %vm5032 = vweird.f32 %v5026
        %vm5033 = vmor %vm5031, %vm5032
        %v5034 = vsel %vm5033, %v5026, %v5030
        %v5035 = vand.u32 2147483647, %v2524
        %vm5036 = vcmp.eq.f32.partialorder %v5035, 8.507059e+37
        %v5037 = vand.u32 %v2524, 2147483648
        %v5038 = vor.u32 1.1754944e-38, %v5037
        %v5039 = vsel %vm5036, %v5038, %v5034
        %v5040 = vmul.f32 %v3932, %v5039
        %v5041 = vrcp.pop %v2525
        %v5042 = vmul.f32 %v2525, %v5041
        %v5043 = vsub.f32 1.0, %v5042
        %v5044 = vmul.f32 %v5041, %v5043
        %v5045 = vadd.f32 %v5041, %v5044
        %vm5046 = vweird.f32 %v2525
        %vm5047 = vweird.f32 %v5041
        %vm5048 = vmor %vm5046, %vm5047
        %v5049 = vsel %vm5048, %v5041, %v5045
        %v5050 = vand.u32 2147483647, %v2525
        %vm5051 = vcmp.eq.f32.partialorder %v5050, 8.507059e+37
        %v5052 = vand.u32 %v2525, 2147483648
        %v5053 = vor.u32 1.1754944e-38, %v5052
        %v5054 = vsel %vm5051, %v5053, %v5049
        %v5055 = vmul.f32 %v3933, %v5054
        %v5056 = vrcp.pop %v2526
        %v5057 = vmul.f32 %v2526, %v5056
        %v5058 = vsub.f32 1.0, %v5057
        %v5059 = vmul.f32 %v5056, %v5058
        %v5060 = vadd.f32 %v5056, %v5059
        %vm5061 = vweird.f32 %v2526
        %vm5062 = vweird.f32 %v5056
        %vm5063 = vmor %vm5061, %vm5062
        %v5064 = vsel %vm5063, %v5056, %v5060
        %v5065 = vand.u32 2147483647, %v2526
        %vm5066 = vcmp.eq.f32.partialorder %v5065, 8.507059e+37
        %v5067 = vand.u32 %v2526, 2147483648
        %v5068 = vor.u32 1.1754944e-38, %v5067
        %v5069 = vsel %vm5066, %v5068, %v5064
        %v5070 = vmul.f32 %v3934, %v5069
        %v5071 = vrcp.pop %v2527
        %v5072 = vmul.f32 %v2527, %v5071
        %v5073 = vsub.f32 1.0, %v5072
        %v5074 = vmul.f32 %v5071, %v5073
        %v5075 = vadd.f32 %v5071, %v5074
        %vm5076 = vweird.f32 %v2527
        %vm5077 = vweird.f32 %v5071
        %vm5078 = vmor %vm5076, %vm5077
        %v5079 = vsel %vm5078, %v5071, %v5075
        %v5080 = vand.u32 2147483647, %v2527
        %vm5081 = vcmp.eq.f32.partialorder %v5080, 8.507059e+37
        %v5082 = vand.u32 %v2527, 2147483648
        %v5083 = vor.u32 1.1754944e-38, %v5082
        %v5084 = vsel %vm5081, %v5083, %v5079
        %v5085 = vmul.f32 %v3935, %v5084
        %v5086 = vrcp.pop %v2528
        %v5087 = vmul.f32 %v2528, %v5086
        %v5088 = vsub.f32 1.0, %v5087
        %v5089 = vmul.f32 %v5086, %v5088
        %v5090 = vadd.f32 %v5086, %v5089
        %vm5091 = vweird.f32 %v2528
        %vm5092 = vweird.f32 %v5086
        %vm5093 = vmor %vm5091, %vm5092
        %v5094 = vsel %vm5093, %v5086, %v5090
        %v5095 = vand.u32 2147483647, %v2528
        %vm5096 = vcmp.eq.f32.partialorder %v5095, 8.507059e+37
        %v5097 = vand.u32 %v2528, 2147483648
        %v5098 = vor.u32 1.1754944e-38, %v5097
        %v5099 = vsel %vm5096, %v5098, %v5094
        %v5100 = vmul.f32 %v3936, %v5099
        %v5101 = vrcp.pop %v2529
        %v5102 = vmul.f32 %v2529, %v5101
        %v5103 = vsub.f32 1.0, %v5102
        %v5104 = vmul.f32 %v5101, %v5103
        %v5105 = vadd.f32 %v5101, %v5104
        %vm5106 = vweird.f32 %v2529
        %vm5107 = vweird.f32 %v5101
        %vm5108 = vmor %vm5106, %vm5107
        %v5109 = vsel %vm5108, %v5101, %v5105
        %v5110 = vand.u32 2147483647, %v2529
        %vm5111 = vcmp.eq.f32.partialorder %v5110, 8.507059e+37
        %v5112 = vand.u32 %v2529, 2147483648
        %v5113 = vor.u32 1.1754944e-38, %v5112
        %v5114 = vsel %vm5111, %v5113, %v5109
        %v5115 = vmul.f32 %v3937, %v5114
        %v5116 = vrcp.pop %v2530
        %v5117 = vmul.f32 %v2530, %v5116
        %v5118 = vsub.f32 1.0, %v5117
        %v5119 = vmul.f32 %v5116, %v5118
        %v5120 = vadd.f32 %v5116, %v5119
        %vm5121 = vweird.f32 %v2530
        %vm5122 = vweird.f32 %v5116
        %vm5123 = vmor %vm5121, %vm5122
        %v5124 = vsel %vm5123, %v5116, %v5120
        %v5125 = vand.u32 2147483647, %v2530
        %vm5126 = vcmp.eq.f32.partialorder %v5125, 8.507059e+37
        %v5127 = vand.u32 %v2530, 2147483648
        %v5128 = vor.u32 1.1754944e-38, %v5127
        %v5129 = vsel %vm5126, %v5128, %v5124
        %v5130 = vmul.f32 %v3938, %v5129
        %v5131 = vrcp.pop %v2531
        %v5132 = vmul.f32 %v2531, %v5131
        %v5133 = vsub.f32 1.0, %v5132
        %v5134 = vmul.f32 %v5131, %v5133
        %v5135 = vadd.f32 %v5131, %v5134
        %vm5136 = vweird.f32 %v2531
        %vm5137 = vweird.f32 %v5131
        %vm5138 = vmor %vm5136, %vm5137
        %v5139 = vsel %vm5138, %v5131, %v5135
        %v5140 = vand.u32 2147483647, %v2531
        %vm5141 = vcmp.eq.f32.partialorder %v5140, 8.507059e+37
        %v5142 = vand.u32 %v2531, 2147483648
        %v5143 = vor.u32 1.1754944e-38, %v5142
        %v5144 = vsel %vm5141, %v5143, %v5139
        %v5145 = vmul.f32 %v3939, %v5144
        %v5146 = vrcp.pop %v2532
        %v5147 = vmul.f32 %v2532, %v5146
        %v5148 = vsub.f32 1.0, %v5147
        %v5149 = vmul.f32 %v5146, %v5148
        %v5150 = vadd.f32 %v5146, %v5149
        %vm5151 = vweird.f32 %v2532
        %vm5152 = vweird.f32 %v5146
        %vm5153 = vmor %vm5151, %vm5152
        %v5154 = vsel %vm5153, %v5146, %v5150
        %v5155 = vand.u32 2147483647, %v2532
        %vm5156 = vcmp.eq.f32.partialorder %v5155, 8.507059e+37
        %v5157 = vand.u32 %v2532, 2147483648
        %v5158 = vor.u32 1.1754944e-38, %v5157
        %v5159 = vsel %vm5156, %v5158, %v5154
        %v5160 = vmul.f32 %v3940, %v5159
        %v5161 = vrcp.pop %v2533
        %v5162 = vmul.f32 %v2533, %v5161
        %v5163 = vsub.f32 1.0, %v5162
        %v5164 = vmul.f32 %v5161, %v5163
        %v5165 = vadd.f32 %v5161, %v5164
        %vm5166 = vweird.f32 %v2533
        %vm5167 = vweird.f32 %v5161
        %vm5168 = vmor %vm5166, %vm5167
        %v5169 = vsel %vm5168, %v5161, %v5165
        %v5170 = vand.u32 2147483647, %v2533
        %vm5171 = vcmp.eq.f32.partialorder %v5170, 8.507059e+37
        %v5172 = vand.u32 %v2533, 2147483648
        %v5173 = vor.u32 1.1754944e-38, %v5172
        %v5174 = vsel %vm5171, %v5173, %v5169
        %v5175 = vmul.f32 %v3941, %v5174
        %v5176 = vrcp.pop %v2534
        %v5177 = vmul.f32 %v2534, %v5176
        %v5178 = vsub.f32 1.0, %v5177
        %v5179 = vmul.f32 %v5176, %v5178
        %v5180 = vadd.f32 %v5176, %v5179
        %vm5181 = vweird.f32 %v2534
        %vm5182 = vweird.f32 %v5176
        %vm5183 = vmor %vm5181, %vm5182
        %v5184 = vsel %vm5183, %v5176, %v5180
        %v5185 = vand.u32 2147483647, %v2534
        %vm5186 = vcmp.eq.f32.partialorder %v5185, 8.507059e+37
        %v5187 = vand.u32 %v2534, 2147483648
        %v5188 = vor.u32 1.1754944e-38, %v5187
        %v5189 = vsel %vm5186, %v5188, %v5184
        %v5190 = vmul.f32 %v3942, %v5189
        %v5191 = vrcp.pop %v2535
        %v5192 = vmul.f32 %v2535, %v5191
        %v5193 = vsub.f32 1.0, %v5192
        %v5194 = vmul.f32 %v5191, %v5193
        %v5195 = vadd.f32 %v5191, %v5194
        %vm5196 = vweird.f32 %v2535
        %vm5197 = vweird.f32 %v5191
        %vm5198 = vmor %vm5196, %vm5197
        %v5199 = vsel %vm5198, %v5191, %v5195
        %v5200 = vand.u32 2147483647, %v2535
        %vm5201 = vcmp.eq.f32.partialorder %v5200, 8.507059e+37
        %v5202 = vand.u32 %v2535, 2147483648
        %v5203 = vor.u32 1.1754944e-38, %v5202
        %v5204 = vsel %vm5201, %v5203, %v5199
        %v5205 = vmul.f32 %v3943, %v5204
        %v5206 = vrcp.pop %v2536
        %v5207 = vmul.f32 %v2536, %v5206
        %v5208 = vsub.f32 1.0, %v5207
        %v5209 = vmul.f32 %v5206, %v5208
        %v5210 = vadd.f32 %v5206, %v5209
        %vm5211 = vweird.f32 %v2536
        %vm5212 = vweird.f32 %v5206
        %vm5213 = vmor %vm5211, %vm5212
        %v5214 = vsel %vm5213, %v5206, %v5210
        %v5215 = vand.u32 2147483647, %v2536
        %vm5216 = vcmp.eq.f32.partialorder %v5215, 8.507059e+37
        %v5217 = vand.u32 %v2536, 2147483648
        %v5218 = vor.u32 1.1754944e-38, %v5217
        %v5219 = vsel %vm5216, %v5218, %v5214
        %v5220 = vmul.f32 %v3944, %v5219
        %v5221 = vrcp.pop %v2537
        %v5222 = vmul.f32 %v2537, %v5221
        %v5223 = vsub.f32 1.0, %v5222
        %v5224 = vmul.f32 %v5221, %v5223
        %v5225 = vadd.f32 %v5221, %v5224
        %vm5226 = vweird.f32 %v2537
        %vm5227 = vweird.f32 %v5221
        %vm5228 = vmor %vm5226, %vm5227
        %v5229 = vsel %vm5228, %v5221, %v5225
        %v5230 = vand.u32 2147483647, %v2537
        %vm5231 = vcmp.eq.f32.partialorder %v5230, 8.507059e+37
        %v5232 = vand.u32 %v2537, 2147483648
        %v5233 = vor.u32 1.1754944e-38, %v5232
        %v5234 = vsel %vm5231, %v5233, %v5229
        %v5235 = vmul.f32 %v3945, %v5234
        %v5236 = vrcp.pop %v2538
        %v5237 = vmul.f32 %v2538, %v5236
        %v5238 = vsub.f32 1.0, %v5237
        %v5239 = vmul.f32 %v5236, %v5238
        %v5240 = vadd.f32 %v5236, %v5239
        %vm5241 = vweird.f32 %v2538
        %vm5242 = vweird.f32 %v5236
        %vm5243 = vmor %vm5241, %vm5242
        %v5244 = vsel %vm5243, %v5236, %v5240
        %v5245 = vand.u32 2147483647, %v2538
        %vm5246 = vcmp.eq.f32.partialorder %v5245, 8.507059e+37
        %v5247 = vand.u32 %v2538, 2147483648
        %v5248 = vor.u32 1.1754944e-38, %v5247
        %v5249 = vsel %vm5246, %v5248, %v5244
        %v5250 = vmul.f32 %v3946, %v5249
        %v5251 = vrcp.pop %v2539
        %v5252 = vmul.f32 %v2539, %v5251
        %v5253 = vsub.f32 1.0, %v5252
        %v5254 = vmul.f32 %v5251, %v5253
        %v5255 = vadd.f32 %v5251, %v5254
        %vm5256 = vweird.f32 %v2539
        %vm5257 = vweird.f32 %v5251
        %vm5258 = vmor %vm5256, %vm5257
        %v5259 = vsel %vm5258, %v5251, %v5255
        %v5260 = vand.u32 2147483647, %v2539
        %vm5261 = vcmp.eq.f32.partialorder %v5260, 8.507059e+37
        %v5262 = vand.u32 %v2539, 2147483648
        %v5263 = vor.u32 1.1754944e-38, %v5262
        %v5264 = vsel %vm5261, %v5263, %v5259
        %v5265 = vmul.f32 %v3947, %v5264
        %v5266 = vrcp.pop %v2540
        %v5267 = vmul.f32 %v2540, %v5266
        %v5268 = vsub.f32 1.0, %v5267
        %v5269 = vmul.f32 %v5266, %v5268
        %v5270 = vadd.f32 %v5266, %v5269
        %vm5271 = vweird.f32 %v2540
        %vm5272 = vweird.f32 %v5266
        %vm5273 = vmor %vm5271, %vm5272
        %v5274 = vsel %vm5273, %v5266, %v5270
        %v5275 = vand.u32 2147483647, %v2540
        %vm5276 = vcmp.eq.f32.partialorder %v5275, 8.507059e+37
        %v5277 = vand.u32 %v2540, 2147483648
        %v5278 = vor.u32 1.1754944e-38, %v5277
        %v5279 = vsel %vm5276, %v5278, %v5274
        %v5280 = vmul.f32 %v3948, %v5279
        %v5281 = vrcp.pop %v2541
        %v5282 = vmul.f32 %v2541, %v5281
        %v5283 = vsub.f32 1.0, %v5282
        %v5284 = vmul.f32 %v5281, %v5283
        %v5285 = vadd.f32 %v5281, %v5284
        %vm5286 = vweird.f32 %v2541
        %vm5287 = vweird.f32 %v5281
        %vm5288 = vmor %vm5286, %vm5287
        %v5289 = vsel %vm5288, %v5281, %v5285
        %v5290 = vand.u32 2147483647, %v2541
        %vm5291 = vcmp.eq.f32.partialorder %v5290, 8.507059e+37
        %v5292 = vand.u32 %v2541, 2147483648
        %v5293 = vor.u32 1.1754944e-38, %v5292
        %v5294 = vsel %vm5291, %v5293, %v5289
        %v5295 = vmul.f32 %v3949, %v5294
        %v5296 = vrcp.pop %v2542
        %v5297 = vmul.f32 %v2542, %v5296
        %v5298 = vsub.f32 1.0, %v5297
        %v5299 = vmul.f32 %v5296, %v5298
        %v5300 = vadd.f32 %v5296, %v5299
        %vm5301 = vweird.f32 %v2542
        %vm5302 = vweird.f32 %v5296
        %vm5303 = vmor %vm5301, %vm5302
        %v5304 = vsel %vm5303, %v5296, %v5300
        %v5305 = vand.u32 2147483647, %v2542
        %vm5306 = vcmp.eq.f32.partialorder %v5305, 8.507059e+37
        %v5307 = vand.u32 %v2542, 2147483648
        %v5308 = vor.u32 1.1754944e-38, %v5307
        %v5309 = vsel %vm5306, %v5308, %v5304
        %v5310 = vmul.f32 %v3950, %v5309
        %v5311 = vrcp.pop %v2543
        %v5312 = vmul.f32 %v2543, %v5311
        %v5313 = vsub.f32 1.0, %v5312
        %v5314 = vmul.f32 %v5311, %v5313
        %v5315 = vadd.f32 %v5311, %v5314
        %vm5316 = vweird.f32 %v2543
        %vm5317 = vweird.f32 %v5311
        %vm5318 = vmor %vm5316, %vm5317
        %v5319 = vsel %vm5318, %v5311, %v5315
        %v5320 = vand.u32 2147483647, %v2543
        %vm5321 = vcmp.eq.f32.partialorder %v5320, 8.507059e+37
        %v5322 = vand.u32 %v2543, 2147483648
        %v5323 = vor.u32 1.1754944e-38, %v5322
        %v5324 = vsel %vm5321, %v5323, %v5319
        %v5325 = vmul.f32 %v3951, %v5324
        %v5326 = vrcp.pop %v2544
        %v5327 = vmul.f32 %v2544, %v5326
        %v5328 = vsub.f32 1.0, %v5327
        %v5329 = vmul.f32 %v5326, %v5328
        %v5330 = vadd.f32 %v5326, %v5329
        %vm5331 = vweird.f32 %v2544
        %vm5332 = vweird.f32 %v5326
        %vm5333 = vmor %vm5331, %vm5332
        %v5334 = vsel %vm5333, %v5326, %v5330
        %v5335 = vand.u32 2147483647, %v2544
        %vm5336 = vcmp.eq.f32.partialorder %v5335, 8.507059e+37
        %v5337 = vand.u32 %v2544, 2147483648
        %v5338 = vor.u32 1.1754944e-38, %v5337
        %v5339 = vsel %vm5336, %v5338, %v5334
        %v5340 = vmul.f32 %v3952, %v5339
        %v5341 = vrcp.pop %v2545
        %v5342 = vmul.f32 %v2545, %v5341
        %v5343 = vsub.f32 1.0, %v5342
        %v5344 = vmul.f32 %v5341, %v5343
        %v5345 = vadd.f32 %v5341, %v5344
        %vm5346 = vweird.f32 %v2545
        %vm5347 = vweird.f32 %v5341
        %vm5348 = vmor %vm5346, %vm5347
        %v5349 = vsel %vm5348, %v5341, %v5345
        %v5350 = vand.u32 2147483647, %v2545
        %vm5351 = vcmp.eq.f32.partialorder %v5350, 8.507059e+37
        %v5352 = vand.u32 %v2545, 2147483648
        %v5353 = vor.u32 1.1754944e-38, %v5352
        %v5354 = vsel %vm5351, %v5353, %v5349
        %v5355 = vmul.f32 %v3953, %v5354
        %v5356 = vrcp.pop %v2546
        %v5357 = vmul.f32 %v2546, %v5356
        %v5358 = vsub.f32 1.0, %v5357
        %v5359 = vmul.f32 %v5356, %v5358
        %v5360 = vadd.f32 %v5356, %v5359
        %vm5361 = vweird.f32 %v2546
        %vm5362 = vweird.f32 %v5356
        %vm5363 = vmor %vm5361, %vm5362
        %v5364 = vsel %vm5363, %v5356, %v5360
        %v5365 = vand.u32 2147483647, %v2546
        %vm5366 = vcmp.eq.f32.partialorder %v5365, 8.507059e+37
        %v5367 = vand.u32 %v2546, 2147483648
        %v5368 = vor.u32 1.1754944e-38, %v5367
        %v5369 = vsel %vm5366, %v5368, %v5364
        %v5370 = vmul.f32 %v3954, %v5369
        %v5371 = vrcp.pop %v2547
        %v5372 = vmul.f32 %v2547, %v5371
        %v5373 = vsub.f32 1.0, %v5372
        %v5374 = vmul.f32 %v5371, %v5373
        %v5375 = vadd.f32 %v5371, %v5374
        %vm5376 = vweird.f32 %v2547
        %vm5377 = vweird.f32 %v5371
        %vm5378 = vmor %vm5376, %vm5377
        %v5379 = vsel %vm5378, %v5371, %v5375
        %v5380 = vand.u32 2147483647, %v2547
        %vm5381 = vcmp.eq.f32.partialorder %v5380, 8.507059e+37
        %v5382 = vand.u32 %v2547, 2147483648
        %v5383 = vor.u32 1.1754944e-38, %v5382
        %v5384 = vsel %vm5381, %v5383, %v5379
        %v5385 = vmul.f32 %v3955, %v5384
        %v5386 = vrcp.pop %v2548
        %v5387 = vmul.f32 %v2548, %v5386
        %v5388 = vsub.f32 1.0, %v5387
        %v5389 = vmul.f32 %v5386, %v5388
        %v5390 = vadd.f32 %v5386, %v5389
        %vm5391 = vweird.f32 %v2548
        %vm5392 = vweird.f32 %v5386
        %vm5393 = vmor %vm5391, %vm5392
        %v5394 = vsel %vm5393, %v5386, %v5390
        %v5395 = vand.u32 2147483647, %v2548
        %vm5396 = vcmp.eq.f32.partialorder %v5395, 8.507059e+37
        %v5397 = vand.u32 %v2548, 2147483648
        %v5398 = vor.u32 1.1754944e-38, %v5397
        %v5399 = vsel %vm5396, %v5398, %v5394
        %v5400 = vmul.f32 %v3956, %v5399
        %v5401 = vrcp.pop %v2549
        %v5402 = vmul.f32 %v2549, %v5401
        %v5403 = vsub.f32 1.0, %v5402
        %v5404 = vmul.f32 %v5401, %v5403
        %v5405 = vadd.f32 %v5401, %v5404
        %vm5406 = vweird.f32 %v2549
        %vm5407 = vweird.f32 %v5401
        %vm5408 = vmor %vm5406, %vm5407
        %v5409 = vsel %vm5408, %v5401, %v5405
        %v5410 = vand.u32 2147483647, %v2549
        %vm5411 = vcmp.eq.f32.partialorder %v5410, 8.507059e+37
        %v5412 = vand.u32 %v2549, 2147483648
        %v5413 = vor.u32 1.1754944e-38, %v5412
        %v5414 = vsel %vm5411, %v5413, %v5409
        %v5415 = vmul.f32 %v3957, %v5414
        %v5416 = vrcp.pop %v2550
        %v5417 = vmul.f32 %v2550, %v5416
        %v5418 = vsub.f32 1.0, %v5417
        %v5419 = vmul.f32 %v5416, %v5418
        %v5420 = vadd.f32 %v5416, %v5419
        %vm5421 = vweird.f32 %v2550
        %vm5422 = vweird.f32 %v5416
        %vm5423 = vmor %vm5421, %vm5422
        %v5424 = vsel %vm5423, %v5416, %v5420
        %v5425 = vand.u32 2147483647, %v2550
        %vm5426 = vcmp.eq.f32.partialorder %v5425, 8.507059e+37
        %v5427 = vand.u32 %v2550, 2147483648
        %v5428 = vor.u32 1.1754944e-38, %v5427
        %v5429 = vsel %vm5426, %v5428, %v5424
        %v5430 = vmul.f32 %v3958, %v5429
        %v5431 = vrcp.pop %v2551
        %v5432 = vmul.f32 %v2551, %v5431
        %v5433 = vsub.f32 1.0, %v5432
        %v5434 = vmul.f32 %v5431, %v5433
        %v5435 = vadd.f32 %v5431, %v5434
        %vm5436 = vweird.f32 %v2551
        %vm5437 = vweird.f32 %v5431
        %vm5438 = vmor %vm5436, %vm5437
        %v5439 = vsel %vm5438, %v5431, %v5435
        %v5440 = vand.u32 2147483647, %v2551
        %vm5441 = vcmp.eq.f32.partialorder %v5440, 8.507059e+37
        %v5442 = vand.u32 %v2551, 2147483648
        %v5443 = vor.u32 1.1754944e-38, %v5442
        %v5444 = vsel %vm5441, %v5443, %v5439
        %v5445 = vmul.f32 %v3959, %v5444
        %v5446 = vrcp.pop %v2552
        %v5447 = vmul.f32 %v2552, %v5446
        %v5448 = vsub.f32 1.0, %v5447
        %v5449 = vmul.f32 %v5446, %v5448
        %v5450 = vadd.f32 %v5446, %v5449
        %vm5451 = vweird.f32 %v2552
        %vm5452 = vweird.f32 %v5446
        %vm5453 = vmor %vm5451, %vm5452
        %v5454 = vsel %vm5453, %v5446, %v5450
        %v5455 = vand.u32 2147483647, %v2552
        %vm5456 = vcmp.eq.f32.partialorder %v5455, 8.507059e+37
        %v5457 = vand.u32 %v2552, 2147483648
        %v5458 = vor.u32 1.1754944e-38, %v5457
        %v5459 = vsel %vm5456, %v5458, %v5454
        %v5460 = vmul.f32 %v3960, %v5459
        %v5461 = vrcp.pop %v2553
        %v5462 = vmul.f32 %v2553, %v5461
        %v5463 = vsub.f32 1.0, %v5462
        %v5464 = vmul.f32 %v5461, %v5463
        %v5465 = vadd.f32 %v5461, %v5464
        %vm5466 = vweird.f32 %v2553
        %vm5467 = vweird.f32 %v5461
        %vm5468 = vmor %vm5466, %vm5467
        %v5469 = vsel %vm5468, %v5461, %v5465
        %v5470 = vand.u32 2147483647, %v2553
        %vm5471 = vcmp.eq.f32.partialorder %v5470, 8.507059e+37
        %v5472 = vand.u32 %v2553, 2147483648
        %v5473 = vor.u32 1.1754944e-38, %v5472
        %v5474 = vsel %vm5471, %v5473, %v5469
        %v5475 = vmul.f32 %v3961, %v5474
        %v5476 = vrcp.pop %v2554
        %v5477 = vmul.f32 %v2554, %v5476
        %v5478 = vsub.f32 1.0, %v5477
        %v5479 = vmul.f32 %v5476, %v5478
        %v5480 = vadd.f32 %v5476, %v5479
        %vm5481 = vweird.f32 %v2554
        %vm5482 = vweird.f32 %v5476
        %vm5483 = vmor %vm5481, %vm5482
        %v5484 = vsel %vm5483, %v5476, %v5480
        %v5485 = vand.u32 2147483647, %v2554
        %vm5486 = vcmp.eq.f32.partialorder %v5485, 8.507059e+37
        %v5487 = vand.u32 %v2554, 2147483648
        %v5488 = vor.u32 1.1754944e-38, %v5487
        %v5489 = vsel %vm5486, %v5488, %v5484
        %v5490 = vmul.f32 %v3962, %v5489
        %v5491 = vrcp.pop %v2555
        %v5492 = vmul.f32 %v2555, %v5491
        %v5493 = vsub.f32 1.0, %v5492
        %v5494 = vmul.f32 %v5491, %v5493
        %v5495 = vadd.f32 %v5491, %v5494
        %vm5496 = vweird.f32 %v2555
        %vm5497 = vweird.f32 %v5491
        %vm5498 = vmor %vm5496, %vm5497
        %v5499 = vsel %vm5498, %v5491, %v5495
        %v5500 = vand.u32 2147483647, %v2555
        %vm5501 = vcmp.eq.f32.partialorder %v5500, 8.507059e+37
        %v5502 = vand.u32 %v2555, 2147483648
        %v5503 = vor.u32 1.1754944e-38, %v5502
        %v5504 = vsel %vm5501, %v5503, %v5499
        %v5505 = vmul.f32 %v3963, %v5504
        %v5506 = vrcp.pop %v2556
        %v5507 = vmul.f32 %v2556, %v5506
        %v5508 = vsub.f32 1.0, %v5507
        %v5509 = vmul.f32 %v5506, %v5508
        %v5510 = vadd.f32 %v5506, %v5509
        %vm5511 = vweird.f32 %v2556
        %vm5512 = vweird.f32 %v5506
        %vm5513 = vmor %vm5511, %vm5512
        %v5514 = vsel %vm5513, %v5506, %v5510
        %v5515 = vand.u32 2147483647, %v2556
        %vm5516 = vcmp.eq.f32.partialorder %v5515, 8.507059e+37
        %v5517 = vand.u32 %v2556, 2147483648
        %v5518 = vor.u32 1.1754944e-38, %v5517
        %v5519 = vsel %vm5516, %v5518, %v5514
        %v5520 = vmul.f32 %v3964, %v5519
        %v5521 = vrcp.pop %v2557
        %v5522 = vmul.f32 %v2557, %v5521
        %v5523 = vsub.f32 1.0, %v5522
        %v5524 = vmul.f32 %v5521, %v5523
        %v5525 = vadd.f32 %v5521, %v5524
        %vm5526 = vweird.f32 %v2557
        %vm5527 = vweird.f32 %v5521
        %vm5528 = vmor %vm5526, %vm5527
        %v5529 = vsel %vm5528, %v5521, %v5525
        %v5530 = vand.u32 2147483647, %v2557
        %vm5531 = vcmp.eq.f32.partialorder %v5530, 8.507059e+37
        %v5532 = vand.u32 %v2557, 2147483648
        %v5533 = vor.u32 1.1754944e-38, %v5532
        %v5534 = vsel %vm5531, %v5533, %v5529
        %v5535 = vmul.f32 %v3965, %v5534
        %v5536 = vrcp.pop %v2558
        %v5537 = vmul.f32 %v2558, %v5536
        %v5538 = vsub.f32 1.0, %v5537
        %v5539 = vmul.f32 %v5536, %v5538
        %v5540 = vadd.f32 %v5536, %v5539
        %vm5541 = vweird.f32 %v2558
        %vm5542 = vweird.f32 %v5536
        %vm5543 = vmor %vm5541, %vm5542
        %v5544 = vsel %vm5543, %v5536, %v5540
        %v5545 = vand.u32 2147483647, %v2558
        %vm5546 = vcmp.eq.f32.partialorder %v5545, 8.507059e+37
        %v5547 = vand.u32 %v2558, 2147483648
        %v5548 = vor.u32 1.1754944e-38, %v5547
        %v5549 = vsel %vm5546, %v5548, %v5544
        %v5550 = vmul.f32 %v3966, %v5549
        %v5551 = vrcp.pop %v2559
        %v5552 = vmul.f32 %v2559, %v5551
        %v5553 = vsub.f32 1.0, %v5552
        %v5554 = vmul.f32 %v5551, %v5553
        %v5555 = vadd.f32 %v5551, %v5554
        %vm5556 = vweird.f32 %v2559
        %vm5557 = vweird.f32 %v5551
        %vm5558 = vmor %vm5556, %vm5557
        %v5559 = vsel %vm5558, %v5551, %v5555
        %v5560 = vand.u32 2147483647, %v2559
        %vm5561 = vcmp.eq.f32.partialorder %v5560, 8.507059e+37
        %v5562 = vand.u32 %v2559, 2147483648
        %v5563 = vor.u32 1.1754944e-38, %v5562
        %v5564 = vsel %vm5561, %v5563, %v5559
        %v5565 = vmul.f32 %v3967, %v5564
        %v5566 = vrcp.pop %v2560
        %v5567 = vmul.f32 %v2560, %v5566
        %v5568 = vsub.f32 1.0, %v5567
        %v5569 = vmul.f32 %v5566, %v5568
        %v5570 = vadd.f32 %v5566, %v5569
        %vm5571 = vweird.f32 %v2560
        %vm5572 = vweird.f32 %v5566
        %vm5573 = vmor %vm5571, %vm5572
        %v5574 = vsel %vm5573, %v5566, %v5570
        %v5575 = vand.u32 2147483647, %v2560
        %vm5576 = vcmp.eq.f32.partialorder %v5575, 8.507059e+37
        %v5577 = vand.u32 %v2560, 2147483648
        %v5578 = vor.u32 1.1754944e-38, %v5577
        %v5579 = vsel %vm5576, %v5578, %v5574
        %v5580 = vmul.f32 %v3968, %v5579
        %v5581 = vrcp.pop %v2561
        %v5582 = vmul.f32 %v2561, %v5581
        %v5583 = vsub.f32 1.0, %v5582
        %v5584 = vmul.f32 %v5581, %v5583
        %v5585 = vadd.f32 %v5581, %v5584
        %vm5586 = vweird.f32 %v2561
        %vm5587 = vweird.f32 %v5581
        %vm5588 = vmor %vm5586, %vm5587
        %v5589 = vsel %vm5588, %v5581, %v5585
        %v5590 = vand.u32 2147483647, %v2561
        %vm5591 = vcmp.eq.f32.partialorder %v5590, 8.507059e+37
        %v5592 = vand.u32 %v2561, 2147483648
        %v5593 = vor.u32 1.1754944e-38, %v5592
        %v5594 = vsel %vm5591, %v5593, %v5589
        %v5595 = vmul.f32 %v3969, %v5594
        %v5596 = vrcp.pop %v2562
        %v5597 = vmul.f32 %v2562, %v5596
        %v5598 = vsub.f32 1.0, %v5597
        %v5599 = vmul.f32 %v5596, %v5598
        %v5600 = vadd.f32 %v5596, %v5599
        %vm5601 = vweird.f32 %v2562
        %vm5602 = vweird.f32 %v5596
        %vm5603 = vmor %vm5601, %vm5602
        %v5604 = vsel %vm5603, %v5596, %v5600
        %v5605 = vand.u32 2147483647, %v2562
        %vm5606 = vcmp.eq.f32.partialorder %v5605, 8.507059e+37
        %v5607 = vand.u32 %v2562, 2147483648
        %v5608 = vor.u32 1.1754944e-38, %v5607
        %v5609 = vsel %vm5606, %v5608, %v5604
        %v5610 = vmul.f32 %v3970, %v5609
        %v5611 = vrcp.pop %v2563
        %v5612 = vmul.f32 %v2563, %v5611
        %v5613 = vsub.f32 1.0, %v5612
        %v5614 = vmul.f32 %v5611, %v5613
        %v5615 = vadd.f32 %v5611, %v5614
        %vm5616 = vweird.f32 %v2563
        %vm5617 = vweird.f32 %v5611
        %vm5618 = vmor %vm5616, %vm5617
        %v5619 = vsel %vm5618, %v5611, %v5615
        %v5620 = vand.u32 2147483647, %v2563
        %vm5621 = vcmp.eq.f32.partialorder %v5620, 8.507059e+37
        %v5622 = vand.u32 %v2563, 2147483648
        %v5623 = vor.u32 1.1754944e-38, %v5622
        %v5624 = vsel %vm5621, %v5623, %v5619
        %v5625 = vmul.f32 %v3971, %v5624
        %v5626 = vrcp.pop %v2564
        %v5627 = vmul.f32 %v2564, %v5626
        %v5628 = vsub.f32 1.0, %v5627
        %v5629 = vmul.f32 %v5626, %v5628
        %v5630 = vadd.f32 %v5626, %v5629
        %vm5631 = vweird.f32 %v2564
        %vm5632 = vweird.f32 %v5626
        %vm5633 = vmor %vm5631, %vm5632
        %v5634 = vsel %vm5633, %v5626, %v5630
        %v5635 = vand.u32 2147483647, %v2564
        %vm5636 = vcmp.eq.f32.partialorder %v5635, 8.507059e+37
        %v5637 = vand.u32 %v2564, 2147483648
        %v5638 = vor.u32 1.1754944e-38, %v5637
        %v5639 = vsel %vm5636, %v5638, %v5634
        %v5640 = vmul.f32 %v3972, %v5639
        %v5641 = vrcp.pop %v2565
        %v5642 = vmul.f32 %v2565, %v5641
        %v5643 = vsub.f32 1.0, %v5642
        %v5644 = vmul.f32 %v5641, %v5643
        %v5645 = vadd.f32 %v5641, %v5644
        %vm5646 = vweird.f32 %v2565
        %vm5647 = vweird.f32 %v5641
        %vm5648 = vmor %vm5646, %vm5647
        %v5649 = vsel %vm5648, %v5641, %v5645
        %v5650 = vand.u32 2147483647, %v2565
        %vm5651 = vcmp.eq.f32.partialorder %v5650, 8.507059e+37
        %v5652 = vand.u32 %v2565, 2147483648
        %v5653 = vor.u32 1.1754944e-38, %v5652
        %v5654 = vsel %vm5651, %v5653, %v5649
        %v5655 = vmul.f32 %v3973, %v5654
        %v5656 = vrcp.pop %v2566
        %v5657 = vmul.f32 %v2566, %v5656
        %v5658 = vsub.f32 1.0, %v5657
        %v5659 = vmul.f32 %v5656, %v5658
        %v5660 = vadd.f32 %v5656, %v5659
        %vm5661 = vweird.f32 %v2566
        %vm5662 = vweird.f32 %v5656
        %vm5663 = vmor %vm5661, %vm5662
        %v5664 = vsel %vm5663, %v5656, %v5660
        %v5665 = vand.u32 2147483647, %v2566
        %vm5666 = vcmp.eq.f32.partialorder %v5665, 8.507059e+37
        %v5667 = vand.u32 %v2566, 2147483648
        %v5668 = vor.u32 1.1754944e-38, %v5667
        %v5669 = vsel %vm5666, %v5668, %v5664
        %v5670 = vmul.f32 %v3974, %v5669
        %v5671 = vrcp.pop %v2567
        %v5672 = vmul.f32 %v2567, %v5671
        %v5673 = vsub.f32 1.0, %v5672
        %v5674 = vmul.f32 %v5671, %v5673
        %v5675 = vadd.f32 %v5671, %v5674
        %vm5676 = vweird.f32 %v2567
        %vm5677 = vweird.f32 %v5671
        %vm5678 = vmor %vm5676, %vm5677
        %v5679 = vsel %vm5678, %v5671, %v5675
        %v5680 = vand.u32 2147483647, %v2567
        %vm5681 = vcmp.eq.f32.partialorder %v5680, 8.507059e+37
        %v5682 = vand.u32 %v2567, 2147483648
        %v5683 = vor.u32 1.1754944e-38, %v5682
        %v5684 = vsel %vm5681, %v5683, %v5679
        %v5685 = vmul.f32 %v3975, %v5684
        %v5686 = vrcp.pop %v2568
        %v5687 = vmul.f32 %v2568, %v5686
        %v5688 = vsub.f32 1.0, %v5687
        %v5689 = vmul.f32 %v5686, %v5688
        %v5690 = vadd.f32 %v5686, %v5689
        %vm5691 = vweird.f32 %v2568
        %vm5692 = vweird.f32 %v5686
        %vm5693 = vmor %vm5691, %vm5692
        %v5694 = vsel %vm5693, %v5686, %v5690
        %v5695 = vand.u32 2147483647, %v2568
        %vm5696 = vcmp.eq.f32.partialorder %v5695, 8.507059e+37
        %v5697 = vand.u32 %v2568, 2147483648
        %v5698 = vor.u32 1.1754944e-38, %v5697
        %v5699 = vsel %vm5696, %v5698, %v5694
        %v5700 = vmul.f32 %v3976, %v5699
        %v5701 = vrcp.pop %v2569
        %v5702 = vmul.f32 %v2569, %v5701
        %v5703 = vsub.f32 1.0, %v5702
        %v5704 = vmul.f32 %v5701, %v5703
        %v5705 = vadd.f32 %v5701, %v5704
        %vm5706 = vweird.f32 %v2569
        %vm5707 = vweird.f32 %v5701
        %vm5708 = vmor %vm5706, %vm5707
        %v5709 = vsel %vm5708, %v5701, %v5705
        %v5710 = vand.u32 2147483647, %v2569
        %vm5711 = vcmp.eq.f32.partialorder %v5710, 8.507059e+37
        %v5712 = vand.u32 %v2569, 2147483648
        %v5713 = vor.u32 1.1754944e-38, %v5712
        %v5714 = vsel %vm5711, %v5713, %v5709
        %v5715 = vmul.f32 %v3977, %v5714
        %v5716 = vrcp.pop %v2570
        %v5717 = vmul.f32 %v2570, %v5716
        %v5718 = vsub.f32 1.0, %v5717
        %v5719 = vmul.f32 %v5716, %v5718
        %v5720 = vadd.f32 %v5716, %v5719
        %vm5721 = vweird.f32 %v2570
        %vm5722 = vweird.f32 %v5716
        %vm5723 = vmor %vm5721, %vm5722
        %v5724 = vsel %vm5723, %v5716, %v5720
        %v5725 = vand.u32 2147483647, %v2570
        %vm5726 = vcmp.eq.f32.partialorder %v5725, 8.507059e+37
        %v5727 = vand.u32 %v2570, 2147483648
        %v5728 = vor.u32 1.1754944e-38, %v5727
        %v5729 = vsel %vm5726, %v5728, %v5724
        %v5730 = vmul.f32 %v3978, %v5729
        %v5731 = vrcp.pop %v2571
        %v5732 = vmul.f32 %v2571, %v5731
        %v5733 = vsub.f32 1.0, %v5732
        %v5734 = vmul.f32 %v5731, %v5733
        %v5735 = vadd.f32 %v5731, %v5734
        %vm5736 = vweird.f32 %v2571
        %vm5737 = vweird.f32 %v5731
        %vm5738 = vmor %vm5736, %vm5737
        %v5739 = vsel %vm5738, %v5731, %v5735
        %v5740 = vand.u32 2147483647, %v2571
        %vm5741 = vcmp.eq.f32.partialorder %v5740, 8.507059e+37
        %v5742 = vand.u32 %v2571, 2147483648
        %v5743 = vor.u32 1.1754944e-38, %v5742
        %v5744 = vsel %vm5741, %v5743, %v5739
        %v5745 = vmul.f32 %v3979, %v5744
        %v5746 = vrcp.pop %v2572
        %v5747 = vmul.f32 %v2572, %v5746
        %v5748 = vsub.f32 1.0, %v5747
        %v5749 = vmul.f32 %v5746, %v5748
        %v5750 = vadd.f32 %v5746, %v5749
        %vm5751 = vweird.f32 %v2572
        %vm5752 = vweird.f32 %v5746
        %vm5753 = vmor %vm5751, %vm5752
        %v5754 = vsel %vm5753, %v5746, %v5750
        %v5755 = vand.u32 2147483647, %v2572
        %vm5756 = vcmp.eq.f32.partialorder %v5755, 8.507059e+37
        %v5757 = vand.u32 %v2572, 2147483648
        %v5758 = vor.u32 1.1754944e-38, %v5757
        %v5759 = vsel %vm5756, %v5758, %v5754
        %v5760 = vmul.f32 %v3980, %v5759
        %v5761 = vrcp.pop %v2573
        %v5762 = vmul.f32 %v2573, %v5761
        %v5763 = vsub.f32 1.0, %v5762
        %v5764 = vmul.f32 %v5761, %v5763
        %v5765 = vadd.f32 %v5761, %v5764
        %vm5766 = vweird.f32 %v2573
        %vm5767 = vweird.f32 %v5761
        %vm5768 = vmor %vm5766, %vm5767
        %v5769 = vsel %vm5768, %v5761, %v5765
        %v5770 = vand.u32 2147483647, %v2573
        %vm5771 = vcmp.eq.f32.partialorder %v5770, 8.507059e+37
        %v5772 = vand.u32 %v2573, 2147483648
        %v5773 = vor.u32 1.1754944e-38, %v5772
        %v5774 = vsel %vm5771, %v5773, %v5769
        %v5775 = vmul.f32 %v3981, %v5774
        %v5776 = vrcp.pop %v2574
        %v5777 = vmul.f32 %v2574, %v5776
        %v5778 = vsub.f32 1.0, %v5777
        %v5779 = vmul.f32 %v5776, %v5778
        %v5780 = vadd.f32 %v5776, %v5779
        %vm5781 = vweird.f32 %v2574
        %vm5782 = vweird.f32 %v5776
        %vm5783 = vmor %vm5781, %vm5782
        %v5784 = vsel %vm5783, %v5776, %v5780
        %v5785 = vand.u32 2147483647, %v2574
        %vm5786 = vcmp.eq.f32.partialorder %v5785, 8.507059e+37
        %v5787 = vand.u32 %v2574, 2147483648
        %v5788 = vor.u32 1.1754944e-38, %v5787
        %v5789 = vsel %vm5786, %v5788, %v5784
        %v5790 = vmul.f32 %v3982, %v5789
        %v5791 = vrcp.pop %v2575
        %v5792 = vmul.f32 %v2575, %v5791
        %v5793 = vsub.f32 1.0, %v5792
        %v5794 = vmul.f32 %v5791, %v5793
        %v5795 = vadd.f32 %v5791, %v5794
        %vm5796 = vweird.f32 %v2575
        %vm5797 = vweird.f32 %v5791
        %vm5798 = vmor %vm5796, %vm5797
        %v5799 = vsel %vm5798, %v5791, %v5795
        %v5800 = vand.u32 2147483647, %v2575
        %vm5801 = vcmp.eq.f32.partialorder %v5800, 8.507059e+37
        %v5802 = vand.u32 %v2575, 2147483648
        %v5803 = vor.u32 1.1754944e-38, %v5802
        %v5804 = vsel %vm5801, %v5803, %v5799
        %v5805 = vmul.f32 %v3983, %v5804
        %v5806 = vrcp.pop %v2576
        %v5807 = vmul.f32 %v2576, %v5806
        %v5808 = vsub.f32 1.0, %v5807
        %v5809 = vmul.f32 %v5806, %v5808
        %v5810 = vadd.f32 %v5806, %v5809
        %vm5811 = vweird.f32 %v2576
        %vm5812 = vweird.f32 %v5806
        %vm5813 = vmor %vm5811, %vm5812
        %v5814 = vsel %vm5813, %v5806, %v5810
        %v5815 = vand.u32 2147483647, %v2576
        %vm5816 = vcmp.eq.f32.partialorder %v5815, 8.507059e+37
        %v5817 = vand.u32 %v2576, 2147483648
        %v5818 = vor.u32 1.1754944e-38, %v5817
        %v5819 = vsel %vm5816, %v5818, %v5814
        %v5820 = vmul.f32 %v3984, %v5819
        %v5821 = vrcp.pop %v2577
        %v5822 = vmul.f32 %v2577, %v5821
        %v5823 = vsub.f32 1.0, %v5822
        %v5824 = vmul.f32 %v5821, %v5823
        %v5825 = vadd.f32 %v5821, %v5824
        %vm5826 = vweird.f32 %v2577
        %vm5827 = vweird.f32 %v5821
        %vm5828 = vmor %vm5826, %vm5827
        %v5829 = vsel %vm5828, %v5821, %v5825
        %v5830 = vand.u32 2147483647, %v2577
        %vm5831 = vcmp.eq.f32.partialorder %v5830, 8.507059e+37
        %v5832 = vand.u32 %v2577, 2147483648
        %v5833 = vor.u32 1.1754944e-38, %v5832
        %v5834 = vsel %vm5831, %v5833, %v5829
        %v5835 = vmul.f32 %v3985, %v5834
        %v5836 = vrcp.pop %v2578
        %v5837 = vmul.f32 %v2578, %v5836
        %v5838 = vsub.f32 1.0, %v5837
        %v5839 = vmul.f32 %v5836, %v5838
        %v5840 = vadd.f32 %v5836, %v5839
        %vm5841 = vweird.f32 %v2578
        %vm5842 = vweird.f32 %v5836
        %vm5843 = vmor %vm5841, %vm5842
        %v5844 = vsel %vm5843, %v5836, %v5840
        %v5845 = vand.u32 2147483647, %v2578
        %vm5846 = vcmp.eq.f32.partialorder %v5845, 8.507059e+37
        %v5847 = vand.u32 %v2578, 2147483648
        %v5848 = vor.u32 1.1754944e-38, %v5847
        %v5849 = vsel %vm5846, %v5848, %v5844
        %v5850 = vmul.f32 %v3986, %v5849
        %v5851 = vrcp.pop %v2579
        %v5852 = vmul.f32 %v2579, %v5851
        %v5853 = vsub.f32 1.0, %v5852
        %v5854 = vmul.f32 %v5851, %v5853
        %v5855 = vadd.f32 %v5851, %v5854
        %vm5856 = vweird.f32 %v2579
        %vm5857 = vweird.f32 %v5851
        %vm5858 = vmor %vm5856, %vm5857
        %v5859 = vsel %vm5858, %v5851, %v5855
        %v5860 = vand.u32 2147483647, %v2579
        %vm5861 = vcmp.eq.f32.partialorder %v5860, 8.507059e+37
        %v5862 = vand.u32 %v2579, 2147483648
        %v5863 = vor.u32 1.1754944e-38, %v5862
        %v5864 = vsel %vm5861, %v5863, %v5859
        %v5865 = vmul.f32 %v3987, %v5864
        %v5866 = vrcp.pop %v2580
        %v5867 = vmul.f32 %v2580, %v5866
        %v5868 = vsub.f32 1.0, %v5867
        %v5869 = vmul.f32 %v5866, %v5868
        %v5870 = vadd.f32 %v5866, %v5869
        %vm5871 = vweird.f32 %v2580
        %vm5872 = vweird.f32 %v5866
        %vm5873 = vmor %vm5871, %vm5872
        %v5874 = vsel %vm5873, %v5866, %v5870
        %v5875 = vand.u32 2147483647, %v2580
        %vm5876 = vcmp.eq.f32.partialorder %v5875, 8.507059e+37
        %v5877 = vand.u32 %v2580, 2147483648
        %v5878 = vor.u32 1.1754944e-38, %v5877
        %v5879 = vsel %vm5876, %v5878, %v5874
        %v5880 = vmul.f32 %v3988, %v5879
        %v5881 = vrcp.pop %v2581
        %v5882 = vmul.f32 %v2581, %v5881
        %v5883 = vsub.f32 1.0, %v5882
        %v5884 = vmul.f32 %v5881, %v5883
        %v5885 = vadd.f32 %v5881, %v5884
        %vm5886 = vweird.f32 %v2581
        %vm5887 = vweird.f32 %v5881
        %vm5888 = vmor %vm5886, %vm5887
        %v5889 = vsel %vm5888, %v5881, %v5885
        %v5890 = vand.u32 2147483647, %v2581
        %vm5891 = vcmp.eq.f32.partialorder %v5890, 8.507059e+37
        %v5892 = vand.u32 %v2581, 2147483648
        %v5893 = vor.u32 1.1754944e-38, %v5892
        %v5894 = vsel %vm5891, %v5893, %v5889
        %v5895 = vmul.f32 %v3989, %v5894
        %v5896 = vrcp.pop %v2582
        %v5897 = vmul.f32 %v2582, %v5896
        %v5898 = vsub.f32 1.0, %v5897
        %v5899 = vmul.f32 %v5896, %v5898
        %v5900 = vadd.f32 %v5896, %v5899
        %vm5901 = vweird.f32 %v2582
        %vm5902 = vweird.f32 %v5896
        %vm5903 = vmor %vm5901, %vm5902
        %v5904 = vsel %vm5903, %v5896, %v5900
        %v5905 = vand.u32 2147483647, %v2582
        %vm5906 = vcmp.eq.f32.partialorder %v5905, 8.507059e+37
        %v5907 = vand.u32 %v2582, 2147483648
        %v5908 = vor.u32 1.1754944e-38, %v5907
        %v5909 = vsel %vm5906, %v5908, %v5904
        %v5910 = vmul.f32 %v3990, %v5909
        %v5911 = vlog2.pop %v374
        %v5912 = vmul.f32 %v5911, 0.6931472
        %v5913 = vsub.f32 0.0, %v5912
        %s5914 = smul.u32 %s29, 8
        %v5915 = vlaneseq
        %v5916 = vshrl.u32 %v5915, 7
        %v5917 = vstv %s5914
        %v5918 = vadd.s32 %v5917, %v5916
        %s5919 = smul.u32 %s30, 128
        %v5920 = vstv %s5919
        %v5921 = vadd.s32 %v5920, %v350
        %vm5922 = vcmp.lt.s32.totalorder %v5918, 8
        %vm5923 = vcmp.lt.s32.totalorder %v5921, 8
        %vm5924 = vmand %vm5922, %vm5923
        %v5925 = vsel %vm5924, 1, 0
        %v5926 = vcvt.s32.f32 %v5925
        %v6055 = vperm.slane %v4005, %v350
        %v6056 = vadd.s32 %v350, 4294967288
        %v6057 = vperm.slane %v4020, %v6056
        %vm6058 = vcmask 130112
        %v6059 = vsel %vm6058, %v6057, %v6055
        %v6060 = vadd.s32 %v350, 4294967280
        %v6061 = vperm.slane %v4035, %v6060
        %vm6062 = vcmask 195712
        %v6063 = vsel %vm6062, %v6061, %v6059
        %v6064 = vadd.s32 %v350, 4294967272
        %v6065 = vperm.slane %v4050, %v6064
        %vm6066 = vcmask 261312
        %v6067 = vsel %vm6066, %v6065, %v6063
        %v6068 = vadd.s32 %v350, 4294967264
        %v6069 = vperm.slane %v4065, %v6068
        %vm6070 = vcmask 326912
        %v6071 = vsel %vm6070, %v6069, %v6067
        %v6072 = vadd.s32 %v350, 4294967256
        %v6073 = vperm.slane %v4080, %v6072
        %vm6074 = vcmask 392512
        %v6075 = vsel %vm6074, %v6073, %v6071
        %v6076 = vadd.s32 %v350, 4294967248
        %v6077 = vperm.slane %v4095, %v6076
        %vm6078 = vcmask 458112
        %v6079 = vsel %vm6078, %v6077, %v6075
        %v6080 = vadd.s32 %v350, 4294967240
        %v6081 = vperm.slane %v4110, %v6080
        %vm6082 = vcmask 523712
        %v6083 = vsel %vm6082, %v6081, %v6079
        %v6084 = vadd.s32 %v350, 4294967232
        %v6085 = vperm.slane %v4125, %v6084
        %vm6086 = vcmask 589312
        %v6087 = vsel %vm6086, %v6085, %v6083
        %v6088 = vadd.s32 %v350, 4294967224
        %v6089 = vperm.slane %v4140, %v6088
        %vm6090 = vcmask 654912
        %v6091 = vsel %vm6090, %v6089, %v6087
        %v6092 = vadd.s32 %v350, 4294967216
        %v6093 = vperm.slane %v4155, %v6092
        %vm6094 = vcmask 720512
        %v6095 = vsel %vm6094, %v6093, %v6091
        %v6096 = vadd.s32 %v350, 4294967208
        %v6097 = vperm.slane %v4170, %v6096
        %vm6098 = vcmask 786112
        %v6099 = vsel %vm6098, %v6097, %v6095
        %v6100 = vadd.s32 %v350, 4294967200
        %v6101 = vperm.slane %v4185, %v6100
        %vm6102 = vcmask 851712
        %v6103 = vsel %vm6102, %v6101, %v6099
        %v6104 = vadd.s32 %v350, 4294967192
        %v6105 = vperm.slane %v4200, %v6104
        %vm6106 = vcmask 917312
        %v6107 = vsel %vm6106, %v6105, %v6103
        %v6108 = vadd.s32 %v350, 4294967184
        %v6109 = vperm.slane %v4215, %v6108
        %vm6110 = vcmask 982912
        %v6111 = vsel %vm6110, %v6109, %v6107
        %v6112 = vadd.s32 %v350, 4294967176
        %v6113 = vperm.slane %v4230, %v6112
        %vm6114 = vcmask 1048512
        %v6115 = vsel %vm6114, %v6113, %v6111
        %v6116 = vperm.slane %v4245, %v350
        %v6117 = vperm.slane %v4260, %v6056
        %v6118 = vsel %vm6058, %v6117, %v6116
        %v6119 = vperm.slane %v4275, %v6060
        %v6120 = vsel %vm6062, %v6119, %v6118
        %v6121 = vperm.slane %v4290, %v6064
        %v6122 = vsel %vm6066, %v6121, %v6120
        %v6123 = vperm.slane %v4305, %v6068
        %v6124 = vsel %vm6070, %v6123, %v6122
        %v6125 = vperm.slane %v4320, %v6072
        %v6126 = vsel %vm6074, %v6125, %v6124
        %v6127 = vperm.slane %v4335, %v6076
        %v6128 = vsel %vm6078, %v6127, %v6126
        %v6129 = vperm.slane %v4350, %v6080
        %v6130 = vsel %vm6082, %v6129, %v6128
        %v6131 = vperm.slane %v4365, %v6084
        %v6132 = vsel %vm6086, %v6131, %v6130
        %v6133 = vperm.slane %v4380, %v6088
        %v6134 = vsel %vm6090, %v6133, %v6132
        %v6135 = vperm.slane %v4395, %v6092
        %v6136 = vsel %vm6094, %v6135, %v6134
        %v6137 = vperm.slane %v4410, %v6096
        %v6138 = vsel %vm6098, %v6137, %v6136
        %v6139 = vperm.slane %v4425, %v6100
        %v6140 = vsel %vm6102, %v6139, %v6138
        %v6141 = vperm.slane %v4440, %v6104
        %v6142 = vsel %vm6106, %v6141, %v6140
        %v6143 = vperm.slane %v4455, %v6108
        %v6144 = vsel %vm6110, %v6143, %v6142
        %v6145 = vperm.slane %v4470, %v6112
        %v6146 = vsel %vm6114, %v6145, %v6144
        %v6147 = vperm.slane %v4485, %v350
        %v6148 = vperm.slane %v4500, %v6056
        %v6149 = vsel %vm6058, %v6148, %v6147
        %v6150 = vperm.slane %v4515, %v6060
        %v6151 = vsel %vm6062, %v6150, %v6149
        %v6152 = vperm.slane %v4530, %v6064
        %v6153 = vsel %vm6066, %v6152, %v6151
        %v6154 = vperm.slane %v4545, %v6068
        %v6155 = vsel %vm6070, %v6154, %v6153
        %v6156 = vperm.slane %v4560, %v6072
        %v6157 = vsel %vm6074, %v6156, %v6155
        %v6158 = vperm.slane %v4575, %v6076
        %v6159 = vsel %vm6078, %v6158, %v6157
        %v6160 = vperm.slane %v4590, %v6080
        %v6161 = vsel %vm6082, %v6160, %v6159
        %v6162 = vperm.slane %v4605, %v6084
        %v6163 = vsel %vm6086, %v6162, %v6161
        %v6164 = vperm.slane %v4620, %v6088
        %v6165 = vsel %vm6090, %v6164, %v6163
        %v6166 = vperm.slane %v4635, %v6092
        %v6167 = vsel %vm6094, %v6166, %v6165
        %v6168 = vperm.slane %v4650, %v6096
        %v6169 = vsel %vm6098, %v6168, %v6167
        %v6170 = vperm.slane %v4665, %v6100
        %v6171 = vsel %vm6102, %v6170, %v6169
        %v6172 = vperm.slane %v4680, %v6104
        %v6173 = vsel %vm6106, %v6172, %v6171
        %v6174 = vperm.slane %v4695, %v6108
        %v6175 = vsel %vm6110, %v6174, %v6173
        %v6176 = vperm.slane %v4710, %v6112
        %v6177 = vsel %vm6114, %v6176, %v6175
        %v6178 = vperm.slane %v4725, %v350
        %v6179 = vperm.slane %v4740, %v6056
        %v6180 = vsel %vm6058, %v6179, %v6178
        %v6181 = vperm.slane %v4755, %v6060
        %v6182 = vsel %vm6062, %v6181, %v6180
        %v6183 = vperm.slane %v4770, %v6064
        %v6184 = vsel %vm6066, %v6183, %v6182
        %v6185 = vperm.slane %v4785, %v6068
        %v6186 = vsel %vm6070, %v6185, %v6184
        %v6187 = vperm.slane %v4800, %v6072
        %v6188 = vsel %vm6074, %v6187, %v6186
        %v6189 = vperm.slane %v4815, %v6076
        %v6190 = vsel %vm6078, %v6189, %v6188
        %v6191 = vperm.slane %v4830, %v6080
        %v6192 = vsel %vm6082, %v6191, %v6190
        %v6193 = vperm.slane %v4845, %v6084
        %v6194 = vsel %vm6086, %v6193, %v6192
        %v6195 = vperm.slane %v4860, %v6088
        %v6196 = vsel %vm6090, %v6195, %v6194
        %v6197 = vperm.slane %v4875, %v6092
        %v6198 = vsel %vm6094, %v6197, %v6196
        %v6199 = vperm.slane %v4890, %v6096
        %v6200 = vsel %vm6098, %v6199, %v6198
        %v6201 = vperm.slane %v4905, %v6100
        %v6202 = vsel %vm6102, %v6201, %v6200
        %v6203 = vperm.slane %v4920, %v6104
        %v6204 = vsel %vm6106, %v6203, %v6202
        %v6205 = vperm.slane %v4935, %v6108
        %v6206 = vsel %vm6110, %v6205, %v6204
        %v6207 = vperm.slane %v4950, %v6112
        %v6208 = vsel %vm6114, %v6207, %v6206
        %v6209 = vperm.slane %v4965, %v350
        %v6210 = vperm.slane %v4980, %v6056
        %v6211 = vsel %vm6058, %v6210, %v6209
        %v6212 = vperm.slane %v4995, %v6060
        %v6213 = vsel %vm6062, %v6212, %v6211
        %v6214 = vperm.slane %v5010, %v6064
        %v6215 = vsel %vm6066, %v6214, %v6213
        %v6216 = vperm.slane %v5025, %v6068
        %v6217 = vsel %vm6070, %v6216, %v6215
        %v6218 = vperm.slane %v5040, %v6072
        %v6219 = vsel %vm6074, %v6218, %v6217
        %v6220 = vperm.slane %v5055, %v6076
        %v6221 = vsel %vm6078, %v6220, %v6219
        %v6222 = vperm.slane %v5070, %v6080
        %v6223 = vsel %vm6082, %v6222, %v6221
        %v6224 = vperm.slane %v5085, %v6084
        %v6225 = vsel %vm6086, %v6224, %v6223
        %v6226 = vperm.slane %v5100, %v6088
        %v6227 = vsel %vm6090, %v6226, %v6225
        %v6228 = vperm.slane %v5115, %v6092
        %v6229 = vsel %vm6094, %v6228, %v6227
        %v6230 = vperm.slane %v5130, %v6096
        %v6231 = vsel %vm6098, %v6230, %v6229
        %v6232 = vperm.slane %v5145, %v6100
        %v6233 = vsel %vm6102, %v6232, %v6231
        %v6234 = vperm.slane %v5160, %v6104
        %v6235 = vsel %vm6106, %v6234, %v6233
        %v6236 = vperm.slane %v5175, %v6108
        %v6237 = vsel %vm6110, %v6236, %v6235
        %v6238 = vperm.slane %v5190, %v6112
        %v6239 = vsel %vm6114, %v6238, %v6237
        %v6240 = vperm.slane %v5205, %v350
        %v6241 = vperm.slane %v5220, %v6056
        %v6242 = vsel %vm6058, %v6241, %v6240
        %v6243 = vperm.slane %v5235, %v6060
        %v6244 = vsel %vm6062, %v6243, %v6242
        %v6245 = vperm.slane %v5250, %v6064
        %v6246 = vsel %vm6066, %v6245, %v6244
        %v6247 = vperm.slane %v5265, %v6068
        %v6248 = vsel %vm6070, %v6247, %v6246
        %v6249 = vperm.slane %v5280, %v6072
        %v6250 = vsel %vm6074, %v6249, %v6248
        %v6251 = vperm.slane %v5295, %v6076
        %v6252 = vsel %vm6078, %v6251, %v6250
        %v6253 = vperm.slane %v5310, %v6080
        %v6254 = vsel %vm6082, %v6253, %v6252
        %v6255 = vperm.slane %v5325, %v6084
        %v6256 = vsel %vm6086, %v6255, %v6254
        %v6257 = vperm.slane %v5340, %v6088
        %v6258 = vsel %vm6090, %v6257, %v6256
        %v6259 = vperm.slane %v5355, %v6092
        %v6260 = vsel %vm6094, %v6259, %v6258
        %v6261 = vperm.slane %v5370, %v6096
        %v6262 = vsel %vm6098, %v6261, %v6260
        %v6263 = vperm.slane %v5385, %v6100
        %v6264 = vsel %vm6102, %v6263, %v6262
        %v6265 = vperm.slane %v5400, %v6104
        %v6266 = vsel %vm6106, %v6265, %v6264
        %v6267 = vperm.slane %v5415, %v6108
        %v6268 = vsel %vm6110, %v6267, %v6266
        %v6269 = vperm.slane %v5430, %v6112
        %v6270 = vsel %vm6114, %v6269, %v6268
        %v6271 = vperm.slane %v5445, %v350
        %v6272 = vperm.slane %v5460, %v6056
        %v6273 = vsel %vm6058, %v6272, %v6271
        %v6274 = vperm.slane %v5475, %v6060
        %v6275 = vsel %vm6062, %v6274, %v6273
        %v6276 = vperm.slane %v5490, %v6064
        %v6277 = vsel %vm6066, %v6276, %v6275
        %v6278 = vperm.slane %v5505, %v6068
        %v6279 = vsel %vm6070, %v6278, %v6277
        %v6280 = vperm.slane %v5520, %v6072
        %v6281 = vsel %vm6074, %v6280, %v6279
        %v6282 = vperm.slane %v5535, %v6076
        %v6283 = vsel %vm6078, %v6282, %v6281
        %v6284 = vperm.slane %v5550, %v6080
        %v6285 = vsel %vm6082, %v6284, %v6283
        %v6286 = vperm.slane %v5565, %v6084
        %v6287 = vsel %vm6086, %v6286, %v6285
        %v6288 = vperm.slane %v5580, %v6088
        %v6289 = vsel %vm6090, %v6288, %v6287
        %v6290 = vperm.slane %v5595, %v6092
        %v6291 = vsel %vm6094, %v6290, %v6289
        %v6292 = vperm.slane %v5610, %v6096
        %v6293 = vsel %vm6098, %v6292, %v6291
        %v6294 = vperm.slane %v5625, %v6100
        %v6295 = vsel %vm6102, %v6294, %v6293
        %v6296 = vperm.slane %v5640, %v6104
        %v6297 = vsel %vm6106, %v6296, %v6295
        %v6298 = vperm.slane %v5655, %v6108
        %v6299 = vsel %vm6110, %v6298, %v6297
        %v6300 = vperm.slane %v5670, %v6112
        %v6301 = vsel %vm6114, %v6300, %v6299
        %v6302 = vperm.slane %v5685, %v350
        %v6303 = vperm.slane %v5700, %v6056
        %v6304 = vsel %vm6058, %v6303, %v6302
        %v6305 = vperm.slane %v5715, %v6060
        %v6306 = vsel %vm6062, %v6305, %v6304
        %v6307 = vperm.slane %v5730, %v6064
        %v6308 = vsel %vm6066, %v6307, %v6306
        %v6309 = vperm.slane %v5745, %v6068
        %v6310 = vsel %vm6070, %v6309, %v6308
        %v6311 = vperm.slane %v5760, %v6072
        %v6312 = vsel %vm6074, %v6311, %v6310
        %v6313 = vperm.slane %v5775, %v6076
        %v6314 = vsel %vm6078, %v6313, %v6312
        %v6315 = vperm.slane %v5790, %v6080
        %v6316 = vsel %vm6082, %v6315, %v6314
        %v6317 = vperm.slane %v5805, %v6084
        %v6318 = vsel %vm6086, %v6317, %v6316
        %v6319 = vperm.slane %v5820, %v6088
        %v6320 = vsel %vm6090, %v6319, %v6318
        %v6321 = vperm.slane %v5835, %v6092
        %v6322 = vsel %vm6094, %v6321, %v6320
        %v6323 = vperm.slane %v5850, %v6096
        %v6324 = vsel %vm6098, %v6323, %v6322
        %v6325 = vperm.slane %v5865, %v6100
        %v6326 = vsel %vm6102, %v6325, %v6324
        %v6327 = vperm.slane %v5880, %v6104
        %v6328 = vsel %vm6106, %v6327, %v6326
        %v6329 = vperm.slane %v5895, %v6108
        %v6330 = vsel %vm6110, %v6329, %v6328
        %v6331 = vperm.slane %v5910, %v6112
        %v6332 = vsel %vm6114, %v6331, %v6330
        %vm6333 = vcmask 1041409
        %v6334 = vsel %vm6333, %v6146, %v6115
        %vm6335 = vcmask 1042434
        %v6336 = vsel %vm6335, %v6177, %v6334
        %vm6337 = vcmask 1043459
        %v6338 = vsel %vm6337, %v6208, %v6336
        %vm6339 = vcmask 1044484
        %v6340 = vsel %vm6339, %v6239, %v6338
        %vm6341 = vcmask 1045509
        %v6342 = vsel %vm6341, %v6270, %v6340
        %vm6343 = vcmask 1046534
        %v6344 = vsel %vm6343, %v6301, %v6342
        %vm6345 = vcmask 1047559
        %v6346 = vsel %vm6345, %v6332, %v6344
        %v6348 = vmul.f32 %v5913, %v6346
        %v6349 = vmul.f32 %v6348, %v5926
        %6350 = vadd.xlane.f32.xlu0 %v6349
        %v6351 = vpop.xlane.xlu0 %6350
        %v6352 = vrot.slane %v6351, 4
        %v6353 = vadd.f32 %v6351, %v6352
        %v6354 = vrot.slane %v6353, 2
        %v6355 = vadd.f32 %v6353, %v6354
        %v6356 = vrot.slane %v6355, 1
        %v6357 = vadd.f32 %v6355, %v6356
        %p6358 = scmp.eq.s32.totalorder %s29, 0
        %p6359 = scmp.eq.s32.totalorder %s30, 0
        %p6360 = pnand %p6358, %p6359
        %p6361 = pneg %p6360
        // Predicated region
        $region45: #{tpu_custom_call.1} parent=31 // pred_check
          _
        $region46: #{tpu_custom_call.1} parent=31 // pred_check_branch
          %6363 = sbr.rel (%p6360) target = $region48
        $region47: #{tpu_custom_call.1} parent=31 // pred_region
          %6364 = vst [vmem:[%s293] sm:$0xff] 0.0
        $region48: #{tpu_custom_call.1} parent=31 // pred_fallthru
          _
        %v6365 = vld [vmem:[%s293] sm:$0xff]
        %v6366 = vadd.f32 %v6365, %v6357
        %6367 = vst [vmem:[%s293] sm:$0xff] %v6366
        %s6368 = sand.u32 %s132, 1
        %s6369 = scalar_lea.sflag [#allocation4], %s6368
        %s6370 = sand.u32 %s132, 1
        %s6371 = smul.addr %s6370, 8
        %s6372 = scalar_lea.vmem [#allocation8], %s6371
        // Predicated region
        $region49: #{tpu_custom_call.1} parent=31 // pred_check
          %p6373 = pneg %p142
        $region50: #{tpu_custom_call.1} parent=31 // pred_check_branch
          %6375 = sbr.rel (%p6373) target = $region52
        $region51: #{tpu_custom_call.1} parent=31 // pred_region
          %6377 = vsyncadd %s6369, 0
          %s6378 = smul.addr %s28, 8
          %s6379 = scalar_lea.hbm %s3, %s6378
          %s6381 = sshll.u32 %s6372, 4
          %s6382 = int_to_ptr.vmem [resolvable:$true] %s6381
          %s6383 = sshll.u32 %s6379, 4
          %s6384 = int_to_ptr.hbm [resolvable:$true] %s6383
          %6386 = dma.vmem_to_hbm [thread:$0]  %s6382, 128, %s6384, %s6369
        $region52: #{tpu_custom_call.1} parent=31 // pred_fallthru
          _
      $region32: #{tpu_custom_call.1} parent=5 // pred_fallthru
        _
      %p6387 = scmp.le.s32.totalorder 2, %s18
      // Predicated region
      $region53: #{tpu_custom_call.1} parent=5 // pred_check
        %p6388 = pneg %p6387
      $region54: #{tpu_custom_call.1} parent=5 // pred_check_branch
        %6390 = sbr.rel (%p6388) target = $region56
      $region55: #{tpu_custom_call.1} parent=5 // pred_region
        %s6391 = ssub.s32 %s18, 2
        // Predicated region
        $region57: #{tpu_custom_call.1} parent=55 // pred_check
          %p6392 = pneg %p148
        $region58: #{tpu_custom_call.1} parent=55 // pred_check_branch
          %6394 = sbr.rel (%p6392) target = $region60
        $region59: #{tpu_custom_call.1} parent=55 // pred_region
          %s6395 = sand.u32 %s133, 1
          %s6396 = scalar_lea.sflag [#allocation4], %s6395
          %s6397 = sand.u32 %s133, 1
          %s6398 = smul.addr %s6397, 8
          %s6399 = scalar_lea.vmem [#allocation8], %s6398
          %6401 = dma.done %s6396, 128
        $region60: #{tpu_custom_call.1} parent=55 // pred_fallthru
          _
      $region56: #{tpu_custom_call.1} parent=5 // pred_fallthru
        _
    $region6: #{tpu_custom_call.1} parent=1 // loop_footer
      %s22 = sadd.s32 1, %s18
    $region7: #{tpu_custom_call.1} parent=1 // loop_footer_branch
      %17 = sbr.rel target = $region3
    $region8: #{tpu_custom_call.1} parent=1 // loop_exit
      _
    %6402 = vsyncpa [#allocation3], 1
    %s6403 = scalar_lea.sflag [#allocation3], 1
    %6404 = vsyncpa %s6403, 1
    %6405 = vsyncpa [#allocation6], 1
    %s6406 = scalar_lea.sflag [#allocation6], 1
    %6407 = vsyncpa %s6406, 1
    %6408 = vsyncpa [#allocation4], 1
    %s6409 = scalar_lea.sflag [#allocation4], 1
    %6410 = vsyncpa %s6409, 1

</llo_original>
